<compile_context>
chip_gen: v7x
topology: tpu7x:2x2x1
jax: 0.10.0
libtpu: 0.0.40
codegen_flags: <defaults>
</compile_context>

<pallas_src>
import functools

import numpy as np
import jax
import jax.numpy as jnp
from jax import lax
from jax.experimental import pallas as pl
from jax.experimental.pallas import tpu as pltpu


_LAYER_CFGS = [
    dict(cin=12, cout=12, k=(1, 5), s=(1, 1), p=(0, 2)),  # conv1a / bn1a
    dict(cin=12, cout=12, k=(2, 5), s=(2, 2), p=(1, 2)),  # conv1b / bn1b
    dict(cin=12, cout=24, k=(1, 5), s=(1, 1), p=(0, 2)),  # conv2a / bn2a
    dict(cin=24, cout=24, k=(2, 5), s=(2, 2), p=(0, 2)),  # conv2b / bn2b
    dict(cin=24, cout=48, k=(1, 5), s=(1, 1), p=(0, 2)),  # conv3a / bn3a
    dict(cin=48, cout=48, k=(1, 5), s=(1, 2), p=(0, 2)),  # conv3b / bn3b
]
_BN_EPS = 1e-5
_LANE = 128
_SUBLANE = 8


def _round_up(x, m):
    return ((x + m - 1) // m) * m


def _conv_out(size, k, s, p):
    return (size + 2 * p - k) // s + 1


def _w_tap_select(w_in, w_out, kw, sw, pw):
    """E[wi, wo, k] = 1 iff input column wi feeds output column wo via tap k."""
    e = np.zeros((w_in, w_out, kw), np.float32)
    for wo in range(w_out):
        for k in range(kw):
            wi = wo * sw + k - pw
            if 0 <= wi < w_in:
                e[wi, wo, k] = 1.0
    return e


def _h_tap_select(b, h_in, h_out, kh, sh, ph, r):
    """Per-tap 0/1 row-selection matrices padded to (r, r).

    Rows >= b*h_out and cols >= b*h_in are zero, so padded ("junk") activation
    rows of the previous layer never contaminate valid rows.
    """
    mats = []
    for ih in range(kh):
        m = np.zeros((r, r), np.float32)
        for bb in range(b):
            for ho in range(h_out):
                hi = ho * sh + ih - ph
                if 0 <= hi < h_in:
                    m[bb * h_out + ho, bb * h_in + hi] = 1.0
        mats.append(jnp.asarray(m))
    return mats


def prepare_operands(params, in_shape):
    """Fold conv weights + eval-mode BN into packed, tile-aligned matmul operands.

    Returns (info, ops): `info` is static structure consumed at trace time,
    `ops` is the flat tuple of (2 weight buffers + 1 L buffer) arrays.
    """
    b, c, h, w = in_shape
    assert c == _LAYER_CFGS[0]["cin"], "input channel count must be 12"
    r = _round_up(b * h, _SUBLANE)          # row capacity carried through all layers

    buf_order = []          # padded widths, in first-seen order -> buffer index
    buf_blocks = {}         # pad_w -> list of row blocks
    buf_rows = {}           # pad_w -> running row count
    l_blocks = []
    metas = []

    def add_block(pad_w, arr):
        if pad_w not in buf_rows:
            buf_rows[pad_w] = 0
            buf_blocks[pad_w] = []
            buf_order.append(pad_w)
        off = buf_rows[pad_w]
        buf_blocks[pad_w].append(arr)
        buf_rows[pad_w] += int(arr.shape[0])
        return off

    h_in, w_in = h, w
    in_pad_w = _round_up(w_in * c, _LANE)
    prev_pad_w = in_pad_w
    n_layers = len(_LAYER_CFGS)

    for li, (p, cfg) in enumerate(zip(params, _LAYER_CFGS)):
        kh, kw = cfg["k"]
        sh, sw = cfg["s"]
        ph, pw = cfg["p"]
        cin, cout = cfg["cin"], cfg["cout"]
        h_out = _conv_out(h_in, kh, sh, ph)
        w_out = _conv_out(w_in, kw, sw, pw)
        last = li == n_layers - 1
        n_out = w_out * cout
        out_pad_w = _round_up(n_out, _LANE)   # 192 -> 256 padding happens here

        # Fold eval-mode BatchNorm into a per-output-channel scale/bias.
        scale = p["gamma"] / jnp.sqrt(p["rvar"] + _BN_EPS)            # (cout,)
        bias = (p["b"] - p["rmean"]) * scale + p["beta"]              # (cout,)
        w_scaled = p["w"].astype(jnp.float32) * scale[:, None, None, None]

        e = jnp.asarray(_w_tap_select(w_in, w_out, kw, sw, pw))       # (w_in, w_out, kw)

        g_taps = []
        for ih in range(kh):
            w_tap = w_scaled[:, :, ih, :]                             # (cout, cin, kw)
            if last:
                # Output columns ordered (cout, w_out): matches torch's NCHW
                # view(B, -1) flatten order (final H_out == 1 here).
                g = jnp.einsum("xuk,oik->xiou", e, w_tap,
                               precision=lax.Precision.HIGHEST)
                g = g.reshape(w_in * cin, cout * w_out)
            else:
                g = jnp.einsum("xuk,oik->xiuo", e, w_tap,
                               precision=lax.Precision.HIGHEST)
                g = g.reshape(w_in * cin, n_out)
            # Rows padded to the (padded) width of the previous activation,
            # columns padded up to a multiple of 128.  Pad values are zero.
            g = jnp.pad(g, ((0, prev_pad_w - w_in * cin), (0, out_pad_w - n_out)))
            g_taps.append(g)
        # K-concatenation (review item 1): stack the height taps vertically so
        # the layer needs a single big matmul.
        g_full = jnp.concatenate(g_taps, axis=0) if kh > 1 else g_taps[0]

        if last:
            b_row = jnp.broadcast_to(bias[:, None], (cout, w_out)).reshape(1, n_out)
        else:
            b_row = jnp.broadcast_to(bias[None, :], (w_out, cout)).reshape(1, n_out)
        # Padded bias lanes are zero -> ReLU keeps padded activation lanes at 0.
        b_row = jnp.pad(b_row, ((0, _SUBLANE - 1), (0, out_pad_w - n_out)))

        g_off = add_block(out_pad_w, g_full)
        b_off = add_block(out_pad_w, b_row)

        need_l = not (kh == 1 and sh == 1 and ph == 0)
        l_off = 0
        if need_l:
            l_off = len(l_blocks) * r
            l_blocks.extend(_h_tap_select(b, h_in, h_out, kh, sh, ph, r))

        metas.append(dict(pad_w=out_pad_w, g_off=g_off, g_rows=int(g_full.shape[0]),
                          b_off=b_off, taps=kh, need_l=need_l, l_off=l_off))
        h_in, w_in = h_out, w_out
        prev_pad_w = out_pad_w

    buffers = tuple(jnp.concatenate(buf_blocks[k], axis=0).astype(jnp.float32)
                    for k in buf_order)
    has_l = bool(l_blocks)
    ops = buffers + ((jnp.concatenate(l_blocks, axis=0).astype(jnp.float32),)
                     if has_l else ())

    buf_index = {k: i for i, k in enumerate(buf_order)}
    for m in metas:
        m["buf"] = buf_index[m["pad_w"]]

    info = dict(metas=tuple(metas), n_bufs=len(buffers), has_l=has_l, r=r,
                in_pad_w=in_pad_w, out_pad_w=prev_pad_w,
                final=dict(h_out=h_in, w_out=w_in, cout=_LAYER_CFGS[-1]["cout"]))
    return info, ops


def _make_fused_kernel(info):
    """Build the fused 6-layer kernel body from static packing metadata."""
    metas = info["metas"]
    n_bufs = info["n_bufs"]
    has_l = info["has_l"]
    r = info["r"]

    def kernel(*refs):
        x_ref = refs[0]
        buf_refs = refs[1:1 + n_bufs]
        l_ref = refs[1 + n_bufs] if has_l else None
        out_ref = refs[-1]

        a = x_ref[...]                                    # (r, in_pad_w)
        for m in metas:
            wref = buf_refs[m["buf"]]
            g = wref[m["g_off"]:m["g_off"] + m["g_rows"], :]
            bias = wref[m["b_off"]:m["b_off"] + 1, :]
            if m["need_l"]:
                parts = []
                for t in range(m["taps"]):
                    lt = l_ref[m["l_off"] + t * r:m["l_off"] + (t + 1) * r, :]
                    parts.append(jnp.dot(lt, a, preferred_element_type=jnp.float32))
                # Lane concat of the per-tap row-selected activations -> one
                # K-stacked matmul instead of two matmuls + a VPU add.
                lhs = parts[0] if len(parts) == 1 else jnp.concatenate(parts, axis=-1)
            else:
                lhs = a
            acc = jnp.dot(lhs, g, preferred_element_type=jnp.float32)
            a = jnp.maximum(acc + bias, 0.0)              # folded BN + bias + ReLU
        out_ref[...] = a

    return kernel


def emo_encode_fused(x_nchw, ops, *, info):
    b, c, h, w = x_nchw.shape
    r = info["r"]
    in_pad_w = info["in_pad_w"]

    # Single cheap layout prep: NCHW -> rows=(b, h), cols=(w, c), tile-padded.
    a0 = jnp.transpose(x_nchw.astype(jnp.float32), (0, 2, 3, 1)).reshape(b * h, w * c)
    a0 = jnp.pad(a0, ((0, r - b * h), (0, in_pad_w - w * c)))

    n_in = 1 + len(ops)
    out2d = pl.pallas_call(
        _make_fused_kernel(info),
        out_shape=jax.ShapeDtypeStruct((r, info["out_pad_w"]), jnp.float32),
        # Whole-array blocks, all VMEM-resident (total operands ~3.5 MB).
        in_specs=[pl.BlockSpec(memory_space=pltpu.MemorySpace.VMEM)
                  for _ in range(n_in)],
        out_specs=pl.BlockSpec(memory_space=pltpu.MemorySpace.VMEM),
        compiler_params=pltpu.CompilerParams(vmem_limit_bytes=32 * 1024 * 1024),
    )(a0, *ops)

    f = info["final"]
    hf, wf, cf = f["h_out"], f["w_out"], f["cout"]
    valid = out2d[:b * hf, :cf * wf]          # drop row/lane padding
    if hf == 1:
        # Columns are already (c, w) -> exactly torch's view(B, -1) order.
        return valid.reshape(b, cf * wf)
    # General case: rows=(b, h), cols=(c, w) -> torch flatten order (c, h, w).
    return valid.reshape(b, hf, cf, wf).transpose(0, 2, 1, 3).reshape(b, -1)


# -----------------------------------------------------------------------------
# Parameters + pure-JAX reference (lax.conv) used to validate the Pallas path
# -----------------------------------------------------------------------------
def init_params(key):
    params = []
    for cfg in _LAYER_CFGS:
        key, k1, k2, k3, k4, k5, k6 = jax.random.split(key, 7)
        cout, cin = cfg["cout"], cfg["cin"]
        kh, kw = cfg["k"]
        params.append(dict(
            w=0.1 * jax.random.normal(k1, (cout, cin, kh, kw), jnp.float32),
            b=0.1 * jax.random.normal(k2, (cout,), jnp.float32),
            gamma=1.0 + 0.1 * jax.random.normal(k3, (cout,), jnp.float32),
            beta=0.1 * jax.random.normal(k4, (cout,), jnp.float32),
            rmean=0.1 * jax.random.normal(k5, (cout,), jnp.float32),
            rvar=1.0 + 0.1 * jnp.abs(jax.random.normal(k6, (cout,), jnp.float32)),
        ))
    return params


def emo_encode_ref(x_nchw, params):
    x = x_nchw.astype(jnp.float32)
    for p, cfg in zip(params, _LAYER_CFGS):
        y = lax.conv_general_dilated(
            x, p["w"],
            window_strides=cfg["s"],
            padding=[(cfg["p"][0], cfg["p"][0]), (cfg["p"][1], cfg["p"][1])],
            dimension_numbers=("NCHW", "OIHW", "NCHW"),
            precision=lax.Precision.HIGHEST)
        y = y + p["b"][None, :, None, None]
        y = (y - p["rmean"][None, :, None, None]) / jnp.sqrt(
            p["rvar"][None, :, None, None] + _BN_EPS)
        y = y * p["gamma"][None, :, None, None] + p["beta"][None, :, None, None]
        x = jnp.maximum(y, 0.0)
    return x.reshape(x.shape[0], -1)


if __name__ == "__main__":
    key = jax.random.PRNGKey(0)
    key, pkey, xkey = jax.random.split(key, 3)
    params = init_params(pkey)

    # Input: batch=2, 12 channels (required by conv1a), spatial 4x32.
    x = jax.random.normal(xkey, (2, 12, 4, 32), jnp.float32)

    # One-time parameter folding + operand packing, outside the hot path.
    info, ops = prepare_operands(params, x.shape)

    fwd = jax.jit(functools.partial(emo_encode_fused, info=info))
    out = jax.block_until_ready(fwd(x, ops))

    ref = jax.block_until_ready(emo_encode_ref(x, params))

    assert out.shape == (2, 48 * 1 * 4), f"unexpected output shape {out.shape}"
    max_err = float(jnp.max(jnp.abs(out - ref)))
    assert jnp.allclose(out, ref, rtol=5e-4, atol=5e-4), \
        f"Pallas result mismatch (max abs err {max_err})"

    print("KERNEL_OK")
</pallas_src>

<mosaic_0001>
module attributes {stable_mosaic.version = 11 : i64} {
  func.func @kernel(%arg0: memref<8x384xf32, #tpu.memory_space<vmem>>, %arg1: memref<920x384xf32, #tpu.memory_space<vmem>>, %arg2: memref<1944x256xf32, #tpu.memory_space<vmem>>, %arg3: memref<32x8xf32, #tpu.memory_space<vmem>>, %arg4: memref<8x256xf32, #tpu.memory_space<vmem>>) attributes {dimension_semantics = [], scalar_prefetch = 0 : i64, scratch_operands = 0 : i64, tpu.core_type = #tpu.core_type<tc>} {
    %c0 = arith.constant 0 : index
    %c0_0 = arith.constant 0 : index
    %0 = vector.load %arg0[%c0, %c0_0] : memref<8x384xf32, #tpu.memory_space<vmem>>, vector<8x384xf32>
    %c0_1 = arith.constant 0 : index
    %c0_2 = arith.constant 0 : index
    %1 = vector.load %arg1[%c0_1, %c0_2] : memref<920x384xf32, #tpu.memory_space<vmem>>, vector<384x384xf32>
    %c384 = arith.constant 384 : index
    %c0_3 = arith.constant 0 : index
    %2 = vector.load %arg1[%c384, %c0_3] : memref<920x384xf32, #tpu.memory_space<vmem>>, vector<1x384xf32>
    %cst = arith.constant dense<0.000000e+00> : vector<8x384xf32>
    %3 = tpu.matmul %0, %1, %cst {dimension_numbers = #tpu.dot_dimension_numbers<[1], [0], [0], [1], [0, 0, 1, 1], [], []>} : vector<8x384xf32>, vector<384x384xf32>, vector<8x384xf32> -> vector<8x384xf32>
    %4 = vector.broadcast %2 : vector<1x384xf32> to vector<8x384xf32>
    %5 = arith.addf %3, %4 : vector<8x384xf32>
    %cst_4 = arith.constant 0.000000e+00 : f32
    %6 = vector.broadcast %cst_4 : f32 to vector<8x384xf32>
    %7 = arith.maximumf %5, %6 : vector<8x384xf32>
    %c0_5 = arith.constant 0 : index
    %c0_6 = arith.constant 0 : index
    %8 = vector.load %arg2[%c0_5, %c0_6] : memref<1944x256xf32, #tpu.memory_space<vmem>>, vector<768x256xf32>
    %c768 = arith.constant 768 : index
    %c0_7 = arith.constant 0 : index
    %9 = vector.load %arg2[%c768, %c0_7] : memref<1944x256xf32, #tpu.memory_space<vmem>>, vector<1x256xf32>
    %c0_8 = arith.constant 0 : index
    %c0_9 = arith.constant 0 : index
    %10 = vector.load %arg3[%c0_8, %c0_9] : memref<32x8xf32, #tpu.memory_space<vmem>>, vector<8x8xf32>
    %cst_10 = arith.constant dense<0.000000e+00> : vector<8x384xf32>
    %11 = tpu.matmul %10, %7, %cst_10 {dimension_numbers = #tpu.dot_dimension_numbers<[1], [0], [0], [1], [0, 0, 1, 1], [], []>} : vector<8x8xf32>, vector<8x384xf32>, vector<8x384xf32> -> vector<8x384xf32>
    %c8 = arith.constant 8 : index
    %c0_11 = arith.constant 0 : index
    %12 = vector.load %arg3[%c8, %c0_11] : memref<32x8xf32, #tpu.memory_space<vmem>>, vector<8x8xf32>
    %cst_12 = arith.constant dense<0.000000e+00> : vector<8x384xf32>
    %13 = tpu.matmul %12, %7, %cst_12 {dimension_numbers = #tpu.dot_dimension_numbers<[1], [0], [0], [1], [0, 0, 1, 1], [], []>} : vector<8x8xf32>, vector<8x384xf32>, vector<8x384xf32> -> vector<8x384xf32>
    %14 = tpu.concatenate %11, %13 in 1 : vector<8x384xf32>, vector<8x384xf32> -> vector<8x768xf32>
    %cst_13 = arith.constant dense<0.000000e+00> : vector<8x256xf32>
    %15 = tpu.matmul %14, %8, %cst_13 {dimension_numbers = #tpu.dot_dimension_numbers<[1], [0], [0], [1], [0, 0, 1, 1], [], []>} : vector<8x768xf32>, vector<768x256xf32>, vector<8x256xf32> -> vector<8x256xf32>
    %16 = vector.broadcast %9 : vector<1x256xf32> to vector<8x256xf32>
    %17 = arith.addf %15, %16 : vector<8x256xf32>
    %cst_14 = arith.constant 0.000000e+00 : f32
    %18 = vector.broadcast %cst_14 : f32 to vector<8x256xf32>
    %19 = arith.maximumf %17, %18 : vector<8x256xf32>
    %c392 = arith.constant 392 : index
    %c0_15 = arith.constant 0 : index
    %20 = vector.load %arg1[%c392, %c0_15] : memref<920x384xf32, #tpu.memory_space<vmem>>, vector<256x384xf32>
    %c648 = arith.constant 648 : index
    %c0_16 = arith.constant 0 : index
    %21 = vector.load %arg1[%c648, %c0_16] : memref<920x384xf32, #tpu.memory_space<vmem>>, vector<1x384xf32>
    %cst_17 = arith.constant dense<0.000000e+00> : vector<8x384xf32>
    %22 = tpu.matmul %19, %20, %cst_17 {dimension_numbers = #tpu.dot_dimension_numbers<[1], [0], [0], [1], [0, 0, 1, 1], [], []>} : vector<8x256xf32>, vector<256x384xf32>, vector<8x384xf32> -> vector<8x384xf32>
    %23 = vector.broadcast %21 : vector<1x384xf32> to vector<8x384xf32>
    %24 = arith.addf %22, %23 : vector<8x384xf32>
    %cst_18 = arith.constant 0.000000e+00 : f32
    %25 = vector.broadcast %cst_18 : f32 to vector<8x384xf32>
    %26 = arith.maximumf %24, %25 : vector<8x384xf32>
    %c776 = arith.constant 776 : index
    %c0_19 = arith.constant 0 : index
    %27 = vector.load %arg2[%c776, %c0_19] : memref<1944x256xf32, #tpu.memory_space<vmem>>, vector<768x256xf32>
    %c1544 = arith.constant 1544 : index
    %c0_20 = arith.constant 0 : index
    %28 = vector.load %arg2[%c1544, %c0_20] : memref<1944x256xf32, #tpu.memory_space<vmem>>, vector<1x256xf32>
    %c16 = arith.constant 16 : index
    %c0_21 = arith.constant 0 : index
    %29 = vector.load %arg3[%c16, %c0_21] : memref<32x8xf32, #tpu.memory_space<vmem>>, vector<8x8xf32>
    %cst_22 = arith.constant dense<0.000000e+00> : vector<8x384xf32>
    %30 = tpu.matmul %29, %26, %cst_22 {dimension_numbers = #tpu.dot_dimension_numbers<[1], [0], [0], [1], [0, 0, 1, 1], [], []>} : vector<8x8xf32>, vector<8x384xf32>, vector<8x384xf32> -> vector<8x384xf32>
    %c24 = arith.constant 24 : index
    %c0_23 = arith.constant 0 : index
    %31 = vector.load %arg3[%c24, %c0_23] : memref<32x8xf32, #tpu.memory_space<vmem>>, vector<8x8xf32>
    %cst_24 = arith.constant dense<0.000000e+00> : vector<8x384xf32>
    %32 = tpu.matmul %31, %26, %cst_24 {dimension_numbers = #tpu.dot_dimension_numbers<[1], [0], [0], [1], [0, 0, 1, 1], [], []>} : vector<8x8xf32>, vector<8x384xf32>, vector<8x384xf32> -> vector<8x384xf32>
    %33 = tpu.concatenate %30, %32 in 1 : vector<8x384xf32>, vector<8x384xf32> -> vector<8x768xf32>
    %cst_25 = arith.constant dense<0.000000e+00> : vector<8x256xf32>
    %34 = tpu.matmul %33, %27, %cst_25 {dimension_numbers = #tpu.dot_dimension_numbers<[1], [0], [0], [1], [0, 0, 1, 1], [], []>} : vector<8x768xf32>, vector<768x256xf32>, vector<8x256xf32> -> vector<8x256xf32>
    %35 = vector.broadcast %28 : vector<1x256xf32> to vector<8x256xf32>
    %36 = arith.addf %34, %35 : vector<8x256xf32>
    %cst_26 = arith.constant 0.000000e+00 : f32
    %37 = vector.broadcast %cst_26 : f32 to vector<8x256xf32>
    %38 = arith.maximumf %36, %37 : vector<8x256xf32>
    %c656 = arith.constant 656 : index
    %c0_27 = arith.constant 0 : index
    %39 = vector.load %arg1[%c656, %c0_27] : memref<920x384xf32, #tpu.memory_space<vmem>>, vector<256x384xf32>
    %c912 = arith.constant 912 : index
    %c0_28 = arith.constant 0 : index
    %40 = vector.load %arg1[%c912, %c0_28] : memref<920x384xf32, #tpu.memory_space<vmem>>, vector<1x384xf32>
    %cst_29 = arith.constant dense<0.000000e+00> : vector<8x384xf32>
    %41 = tpu.matmul %38, %39, %cst_29 {dimension_numbers = #tpu.dot_dimension_numbers<[1], [0], [0], [1], [0, 0, 1, 1], [], []>} : vector<8x256xf32>, vector<256x384xf32>, vector<8x384xf32> -> vector<8x384xf32>
    %42 = vector.broadcast %40 : vector<1x384xf32> to vector<8x384xf32>
    %43 = arith.addf %41, %42 : vector<8x384xf32>
    %cst_30 = arith.constant 0.000000e+00 : f32
    %44 = vector.broadcast %cst_30 : f32 to vector<8x384xf32>
    %45 = arith.maximumf %43, %44 : vector<8x384xf32>
    %c1552 = arith.constant 1552 : index
    %c0_31 = arith.constant 0 : index
    %46 = vector.load %arg2[%c1552, %c0_31] : memref<1944x256xf32, #tpu.memory_space<vmem>>, vector<384x256xf32>
    %c1936 = arith.constant 1936 : index
    %c0_32 = arith.constant 0 : index
    %47 = vector.load %arg2[%c1936, %c0_32] : memref<1944x256xf32, #tpu.memory_space<vmem>>, vector<1x256xf32>
    %cst_33 = arith.constant dense<0.000000e+00> : vector<8x256xf32>
    %48 = tpu.matmul %45, %46, %cst_33 {dimension_numbers = #tpu.dot_dimension_numbers<[1], [0], [0], [1], [0, 0, 1, 1], [], []>} : vector<8x384xf32>, vector<384x256xf32>, vector<8x256xf32> -> vector<8x256xf32>
    %49 = vector.broadcast %47 : vector<1x256xf32> to vector<8x256xf32>
    %50 = arith.addf %48, %49 : vector<8x256xf32>
    %cst_34 = arith.constant 0.000000e+00 : f32
    %51 = vector.broadcast %cst_34 : f32 to vector<8x256xf32>
    %52 = arith.maximumf %50, %51 : vector<8x256xf32>
    %c0_35 = arith.constant 0 : index
    %c0_36 = arith.constant 0 : index
    %53 = vector.load %arg4[%c0_35, %c0_36] : memref<8x256xf32, #tpu.memory_space<vmem>>, vector<8x256xf32>
    tpu.vector_store %arg4[%c0_35, %c0_36], %52 {strides = array<i32>} : memref<8x256xf32, #tpu.memory_space<vmem>>, vector<8x256xf32>,
    return
  }
}

</mosaic_0001>

<llo_original>
// kernel: emo_encode_fused.1
$region0: #{emo_encode_fused.1}
  #allocation0 [shape = 'u32[]', space=smem, size = 0x4, offset = 0x4, fixed_abs, tag = 'smem constant byte address 0x4 - core index']
  #allocation1 [shape = 'u32[144,128]{1,0:T(1,128)}', space=vmem, size = 0x12000, scoped, tag = 'internal scratch']
  %s0 = inlined_call_operand.vmem [shape: f32[8,384], index: 0, kind: input, shape index: {}]
  %s1 = inlined_call_operand.hbm [shape: f32[920,384], index: 1, kind: input, shape index: {}]
  %s2 = inlined_call_operand.hbm [shape: f32[1944,256], index: 2, kind: input, shape index: {}]
  %s3 = inlined_call_operand.vmem [shape: f32[32,8], index: 3, kind: input, shape index: {}]
  %s4 = inlined_call_operand.vmem [shape: f32[8,256], index: 4, kind: output, shape index: {}]
  %s5 = sld [smem:[#allocation0]]
  $region34: #{emo_encode_fused.1} parent=0
    _
  %s7 = ssub.s32 1, %s5
  %s8 = scalar_select 0, %s7, %s5
  $region1: #{emo_encode_fused.1} parent=0
    #allocation2 [shape = 'u8[1413120]{0}', space=vmem, size = 0x159000, scoped, tag = 'input window, operand 1, single buffered']
    #allocation3 [shape = 's32[1]{0}', space=sflag, size = 0x4, scoped, tag = 'scoped memory for emo_encode_fused.1']
    #allocation4 [shape = 'u8[1990656]{0}', space=vmem, size = 0x1e6000, scoped, tag = 'input window, operand 2, single buffered']
    #allocation5 [shape = 's32[1]{0}', space=sflag, size = 0x4, scoped, tag = 'scoped memory for emo_encode_fused.1']
    %9 = vsyncpa [#allocation3], 0
    %10 = vsyncpa [#allocation5], 0
    // Predicated region
    $region2: #{emo_encode_fused.1} parent=1 // pred_check
      _
    $region3: #{emo_encode_fused.1} parent=1 // pred_check_branch
      %12 = sbr.rel (0) target = $region5
    $region4: #{emo_encode_fused.1} parent=1 // pred_region
      _
    $region5: #{emo_encode_fused.1} parent=1 // pred_fallthru
      _
    // Predicated region
    $region6: #{emo_encode_fused.1} parent=1 // pred_check
      _
    $region7: #{emo_encode_fused.1} parent=1 // pred_check_branch
      %14 = sbr.rel (0) target = $region9
    $region8: #{emo_encode_fused.1} parent=1 // pred_region
      %s16 = ssub.s32 44160, 44160
      %17 = vsyncadd [#allocation3], %s16
      %s18 = sshll.u32 [#allocation2], 4
      %s19 = int_to_ptr.vmem [resolvable:$true] %s18
      %24 = dma.hbm_to_vmem [thread:$0]  %s1, 44160, %s19, [#allocation3], 384, 384, 24
    $region9: #{emo_encode_fused.1} parent=1 // pred_fallthru
      _
    // Predicated region
    $region10: #{emo_encode_fused.1} parent=1 // pred_check
      _
    $region11: #{emo_encode_fused.1} parent=1 // pred_check_branch
      %26 = sbr.rel (0) target = $region13
    $region12: #{emo_encode_fused.1} parent=1 // pred_region
      %s28 = ssub.s32 62208, 62208
      %29 = vsyncadd [#allocation5], %s28
      %s30 = sshll.u32 [#allocation4], 4
      %s31 = int_to_ptr.vmem [resolvable:$true] %s30
      %36 = dma.hbm_to_vmem [thread:$0]  %s2, 62208, %s31, [#allocation5], 256, 256, 16
    $region13: #{emo_encode_fused.1} parent=1 // pred_fallthru
      _
    // Predicated region
    $region14: #{emo_encode_fused.1} parent=1 // pred_check
      _
    $region15: #{emo_encode_fused.1} parent=1 // pred_check_branch
      %38 = sbr.rel (0) target = $region17
    $region16: #{emo_encode_fused.1} parent=1 // pred_region
      _
    $region17: #{emo_encode_fused.1} parent=1 // pred_fallthru
      _
    // Predicated region
    $region18: #{emo_encode_fused.1} parent=1 // pred_check
      _
    $region19: #{emo_encode_fused.1} parent=1 // pred_check_branch
      %40 = sbr.rel (0) target = $region21
    $region20: #{emo_encode_fused.1} parent=1 // pred_region
      %41 = dma.done [#allocation3], 44160
    $region21: #{emo_encode_fused.1} parent=1 // pred_fallthru
      _
    // Predicated region
    $region22: #{emo_encode_fused.1} parent=1 // pred_check
      _
    $region23: #{emo_encode_fused.1} parent=1 // pred_check_branch
      %43 = sbr.rel (0) target = $region25
    $region24: #{emo_encode_fused.1} parent=1 // pred_region
      %44 = dma.done [#allocation5], 62208
    $region25: #{emo_encode_fused.1} parent=1 // pred_fallthru
      _
    %v45 = vld [vmem:[%s0] sm:$0xff]
    %v46 = vld [vmem:[%s0 + $0x8] sm:$0xff]
    %v47 = vld [vmem:[%s0 + $0x10] sm:$0xff]
    %v48 = vld [vmem:[#allocation2] sm:$0xff]
    %v49 = vld [vmem:[#allocation2 + $0x8] sm:$0xff]
    %v50 = vld [vmem:[#allocation2 + $0x10] sm:$0xff]
    %v51 = vld [vmem:[#allocation2 + $0x18] sm:$0xff]
    %v52 = vld [vmem:[#allocation2 + $0x20] sm:$0xff]
    %v53 = vld [vmem:[#allocation2 + $0x28] sm:$0xff]
    %v54 = vld [vmem:[#allocation2 + $0x30] sm:$0xff]
    %v55 = vld [vmem:[#allocation2 + $0x38] sm:$0xff]
    %v56 = vld [vmem:[#allocation2 + $0x40] sm:$0xff]
    %v57 = vld [vmem:[#allocation2 + $0x48] sm:$0xff]
    %v58 = vld [vmem:[#allocation2 + $0x50] sm:$0xff]
    %v59 = vld [vmem:[#allocation2 + $0x58] sm:$0xff]
    %v60 = vld [vmem:[#allocation2 + $0x60] sm:$0xff]
    %v61 = vld [vmem:[#allocation2 + $0x68] sm:$0xff]
    %v62 = vld [vmem:[#allocation2 + $0x70] sm:$0xff]
    %v63 = vld [vmem:[#allocation2 + $0x78] sm:$0xff]
    %v64 = vld [vmem:[#allocation2 + $0x80] sm:$0xff]
    %v65 = vld [vmem:[#allocation2 + $0x88] sm:$0xff]
    %v66 = vld [vmem:[#allocation2 + $0x90] sm:$0xff]
    %v67 = vld [vmem:[#allocation2 + $0x98] sm:$0xff]
    %v68 = vld [vmem:[#allocation2 + $0xa0] sm:$0xff]
    %v69 = vld [vmem:[#allocation2 + $0xa8] sm:$0xff]
    %v70 = vld [vmem:[#allocation2 + $0xb0] sm:$0xff]
    %v71 = vld [vmem:[#allocation2 + $0xb8] sm:$0xff]
    %v72 = vld [vmem:[#allocation2 + $0xc0] sm:$0xff]
    %v73 = vld [vmem:[#allocation2 + $0xc8] sm:$0xff]
    %v74 = vld [vmem:[#allocation2 + $0xd0] sm:$0xff]
    %v75 = vld [vmem:[#allocation2 + $0xd8] sm:$0xff]
    %v76 = vld [vmem:[#allocation2 + $0xe0] sm:$0xff]
    %v77 = vld [vmem:[#allocation2 + $0xe8] sm:$0xff]
    %v78 = vld [vmem:[#allocation2 + $0xf0] sm:$0xff]
    %v79 = vld [vmem:[#allocation2 + $0xf8] sm:$0xff]
    %v80 = vld [vmem:[#allocation2 + $0x100] sm:$0xff]
    %v81 = vld [vmem:[#allocation2 + $0x108] sm:$0xff]
    %v82 = vld [vmem:[#allocation2 + $0x110] sm:$0xff]
    %v83 = vld [vmem:[#allocation2 + $0x118] sm:$0xff]
    %v84 = vld [vmem:[#allocation2 + $0x120] sm:$0xff]
    %v85 = vld [vmem:[#allocation2 + $0x128] sm:$0xff]
    %v86 = vld [vmem:[#allocation2 + $0x130] sm:$0xff]
    %v87 = vld [vmem:[#allocation2 + $0x138] sm:$0xff]
    %v88 = vld [vmem:[#allocation2 + $0x140] sm:$0xff]
    %v89 = vld [vmem:[#allocation2 + $0x148] sm:$0xff]
    %v90 = vld [vmem:[#allocation2 + $0x150] sm:$0xff]
    %v91 = vld [vmem:[#allocation2 + $0x158] sm:$0xff]
    %v92 = vld [vmem:[#allocation2 + $0x160] sm:$0xff]
    %v93 = vld [vmem:[#allocation2 + $0x168] sm:$0xff]
    %v94 = vld [vmem:[#allocation2 + $0x170] sm:$0xff]
    %v95 = vld [vmem:[#allocation2 + $0x178] sm:$0xff]
    %v96 = vld [vmem:[#allocation2 + $0x180] sm:$0xff]
    %v97 = vld [vmem:[#allocation2 + $0x188] sm:$0xff]
    %v98 = vld [vmem:[#allocation2 + $0x190] sm:$0xff]
    %v99 = vld [vmem:[#allocation2 + $0x198] sm:$0xff]
    %v100 = vld [vmem:[#allocation2 + $0x1a0] sm:$0xff]
    %v101 = vld [vmem:[#allocation2 + $0x1a8] sm:$0xff]
    %v102 = vld [vmem:[#allocation2 + $0x1b0] sm:$0xff]
    %v103 = vld [vmem:[#allocation2 + $0x1b8] sm:$0xff]
    %v104 = vld [vmem:[#allocation2 + $0x1c0] sm:$0xff]
    %v105 = vld [vmem:[#allocation2 + $0x1c8] sm:$0xff]
    %v106 = vld [vmem:[#allocation2 + $0x1d0] sm:$0xff]
    %v107 = vld [vmem:[#allocation2 + $0x1d8] sm:$0xff]
    %v108 = vld [vmem:[#allocation2 + $0x1e0] sm:$0xff]
    %v109 = vld [vmem:[#allocation2 + $0x1e8] sm:$0xff]
    %v110 = vld [vmem:[#allocation2 + $0x1f0] sm:$0xff]
    %v111 = vld [vmem:[#allocation2 + $0x1f8] sm:$0xff]
    %v112 = vld [vmem:[#allocation2 + $0x200] sm:$0xff]
    %v113 = vld [vmem:[#allocation2 + $0x208] sm:$0xff]
    %v114 = vld [vmem:[#allocation2 + $0x210] sm:$0xff]
    %v115 = vld [vmem:[#allocation2 + $0x218] sm:$0xff]
    %v116 = vld [vmem:[#allocation2 + $0x220] sm:$0xff]
    %v117 = vld [vmem:[#allocation2 + $0x228] sm:$0xff]
    %v118 = vld [vmem:[#allocation2 + $0x230] sm:$0xff]
    %v119 = vld [vmem:[#allocation2 + $0x238] sm:$0xff]
    %v120 = vld [vmem:[#allocation2 + $0x240] sm:$0xff]
    %v121 = vld [vmem:[#allocation2 + $0x248] sm:$0xff]
    %v122 = vld [vmem:[#allocation2 + $0x250] sm:$0xff]
    %v123 = vld [vmem:[#allocation2 + $0x258] sm:$0xff]
    %v124 = vld [vmem:[#allocation2 + $0x260] sm:$0xff]
    %v125 = vld [vmem:[#allocation2 + $0x268] sm:$0xff]
    %v126 = vld [vmem:[#allocation2 + $0x270] sm:$0xff]
    %v127 = vld [vmem:[#allocation2 + $0x278] sm:$0xff]
    %v128 = vld [vmem:[#allocation2 + $0x280] sm:$0xff]
    %v129 = vld [vmem:[#allocation2 + $0x288] sm:$0xff]
    %v130 = vld [vmem:[#allocation2 + $0x290] sm:$0xff]
    %v131 = vld [vmem:[#allocation2 + $0x298] sm:$0xff]
    %v132 = vld [vmem:[#allocation2 + $0x2a0] sm:$0xff]
    %v133 = vld [vmem:[#allocation2 + $0x2a8] sm:$0xff]
    %v134 = vld [vmem:[#allocation2 + $0x2b0] sm:$0xff]
    %v135 = vld [vmem:[#allocation2 + $0x2b8] sm:$0xff]
    %v136 = vld [vmem:[#allocation2 + $0x2c0] sm:$0xff]
    %v137 = vld [vmem:[#allocation2 + $0x2c8] sm:$0xff]
    %v138 = vld [vmem:[#allocation2 + $0x2d0] sm:$0xff]
    %v139 = vld [vmem:[#allocation2 + $0x2d8] sm:$0xff]
    %v140 = vld [vmem:[#allocation2 + $0x2e0] sm:$0xff]
    %v141 = vld [vmem:[#allocation2 + $0x2e8] sm:$0xff]
    %v142 = vld [vmem:[#allocation2 + $0x2f0] sm:$0xff]
    %v143 = vld [vmem:[#allocation2 + $0x2f8] sm:$0xff]
    %v144 = vld [vmem:[#allocation2 + $0x300] sm:$0xff]
    %v145 = vld [vmem:[#allocation2 + $0x308] sm:$0xff]
    %v146 = vld [vmem:[#allocation2 + $0x310] sm:$0xff]
    %v147 = vld [vmem:[#allocation2 + $0x318] sm:$0xff]
    %v148 = vld [vmem:[#allocation2 + $0x320] sm:$0xff]
    %v149 = vld [vmem:[#allocation2 + $0x328] sm:$0xff]
    %v150 = vld [vmem:[#allocation2 + $0x330] sm:$0xff]
    %v151 = vld [vmem:[#allocation2 + $0x338] sm:$0xff]
    %v152 = vld [vmem:[#allocation2 + $0x340] sm:$0xff]
    %v153 = vld [vmem:[#allocation2 + $0x348] sm:$0xff]
    %v154 = vld [vmem:[#allocation2 + $0x350] sm:$0xff]
    %v155 = vld [vmem:[#allocation2 + $0x358] sm:$0xff]
    %v156 = vld [vmem:[#allocation2 + $0x360] sm:$0xff]
    %v157 = vld [vmem:[#allocation2 + $0x368] sm:$0xff]
    %v158 = vld [vmem:[#allocation2 + $0x370] sm:$0xff]
    %v159 = vld [vmem:[#allocation2 + $0x378] sm:$0xff]
    %v160 = vld [vmem:[#allocation2 + $0x380] sm:$0xff]
    %v161 = vld [vmem:[#allocation2 + $0x388] sm:$0xff]
    %v162 = vld [vmem:[#allocation2 + $0x390] sm:$0xff]
    %v163 = vld [vmem:[#allocation2 + $0x398] sm:$0xff]
    %v164 = vld [vmem:[#allocation2 + $0x3a0] sm:$0xff]
    %v165 = vld [vmem:[#allocation2 + $0x3a8] sm:$0xff]
    %v166 = vld [vmem:[#allocation2 + $0x3b0] sm:$0xff]
    %v167 = vld [vmem:[#allocation2 + $0x3b8] sm:$0xff]
    %v168 = vld [vmem:[#allocation2 + $0x3c0] sm:$0xff]
    %v169 = vld [vmem:[#allocation2 + $0x3c8] sm:$0xff]
    %v170 = vld [vmem:[#allocation2 + $0x3d0] sm:$0xff]
    %v171 = vld [vmem:[#allocation2 + $0x3d8] sm:$0xff]
    %v172 = vld [vmem:[#allocation2 + $0x3e0] sm:$0xff]
    %v173 = vld [vmem:[#allocation2 + $0x3e8] sm:$0xff]
    %v174 = vld [vmem:[#allocation2 + $0x3f0] sm:$0xff]
    %v175 = vld [vmem:[#allocation2 + $0x3f8] sm:$0xff]
    %v176 = vld [vmem:[#allocation2 + $0x400] sm:$0xff]
    %v177 = vld [vmem:[#allocation2 + $0x408] sm:$0xff]
    %v178 = vld [vmem:[#allocation2 + $0x410] sm:$0xff]
    %v179 = vld [vmem:[#allocation2 + $0x418] sm:$0xff]
    %v180 = vld [vmem:[#allocation2 + $0x420] sm:$0xff]
    %v181 = vld [vmem:[#allocation2 + $0x428] sm:$0xff]
    %v182 = vld [vmem:[#allocation2 + $0x430] sm:$0xff]
    %v183 = vld [vmem:[#allocation2 + $0x438] sm:$0xff]
    %v184 = vld [vmem:[#allocation2 + $0x440] sm:$0xff]
    %v185 = vld [vmem:[#allocation2 + $0x448] sm:$0xff]
    %v186 = vld [vmem:[#allocation2 + $0x450] sm:$0xff]
    %v187 = vld [vmem:[#allocation2 + $0x458] sm:$0xff]
    %v188 = vld [vmem:[#allocation2 + $0x460] sm:$0xff]
    %v189 = vld [vmem:[#allocation2 + $0x468] sm:$0xff]
    %v190 = vld [vmem:[#allocation2 + $0x470] sm:$0xff]
    %v191 = vld [vmem:[#allocation2 + $0x478] sm:$0xff]
    %s192 = scalar_lea.vmem [#allocation2], 1152
    %v193 = vld [vmem:[%s192] ss:$8 sm:$0x7]
    %v195 = vlaneseq
    %v196 = vshrl.u32 %v195, 7
    %v197 = vsub.s32 0, %v196
    %v198 = vrot.slane %v193, %v197
    %v199 = vlaneseq
    %v200 = vshrl.u32 %v199, 7
    %v201 = vsub.s32 1, %v200
    %v202 = vrot.slane %v193, %v201
    %v203 = vlaneseq
    %v204 = vshrl.u32 %v203, 7
    %v205 = vsub.s32 2, %v204
    %v206 = vrot.slane %v193, %v205
    %210 = vmatprep.subr.mxu0 %v49
    %211 = vmatpush1.msra.mxu0 %v48
    %212 = vmatprep.subr.mxu0 %v52
    %213 = vmatpush1.msra.mxu0 %v51
    %214 = vmatprep.subr.mxu0 %v55
    %215 = vmatpush1.msra.mxu0 %v54
    %216 = vmatprep.subr.mxu0 %v58
    %217 = vmatpush1.msra.mxu0 %v57
    %218 = vmatprep.subr.mxu0 %v61
    %219 = vmatpush1.msra.mxu0 %v60
    %220 = vmatprep.subr.mxu0 %v64
    %221 = vmatpush1.msra.mxu0 %v63
    %222 = vmatprep.subr.mxu0 %v67
    %223 = vmatpush1.msra.mxu0 %v66
    %224 = vmatprep.subr.mxu0 %v70
    %225 = vmatpush1.msra.mxu0 %v69
    %226 = vmatprep.subr.mxu0 %v73
    %227 = vmatpush1.msra.mxu0 %v72
    %228 = vmatprep.subr.mxu0 %v76
    %229 = vmatpush1.msra.mxu0 %v75
    %230 = vmatprep.subr.mxu0 %v79
    %231 = vmatpush1.msra.mxu0 %v78
    %232 = vmatprep.subr.mxu0 %v82
    %233 = vmatpush1.msra.mxu0 %v81
    %234 = vmatprep.subr.mxu0 %v85
    %235 = vmatpush1.msra.mxu0 %v84
    %236 = vmatprep.subr.mxu0 %v88
    %237 = vmatpush1.msra.mxu0 %v87
    %238 = vmatprep.subr.mxu0 %v91
    %239 = vmatpush1.msra.mxu0 %v90
    %240 = vmatprep.subr.mxu0 %v94
    %241 = vmatpush1.msra.mxu0 %v93
    %242 = vmatprep.subr.mxu0 %v97
    %243 = vmatpush1.msra.mxu0 %v96
    %244 = vmatprep.subr.mxu0 %v100
    %245 = vmatpush1.msra.mxu0 %v99
    %246 = vmatprep.subr.mxu0 %v103
    %247 = vmatpush1.msra.mxu0 %v102
    %248 = vmatprep.subr.mxu0 %v106
    %249 = vmatpush1.msra.mxu0 %v105
    %250 = vmatprep.subr.mxu0 %v109
    %251 = vmatpush1.msra.mxu0 %v108
    %252 = vmatprep.subr.mxu0 %v112
    %253 = vmatpush1.msra.mxu0 %v111
    %254 = vmatprep.subr.mxu0 %v115
    %255 = vmatpush1.msra.mxu0 %v114
    %256 = vmatprep.subr.mxu0 %v118
    %257 = vmatpush1.msra.mxu0 %v117
    %258 = vmatprep.subr.mxu0 %v121
    %259 = vmatpush1.msra.mxu0 %v120
    %260 = vmatprep.subr.mxu0 %v124
    %261 = vmatpush1.msra.mxu0 %v123
    %262 = vmatprep.subr.mxu0 %v127
    %263 = vmatpush1.msra.mxu0 %v126
    %264 = vmatprep.subr.mxu0 %v130
    %265 = vmatpush1.msra.mxu0 %v129
    %266 = vmatprep.subr.mxu0 %v133
    %267 = vmatpush1.msra.mxu0 %v132
    %268 = vmatprep.subr.mxu0 %v136
    %269 = vmatpush1.msra.mxu0 %v135
    %270 = vmatprep.subr.mxu0 %v139
    %271 = vmatpush1.msra.mxu0 %v138
    %272 = vmatprep.subr.mxu0 %v142
    %273 = vmatpush1.msra.mxu0 %v141
    %274 = vmatprep.mubr.f32.mxu0 %v46
    %275 = vmatmul.mubr.f32.gmra.mrb[0].mxu0 %v45
    %v276 = vpop.f32.mrb[0].mxu0
    %v277 = vadd.f32 %v198, %v276
    %v278 = vpop.f32.mrb[0].mxu0
    %v279 = vadd.f32 %v202, %v278
    %280 = vdwg.mxu0
    %281 = vmatprep.subr.mxu0 %v145
    %282 = vmatpush1.msra.mxu0 %v144
    %283 = vmatprep.subr.mxu0 %v148
    %284 = vmatpush1.msra.mxu0 %v147
    %285 = vmatprep.subr.mxu0 %v151
    %286 = vmatpush1.msra.mxu0 %v150
    %287 = vmatprep.subr.mxu0 %v154
    %288 = vmatpush1.msra.mxu0 %v153
    %289 = vmatprep.subr.mxu0 %v157
    %290 = vmatpush1.msra.mxu0 %v156
    %291 = vmatprep.subr.mxu0 %v160
    %292 = vmatpush1.msra.mxu0 %v159
    %293 = vmatprep.subr.mxu0 %v163
    %294 = vmatpush1.msra.mxu0 %v162
    %295 = vmatprep.subr.mxu0 %v166
    %296 = vmatpush1.msra.mxu0 %v165
    %297 = vmatprep.subr.mxu0 %v169
    %298 = vmatpush1.msra.mxu0 %v168
    %299 = vmatprep.subr.mxu0 %v172
    %300 = vmatpush1.msra.mxu0 %v171
    %301 = vmatprep.subr.mxu0 %v175
    %302 = vmatpush1.msra.mxu0 %v174
    %303 = vmatprep.subr.mxu0 %v178
    %304 = vmatpush1.msra.mxu0 %v177
    %305 = vmatprep.subr.mxu0 %v181
    %306 = vmatpush1.msra.mxu0 %v180
    %307 = vmatprep.subr.mxu0 %v184
    %308 = vmatpush1.msra.mxu0 %v183
    %309 = vmatprep.subr.mxu0 %v187
    %310 = vmatpush1.msra.mxu0 %v186
    %311 = vmatprep.subr.mxu0 %v190
    %312 = vmatpush1.msra.mxu0 %v189
    %313 = vmatprep.subr.mxu0 0.0
    %314 = vmatpush1.msra.mxu0 0.0
    %315 = vmatprep.subr.mxu0 0.0
    %316 = vmatpush1.msra.mxu0 0.0
    %317 = vmatprep.subr.mxu0 0.0
    %318 = vmatpush1.msra.mxu0 0.0
    %319 = vmatprep.subr.mxu0 0.0
    %320 = vmatpush1.msra.mxu0 0.0
    %321 = vmatprep.subr.mxu0 0.0
    %322 = vmatpush1.msra.mxu0 0.0
    %323 = vmatprep.subr.mxu0 0.0
    %324 = vmatpush1.msra.mxu0 0.0
    %325 = vmatprep.subr.mxu0 0.0
    %326 = vmatpush1.msra.mxu0 0.0
    %327 = vmatprep.subr.mxu0 0.0
    %328 = vmatpush1.msra.mxu0 0.0
    %329 = vmatprep.subr.mxu0 0.0
    %330 = vmatpush1.msra.mxu0 0.0
    %331 = vmatprep.subr.mxu0 0.0
    %332 = vmatpush1.msra.mxu0 0.0
    %333 = vmatprep.subr.mxu0 0.0
    %334 = vmatpush1.msra.mxu0 0.0
    %335 = vmatprep.subr.mxu0 0.0
    %336 = vmatpush1.msra.mxu0 0.0
    %337 = vmatprep.subr.mxu0 0.0
    %338 = vmatpush1.msra.mxu0 0.0
    %339 = vmatprep.subr.mxu0 0.0
    %340 = vmatpush1.msra.mxu0 0.0
    %341 = vmatprep.subr.mxu0 0.0
    %342 = vmatpush1.msra.mxu0 0.0
    %343 = vmatprep.subr.mxu0 0.0
    %344 = vmatpush1.msra.mxu0 0.0
    %345 = vmatprep.mubr.f32.mxu0 0.0
    %346 = vmatmul.mubr.f32.gmra.mrb[0].mxu0 %v47
    %v347 = vpop.f32.mrb[0].mxu0
    %v348 = vadd.f32 %v277, %v347
    %v349 = vpop.f32.mrb[0].mxu0
    %v350 = vadd.f32 %v279, %v349
    %351 = vdwg.mxu0
    %352 = vmatprep.subr.mxu0 0.0
    %353 = vmatpush1.msra.mxu0 %v50
    %354 = vmatprep.subr.mxu0 0.0
    %355 = vmatpush1.msra.mxu0 %v53
    %356 = vmatprep.subr.mxu0 0.0
    %357 = vmatpush1.msra.mxu0 %v56
    %358 = vmatprep.subr.mxu0 0.0
    %359 = vmatpush1.msra.mxu0 %v59
    %360 = vmatprep.subr.mxu0 0.0
    %361 = vmatpush1.msra.mxu0 %v62
    %362 = vmatprep.subr.mxu0 0.0
    %363 = vmatpush1.msra.mxu0 %v65
    %364 = vmatprep.subr.mxu0 0.0
    %365 = vmatpush1.msra.mxu0 %v68
    %366 = vmatprep.subr.mxu0 0.0
    %367 = vmatpush1.msra.mxu0 %v71
    %368 = vmatprep.subr.mxu0 0.0
    %369 = vmatpush1.msra.mxu0 %v74
    %370 = vmatprep.subr.mxu0 0.0
    %371 = vmatpush1.msra.mxu0 %v77
    %372 = vmatprep.subr.mxu0 0.0
    %373 = vmatpush1.msra.mxu0 %v80
    %374 = vmatprep.subr.mxu0 0.0
    %375 = vmatpush1.msra.mxu0 %v83
    %376 = vmatprep.subr.mxu0 0.0
    %377 = vmatpush1.msra.mxu0 %v86
    %378 = vmatprep.subr.mxu0 0.0
    %379 = vmatpush1.msra.mxu0 %v89
    %380 = vmatprep.subr.mxu0 0.0
    %381 = vmatpush1.msra.mxu0 %v92
    %382 = vmatprep.subr.mxu0 0.0
    %383 = vmatpush1.msra.mxu0 %v95
    %384 = vmatprep.subr.mxu0 0.0
    %385 = vmatpush1.msra.mxu0 %v98
    %386 = vmatprep.subr.mxu0 0.0
    %387 = vmatpush1.msra.mxu0 %v101
    %388 = vmatprep.subr.mxu0 0.0
    %389 = vmatpush1.msra.mxu0 %v104
    %390 = vmatprep.subr.mxu0 0.0
    %391 = vmatpush1.msra.mxu0 %v107
    %392 = vmatprep.subr.mxu0 0.0
    %393 = vmatpush1.msra.mxu0 %v110
    %394 = vmatprep.subr.mxu0 0.0
    %395 = vmatpush1.msra.mxu0 %v113
    %396 = vmatprep.subr.mxu0 0.0
    %397 = vmatpush1.msra.mxu0 %v116
    %398 = vmatprep.subr.mxu0 0.0
    %399 = vmatpush1.msra.mxu0 %v119
    %400 = vmatprep.subr.mxu0 0.0
    %401 = vmatpush1.msra.mxu0 %v122
    %402 = vmatprep.subr.mxu0 0.0
    %403 = vmatpush1.msra.mxu0 %v125
    %404 = vmatprep.subr.mxu0 0.0
    %405 = vmatpush1.msra.mxu0 %v128
    %406 = vmatprep.subr.mxu0 0.0
    %407 = vmatpush1.msra.mxu0 %v131
    %408 = vmatprep.subr.mxu0 0.0
    %409 = vmatpush1.msra.mxu0 %v134
    %410 = vmatprep.subr.mxu0 0.0
    %411 = vmatpush1.msra.mxu0 %v137
    %412 = vmatprep.subr.mxu0 0.0
    %413 = vmatpush1.msra.mxu0 %v140
    %414 = vmatprep.subr.mxu0 0.0
    %415 = vmatpush1.msra.mxu0 %v143
    %416 = vmatprep.mubr.f32.mxu0 %v46
    %417 = vmatmul.mubr.f32.gmra.mrb[0].mxu0 %v45
    %v418 = vpop.f32.mrb[0].mxu0
    %v419 = vadd.f32 %v206, %v418
    %v420 = vpop.f32.mrb[0].mxu0
    %421 = vdwg.mxu0
    %422 = vmatprep.subr.mxu0 0.0
    %423 = vmatpush1.msra.mxu0 %v146
    %424 = vmatprep.subr.mxu0 0.0
    %425 = vmatpush1.msra.mxu0 %v149
    %426 = vmatprep.subr.mxu0 0.0
    %427 = vmatpush1.msra.mxu0 %v152
    %428 = vmatprep.subr.mxu0 0.0
    %429 = vmatpush1.msra.mxu0 %v155
    %430 = vmatprep.subr.mxu0 0.0
    %431 = vmatpush1.msra.mxu0 %v158
    %432 = vmatprep.subr.mxu0 0.0
    %433 = vmatpush1.msra.mxu0 %v161
    %434 = vmatprep.subr.mxu0 0.0
    %435 = vmatpush1.msra.mxu0 %v164
    %436 = vmatprep.subr.mxu0 0.0
    %437 = vmatpush1.msra.mxu0 %v167
    %438 = vmatprep.subr.mxu0 0.0
    %439 = vmatpush1.msra.mxu0 %v170
    %440 = vmatprep.subr.mxu0 0.0
    %441 = vmatpush1.msra.mxu0 %v173
    %442 = vmatprep.subr.mxu0 0.0
    %443 = vmatpush1.msra.mxu0 %v176
    %444 = vmatprep.subr.mxu0 0.0
    %445 = vmatpush1.msra.mxu0 %v179
    %446 = vmatprep.subr.mxu0 0.0
    %447 = vmatpush1.msra.mxu0 %v182
    %448 = vmatprep.subr.mxu0 0.0
    %449 = vmatpush1.msra.mxu0 %v185
    %450 = vmatprep.subr.mxu0 0.0
    %451 = vmatpush1.msra.mxu0 %v188
    %452 = vmatprep.subr.mxu0 0.0
    %453 = vmatpush1.msra.mxu0 %v191
    %454 = vmatprep.subr.mxu0 0.0
    %455 = vmatpush1.msra.mxu0 0.0
    %456 = vmatprep.subr.mxu0 0.0
    %457 = vmatpush1.msra.mxu0 0.0
    %458 = vmatprep.subr.mxu0 0.0
    %459 = vmatpush1.msra.mxu0 0.0
    %460 = vmatprep.subr.mxu0 0.0
    %461 = vmatpush1.msra.mxu0 0.0
    %462 = vmatprep.subr.mxu0 0.0
    %463 = vmatpush1.msra.mxu0 0.0
    %464 = vmatprep.subr.mxu0 0.0
    %465 = vmatpush1.msra.mxu0 0.0
    %466 = vmatprep.subr.mxu0 0.0
    %467 = vmatpush1.msra.mxu0 0.0
    %468 = vmatprep.subr.mxu0 0.0
    %469 = vmatpush1.msra.mxu0 0.0
    %470 = vmatprep.subr.mxu0 0.0
    %471 = vmatpush1.msra.mxu0 0.0
    %472 = vmatprep.subr.mxu0 0.0
    %473 = vmatpush1.msra.mxu0 0.0
    %474 = vmatprep.subr.mxu0 0.0
    %475 = vmatpush1.msra.mxu0 0.0
    %476 = vmatprep.subr.mxu0 0.0
    %477 = vmatpush1.msra.mxu0 0.0
    %478 = vmatprep.subr.mxu0 0.0
    %479 = vmatpush1.msra.mxu0 0.0
    %480 = vmatprep.subr.mxu0 0.0
    %481 = vmatpush1.msra.mxu0 0.0
    %482 = vmatprep.subr.mxu0 0.0
    %483 = vmatpush1.msra.mxu0 0.0
    %484 = vmatprep.subr.mxu0 0.0
    %485 = vmatpush1.msra.mxu0 0.0
    %486 = vmatprep.mubr.f32.mxu0 0.0
    %487 = vmatmul.mubr.f32.gmra.mrb[0].mxu0 %v47
    %v488 = vpop.f32.mrb[0].mxu0
    %v489 = vadd.f32 %v419, %v488
    %v490 = vpop.f32.mrb[0].mxu0
    %491 = vdwg.mxu0
    %v492 = vmax.f32 %v348, 0.0
    %v493 = vmax.f32 %v350, 0.0
    %v494 = vmax.f32 %v489, 0.0
    %v495 = vld [vmem:[#allocation4] sm:$0xff]
    %v496 = vld [vmem:[#allocation4 + $0x8] sm:$0xff]
    %v497 = vld [vmem:[#allocation4 + $0x10] sm:$0xff]
    %v498 = vld [vmem:[#allocation4 + $0x18] sm:$0xff]
    %v499 = vld [vmem:[#allocation4 + $0x20] sm:$0xff]
    %v500 = vld [vmem:[#allocation4 + $0x28] sm:$0xff]
    %v501 = vld [vmem:[#allocation4 + $0x30] sm:$0xff]
    %v502 = vld [vmem:[#allocation4 + $0x38] sm:$0xff]
    %v503 = vld [vmem:[#allocation4 + $0x40] sm:$0xff]
    %v504 = vld [vmem:[#allocation4 + $0x48] sm:$0xff]
    %v505 = vld [vmem:[#allocation4 + $0x50] sm:$0xff]
    %v506 = vld [vmem:[#allocation4 + $0x58] sm:$0xff]
    %v507 = vld [vmem:[#allocation4 + $0x60] sm:$0xff]
    %v508 = vld [vmem:[#allocation4 + $0x68] sm:$0xff]
    %v509 = vld [vmem:[#allocation4 + $0x70] sm:$0xff]
    %v510 = vld [vmem:[#allocation4 + $0x78] sm:$0xff]
    %v511 = vld [vmem:[#allocation4 + $0x80] sm:$0xff]
    %v512 = vld [vmem:[#allocation4 + $0x88] sm:$0xff]
    %v513 = vld [vmem:[#allocation4 + $0x90] sm:$0xff]
    %v514 = vld [vmem:[#allocation4 + $0x98] sm:$0xff]
    %v515 = vld [vmem:[#allocation4 + $0xa0] sm:$0xff]
    %v516 = vld [vmem:[#allocation4 + $0xa8] sm:$0xff]
    %v517 = vld [vmem:[#allocation4 + $0xb0] sm:$0xff]
    %v518 = vld [vmem:[#allocation4 + $0xb8] sm:$0xff]
    %v519 = vld [vmem:[#allocation4 + $0xc0] sm:$0xff]
    %v520 = vld [vmem:[#allocation4 + $0xc8] sm:$0xff]
    %v521 = vld [vmem:[#allocation4 + $0xd0] sm:$0xff]
    %v522 = vld [vmem:[#allocation4 + $0xd8] sm:$0xff]
    %v523 = vld [vmem:[#allocation4 + $0xe0] sm:$0xff]
    %v524 = vld [vmem:[#allocation4 + $0xe8] sm:$0xff]
    %v525 = vld [vmem:[#allocation4 + $0xf0] sm:$0xff]
    %v526 = vld [vmem:[#allocation4 + $0xf8] sm:$0xff]
    %v527 = vld [vmem:[#allocation4 + $0x100] sm:$0xff]
    %v528 = vld [vmem:[#allocation4 + $0x108] sm:$0xff]
    %v529 = vld [vmem:[#allocation4 + $0x110] sm:$0xff]
    %v530 = vld [vmem:[#allocation4 + $0x118] sm:$0xff]
    %v531 = vld [vmem:[#allocation4 + $0x120] sm:$0xff]
    %v532 = vld [vmem:[#allocation4 + $0x128] sm:$0xff]
    %v533 = vld [vmem:[#allocation4 + $0x130] sm:$0xff]
    %v534 = vld [vmem:[#allocation4 + $0x138] sm:$0xff]
    %v535 = vld [vmem:[#allocation4 + $0x140] sm:$0xff]
    %v536 = vld [vmem:[#allocation4 + $0x148] sm:$0xff]
    %v537 = vld [vmem:[#allocation4 + $0x150] sm:$0xff]
    %v538 = vld [vmem:[#allocation4 + $0x158] sm:$0xff]
    %v539 = vld [vmem:[#allocation4 + $0x160] sm:$0xff]
    %v540 = vld [vmem:[#allocation4 + $0x168] sm:$0xff]
    %v541 = vld [vmem:[#allocation4 + $0x170] sm:$0xff]
    %v542 = vld [vmem:[#allocation4 + $0x178] sm:$0xff]
    %v543 = vld [vmem:[#allocation4 + $0x180] sm:$0xff]
    %v544 = vld [vmem:[#allocation4 + $0x188] sm:$0xff]
    %v545 = vld [vmem:[#allocation4 + $0x190] sm:$0xff]
    %v546 = vld [vmem:[#allocation4 + $0x198] sm:$0xff]
    %v547 = vld [vmem:[#allocation4 + $0x1a0] sm:$0xff]
    %v548 = vld [vmem:[#allocation4 + $0x1a8] sm:$0xff]
    %v549 = vld [vmem:[#allocation4 + $0x1b0] sm:$0xff]
    %v550 = vld [vmem:[#allocation4 + $0x1b8] sm:$0xff]
    %v551 = vld [vmem:[#allocation4 + $0x1c0] sm:$0xff]
    %v552 = vld [vmem:[#allocation4 + $0x1c8] sm:$0xff]
    %v553 = vld [vmem:[#allocation4 + $0x1d0] sm:$0xff]
    %v554 = vld [vmem:[#allocation4 + $0x1d8] sm:$0xff]
    %v555 = vld [vmem:[#allocation4 + $0x1e0] sm:$0xff]
    %v556 = vld [vmem:[#allocation4 + $0x1e8] sm:$0xff]
    %v557 = vld [vmem:[#allocation4 + $0x1f0] sm:$0xff]
    %v558 = vld [vmem:[#allocation4 + $0x1f8] sm:$0xff]
    %v559 = vld [vmem:[#allocation4 + $0x200] sm:$0xff]
    %v560 = vld [vmem:[#allocation4 + $0x208] sm:$0xff]
    %v561 = vld [vmem:[#allocation4 + $0x210] sm:$0xff]
    %v562 = vld [vmem:[#allocation4 + $0x218] sm:$0xff]
    %v563 = vld [vmem:[#allocation4 + $0x220] sm:$0xff]
    %v564 = vld [vmem:[#allocation4 + $0x228] sm:$0xff]
    %v565 = vld [vmem:[#allocation4 + $0x230] sm:$0xff]
    %v566 = vld [vmem:[#allocation4 + $0x238] sm:$0xff]
    %v567 = vld [vmem:[#allocation4 + $0x240] sm:$0xff]
    %v568 = vld [vmem:[#allocation4 + $0x248] sm:$0xff]
    %v569 = vld [vmem:[#allocation4 + $0x250] sm:$0xff]
    %v570 = vld [vmem:[#allocation4 + $0x258] sm:$0xff]
    %v571 = vld [vmem:[#allocation4 + $0x260] sm:$0xff]
    %v572 = vld [vmem:[#allocation4 + $0x268] sm:$0xff]
    %v573 = vld [vmem:[#allocation4 + $0x270] sm:$0xff]
    %v574 = vld [vmem:[#allocation4 + $0x278] sm:$0xff]
    %v575 = vld [vmem:[#allocation4 + $0x280] sm:$0xff]
    %v576 = vld [vmem:[#allocation4 + $0x288] sm:$0xff]
    %v577 = vld [vmem:[#allocation4 + $0x290] sm:$0xff]
    %v578 = vld [vmem:[#allocation4 + $0x298] sm:$0xff]
    %v579 = vld [vmem:[#allocation4 + $0x2a0] sm:$0xff]
    %v580 = vld [vmem:[#allocation4 + $0x2a8] sm:$0xff]
    %v581 = vld [vmem:[#allocation4 + $0x2b0] sm:$0xff]
    %v582 = vld [vmem:[#allocation4 + $0x2b8] sm:$0xff]
    %v583 = vld [vmem:[#allocation4 + $0x2c0] sm:$0xff]
    %v584 = vld [vmem:[#allocation4 + $0x2c8] sm:$0xff]
    %v585 = vld [vmem:[#allocation4 + $0x2d0] sm:$0xff]
    %v586 = vld [vmem:[#allocation4 + $0x2d8] sm:$0xff]
    %v587 = vld [vmem:[#allocation4 + $0x2e0] sm:$0xff]
    %v588 = vld [vmem:[#allocation4 + $0x2e8] sm:$0xff]
    %v589 = vld [vmem:[#allocation4 + $0x2f0] sm:$0xff]
    %v590 = vld [vmem:[#allocation4 + $0x2f8] sm:$0xff]
    %v591 = vld [vmem:[#allocation4 + $0x300] sm:$0xff]
    %v592 = vld [vmem:[#allocation4 + $0x308] sm:$0xff]
    %v593 = vld [vmem:[#allocation4 + $0x310] sm:$0xff]
    %v594 = vld [vmem:[#allocation4 + $0x318] sm:$0xff]
    %v595 = vld [vmem:[#allocation4 + $0x320] sm:$0xff]
    %v596 = vld [vmem:[#allocation4 + $0x328] sm:$0xff]
    %v597 = vld [vmem:[#allocation4 + $0x330] sm:$0xff]
    %v598 = vld [vmem:[#allocation4 + $0x338] sm:$0xff]
    %v599 = vld [vmem:[#allocation4 + $0x340] sm:$0xff]
    %v600 = vld [vmem:[#allocation4 + $0x348] sm:$0xff]
    %v601 = vld [vmem:[#allocation4 + $0x350] sm:$0xff]
    %v602 = vld [vmem:[#allocation4 + $0x358] sm:$0xff]
    %v603 = vld [vmem:[#allocation4 + $0x360] sm:$0xff]
    %v604 = vld [vmem:[#allocation4 + $0x368] sm:$0xff]
    %v605 = vld [vmem:[#allocation4 + $0x370] sm:$0xff]
    %v606 = vld [vmem:[#allocation4 + $0x378] sm:$0xff]
    %v607 = vld [vmem:[#allocation4 + $0x380] sm:$0xff]
    %v608 = vld [vmem:[#allocation4 + $0x388] sm:$0xff]
    %v609 = vld [vmem:[#allocation4 + $0x390] sm:$0xff]
    %v610 = vld [vmem:[#allocation4 + $0x398] sm:$0xff]
    %v611 = vld [vmem:[#allocation4 + $0x3a0] sm:$0xff]
    %v612 = vld [vmem:[#allocation4 + $0x3a8] sm:$0xff]
    %v613 = vld [vmem:[#allocation4 + $0x3b0] sm:$0xff]
    %v614 = vld [vmem:[#allocation4 + $0x3b8] sm:$0xff]
    %v615 = vld [vmem:[#allocation4 + $0x3c0] sm:$0xff]
    %v616 = vld [vmem:[#allocation4 + $0x3c8] sm:$0xff]
    %v617 = vld [vmem:[#allocation4 + $0x3d0] sm:$0xff]
    %v618 = vld [vmem:[#allocation4 + $0x3d8] sm:$0xff]
    %v619 = vld [vmem:[#allocation4 + $0x3e0] sm:$0xff]
    %v620 = vld [vmem:[#allocation4 + $0x3e8] sm:$0xff]
    %v621 = vld [vmem:[#allocation4 + $0x3f0] sm:$0xff]
    %v622 = vld [vmem:[#allocation4 + $0x3f8] sm:$0xff]
    %v623 = vld [vmem:[#allocation4 + $0x400] sm:$0xff]
    %v624 = vld [vmem:[#allocation4 + $0x408] sm:$0xff]
    %v625 = vld [vmem:[#allocation4 + $0x410] sm:$0xff]
    %v626 = vld [vmem:[#allocation4 + $0x418] sm:$0xff]
    %v627 = vld [vmem:[#allocation4 + $0x420] sm:$0xff]
    %v628 = vld [vmem:[#allocation4 + $0x428] sm:$0xff]
    %v629 = vld [vmem:[#allocation4 + $0x430] sm:$0xff]
    %v630 = vld [vmem:[#allocation4 + $0x438] sm:$0xff]
    %v631 = vld [vmem:[#allocation4 + $0x440] sm:$0xff]
    %v632 = vld [vmem:[#allocation4 + $0x448] sm:$0xff]
    %v633 = vld [vmem:[#allocation4 + $0x450] sm:$0xff]
    %v634 = vld [vmem:[#allocation4 + $0x458] sm:$0xff]
    %v635 = vld [vmem:[#allocation4 + $0x460] sm:$0xff]
    %v636 = vld [vmem:[#allocation4 + $0x468] sm:$0xff]
    %v637 = vld [vmem:[#allocation4 + $0x470] sm:$0xff]
    %v638 = vld [vmem:[#allocation4 + $0x478] sm:$0xff]
    %v639 = vld [vmem:[#allocation4 + $0x480] sm:$0xff]
    %v640 = vld [vmem:[#allocation4 + $0x488] sm:$0xff]
    %v641 = vld [vmem:[#allocation4 + $0x490] sm:$0xff]
    %v642 = vld [vmem:[#allocation4 + $0x498] sm:$0xff]
    %v643 = vld [vmem:[#allocation4 + $0x4a0] sm:$0xff]
    %v644 = vld [vmem:[#allocation4 + $0x4a8] sm:$0xff]
    %v645 = vld [vmem:[#allocation4 + $0x4b0] sm:$0xff]
    %v646 = vld [vmem:[#allocation4 + $0x4b8] sm:$0xff]
    %v647 = vld [vmem:[#allocation4 + $0x4c0] sm:$0xff]
    %v648 = vld [vmem:[#allocation4 + $0x4c8] sm:$0xff]
    %v649 = vld [vmem:[#allocation4 + $0x4d0] sm:$0xff]
    %v650 = vld [vmem:[#allocation4 + $0x4d8] sm:$0xff]
    %v651 = vld [vmem:[#allocation4 + $0x4e0] sm:$0xff]
    %v652 = vld [vmem:[#allocation4 + $0x4e8] sm:$0xff]
    %v653 = vld [vmem:[#allocation4 + $0x4f0] sm:$0xff]
    %v654 = vld [vmem:[#allocation4 + $0x4f8] sm:$0xff]
    %v655 = vld [vmem:[#allocation4 + $0x500] sm:$0xff]
    %v656 = vld [vmem:[#allocation4 + $0x508] sm:$0xff]
    %v657 = vld [vmem:[#allocation4 + $0x510] sm:$0xff]
    %v658 = vld [vmem:[#allocation4 + $0x518] sm:$0xff]
    %v659 = vld [vmem:[#allocation4 + $0x520] sm:$0xff]
    %v660 = vld [vmem:[#allocation4 + $0x528] sm:$0xff]
    %v661 = vld [vmem:[#allocation4 + $0x530] sm:$0xff]
    %v662 = vld [vmem:[#allocation4 + $0x538] sm:$0xff]
    %v663 = vld [vmem:[#allocation4 + $0x540] sm:$0xff]
    %v664 = vld [vmem:[#allocation4 + $0x548] sm:$0xff]
    %v665 = vld [vmem:[#allocation4 + $0x550] sm:$0xff]
    %v666 = vld [vmem:[#allocation4 + $0x558] sm:$0xff]
    %v667 = vld [vmem:[#allocation4 + $0x560] sm:$0xff]
    %v668 = vld [vmem:[#allocation4 + $0x568] sm:$0xff]
    %v669 = vld [vmem:[#allocation4 + $0x570] sm:$0xff]
    %v670 = vld [vmem:[#allocation4 + $0x578] sm:$0xff]
    %v671 = vld [vmem:[#allocation4 + $0x580] sm:$0xff]
    %v672 = vld [vmem:[#allocation4 + $0x588] sm:$0xff]
    %v673 = vld [vmem:[#allocation4 + $0x590] sm:$0xff]
    %v674 = vld [vmem:[#allocation4 + $0x598] sm:$0xff]
    %v675 = vld [vmem:[#allocation4 + $0x5a0] sm:$0xff]
    %v676 = vld [vmem:[#allocation4 + $0x5a8] sm:$0xff]
    %v677 = vld [vmem:[#allocation4 + $0x5b0] sm:$0xff]
    %v678 = vld [vmem:[#allocation4 + $0x5b8] sm:$0xff]
    %v679 = vld [vmem:[#allocation4 + $0x5c0] sm:$0xff]
    %v680 = vld [vmem:[#allocation4 + $0x5c8] sm:$0xff]
    %v681 = vld [vmem:[#allocation4 + $0x5d0] sm:$0xff]
    %v682 = vld [vmem:[#allocation4 + $0x5d8] sm:$0xff]
    %v683 = vld [vmem:[#allocation4 + $0x5e0] sm:$0xff]
    %v684 = vld [vmem:[#allocation4 + $0x5e8] sm:$0xff]
    %v685 = vld [vmem:[#allocation4 + $0x5f0] sm:$0xff]
    %v686 = vld [vmem:[#allocation4 + $0x5f8] sm:$0xff]
    %s687 = scalar_lea.vmem [#allocation4], 1536
    %v688 = vld [vmem:[%s687] ss:$8 sm:$0x3]
    %v689 = vld [vmem:[%s3] sm:$0xff]
    %vm690 = vcmask 64512
    %v692 = vsel %vm690, %v689, 0
    %694 = vmatprep.subr.mxu0 %v493
    %695 = vmatpush1.msra.mxu0 %v492
    %696 = vmatprep.subr.mxu0 0.0
    %697 = vmatpush1.msra.mxu0 0.0
    %698 = vmatprep.subr.mxu0 0.0
    %699 = vmatpush1.msra.mxu0 0.0
    %700 = vmatprep.subr.mxu0 0.0
    %701 = vmatpush1.msra.mxu0 0.0
    %702 = vmatprep.subr.mxu0 0.0
    %703 = vmatpush1.msra.mxu0 0.0
    %704 = vmatprep.subr.mxu0 0.0
    %705 = vmatpush1.msra.mxu0 0.0
    %706 = vmatprep.subr.mxu0 0.0
    %707 = vmatpush1.msra.mxu0 0.0
    %708 = vmatprep.subr.mxu0 0.0
    %709 = vmatpush1.msra.mxu0 0.0
    %710 = vmatprep.subr.mxu0 0.0
    %711 = vmatpush1.msra.mxu0 0.0
    %712 = vmatprep.subr.mxu0 0.0
    %713 = vmatpush1.msra.mxu0 0.0
    %714 = vmatprep.subr.mxu0 0.0
    %715 = vmatpush1.msra.mxu0 0.0
    %716 = vmatprep.subr.mxu0 0.0
    %717 = vmatpush1.msra.mxu0 0.0
    %718 = vmatprep.subr.mxu0 0.0
    %719 = vmatpush1.msra.mxu0 0.0
    %720 = vmatprep.subr.mxu0 0.0
    %721 = vmatpush1.msra.mxu0 0.0
    %722 = vmatprep.subr.mxu0 0.0
    %723 = vmatpush1.msra.mxu0 0.0
    %724 = vmatprep.subr.mxu0 0.0
    %725 = vmatpush1.msra.mxu0 0.0
    %726 = vmatprep.subr.mxu0 0.0
    %727 = vmatpush1.msra.mxu0 0.0
    %728 = vmatprep.subr.mxu0 0.0
    %729 = vmatpush1.msra.mxu0 0.0
    %730 = vmatprep.subr.mxu0 0.0
    %731 = vmatpush1.msra.mxu0 0.0
    %732 = vmatprep.subr.mxu0 0.0
    %733 = vmatpush1.msra.mxu0 0.0
    %734 = vmatprep.subr.mxu0 0.0
    %735 = vmatpush1.msra.mxu0 0.0
    %736 = vmatprep.subr.mxu0 0.0
    %737 = vmatpush1.msra.mxu0 0.0
    %738 = vmatprep.subr.mxu0 0.0
    %739 = vmatpush1.msra.mxu0 0.0
    %740 = vmatprep.subr.mxu0 0.0
    %741 = vmatpush1.msra.mxu0 0.0
    %742 = vmatprep.subr.mxu0 0.0
    %743 = vmatpush1.msra.mxu0 0.0
    %744 = vmatprep.subr.mxu0 0.0
    %745 = vmatpush1.msra.mxu0 0.0
    %746 = vmatprep.subr.mxu0 0.0
    %747 = vmatpush1.msra.mxu0 0.0
    %748 = vmatprep.subr.mxu0 0.0
    %749 = vmatpush1.msra.mxu0 0.0
    %750 = vmatprep.subr.mxu0 0.0
    %751 = vmatpush1.msra.mxu0 0.0
    %752 = vmatprep.subr.mxu0 0.0
    %753 = vmatpush1.msra.mxu0 0.0
    %754 = vmatprep.subr.mxu0 0.0
    %755 = vmatpush1.msra.mxu0 0.0
    %756 = vmatprep.subr.mxu0 0.0
    %757 = vmatpush1.msra.mxu0 0.0
    %758 = vmatprep.mubr.f32.mxu0 0.0
    %759 = vmatmul.mubr.f32.gmra.mrb[0].mxu0 %v692
    %v760 = vpop.f32.mrb[0].mxu0
    %v761 = vadd.f32 0.0, %v760
    %v762 = vpop.f32.mrb[0].mxu0
    %v763 = vadd.f32 0.0, %v762
    %764 = vdwg.mxu0
    %765 = vmatprep.subr.mxu0 0.0
    %766 = vmatpush1.msra.mxu0 %v494
    %767 = vmatprep.subr.mxu0 0.0
    %768 = vmatpush1.msra.mxu0 0.0
    %769 = vmatprep.subr.mxu0 0.0
    %770 = vmatpush1.msra.mxu0 0.0
    %771 = vmatprep.subr.mxu0 0.0
    %772 = vmatpush1.msra.mxu0 0.0
    %773 = vmatprep.subr.mxu0 0.0
    %774 = vmatpush1.msra.mxu0 0.0
    %775 = vmatprep.subr.mxu0 0.0
    %776 = vmatpush1.msra.mxu0 0.0
    %777 = vmatprep.subr.mxu0 0.0
    %778 = vmatpush1.msra.mxu0 0.0
    %779 = vmatprep.subr.mxu0 0.0
    %780 = vmatpush1.msra.mxu0 0.0
    %781 = vmatprep.subr.mxu0 0.0
    %782 = vmatpush1.msra.mxu0 0.0
    %783 = vmatprep.subr.mxu0 0.0
    %784 = vmatpush1.msra.mxu0 0.0
    %785 = vmatprep.subr.mxu0 0.0
    %786 = vmatpush1.msra.mxu0 0.0
    %787 = vmatprep.subr.mxu0 0.0
    %788 = vmatpush1.msra.mxu0 0.0
    %789 = vmatprep.subr.mxu0 0.0
    %790 = vmatpush1.msra.mxu0 0.0
    %791 = vmatprep.subr.mxu0 0.0
    %792 = vmatpush1.msra.mxu0 0.0
    %793 = vmatprep.subr.mxu0 0.0
    %794 = vmatpush1.msra.mxu0 0.0
    %795 = vmatprep.subr.mxu0 0.0
    %796 = vmatpush1.msra.mxu0 0.0
    %797 = vmatprep.subr.mxu0 0.0
    %798 = vmatpush1.msra.mxu0 0.0
    %799 = vmatprep.subr.mxu0 0.0
    %800 = vmatpush1.msra.mxu0 0.0
    %801 = vmatprep.subr.mxu0 0.0
    %802 = vmatpush1.msra.mxu0 0.0
    %803 = vmatprep.subr.mxu0 0.0
    %804 = vmatpush1.msra.mxu0 0.0
    %805 = vmatprep.subr.mxu0 0.0
    %806 = vmatpush1.msra.mxu0 0.0
    %807 = vmatprep.subr.mxu0 0.0
    %808 = vmatpush1.msra.mxu0 0.0
    %809 = vmatprep.subr.mxu0 0.0
    %810 = vmatpush1.msra.mxu0 0.0
    %811 = vmatprep.subr.mxu0 0.0
    %812 = vmatpush1.msra.mxu0 0.0
    %813 = vmatprep.subr.mxu0 0.0
    %814 = vmatpush1.msra.mxu0 0.0
    %815 = vmatprep.subr.mxu0 0.0
    %816 = vmatpush1.msra.mxu0 0.0
    %817 = vmatprep.subr.mxu0 0.0
    %818 = vmatpush1.msra.mxu0 0.0
    %819 = vmatprep.subr.mxu0 0.0
    %820 = vmatpush1.msra.mxu0 0.0
    %821 = vmatprep.subr.mxu0 0.0
    %822 = vmatpush1.msra.mxu0 0.0
    %823 = vmatprep.subr.mxu0 0.0
    %824 = vmatpush1.msra.mxu0 0.0
    %825 = vmatprep.subr.mxu0 0.0
    %826 = vmatpush1.msra.mxu0 0.0
    %827 = vmatprep.subr.mxu0 0.0
    %828 = vmatpush1.msra.mxu0 0.0
    %829 = vmatprep.mubr.f32.mxu0 0.0
    %830 = vmatmul.mubr.f32.gmra.mrb[0].mxu0 %v692
    %v831 = vpop.f32.mrb[0].mxu0
    %v832 = vadd.f32 0.0, %v831
    %v833 = vpop.f32.mrb[0].mxu0
    %834 = vdwg.mxu0
    %v835 = vld [vmem:[%s3 + $0x8] sm:$0xff]
    %v837 = vsel %vm690, %v835, 0
    %839 = vmatprep.subr.mxu0 %v493
    %840 = vmatpush1.msra.mxu0 %v492
    %841 = vmatprep.subr.mxu0 0.0
    %842 = vmatpush1.msra.mxu0 0.0
    %843 = vmatprep.subr.mxu0 0.0
    %844 = vmatpush1.msra.mxu0 0.0
    %845 = vmatprep.subr.mxu0 0.0
    %846 = vmatpush1.msra.mxu0 0.0
    %847 = vmatprep.subr.mxu0 0.0
    %848 = vmatpush1.msra.mxu0 0.0
    %849 = vmatprep.subr.mxu0 0.0
    %850 = vmatpush1.msra.mxu0 0.0
    %851 = vmatprep.subr.mxu0 0.0
    %852 = vmatpush1.msra.mxu0 0.0
    %853 = vmatprep.subr.mxu0 0.0
    %854 = vmatpush1.msra.mxu0 0.0
    %855 = vmatprep.subr.mxu0 0.0
    %856 = vmatpush1.msra.mxu0 0.0
    %857 = vmatprep.subr.mxu0 0.0
    %858 = vmatpush1.msra.mxu0 0.0
    %859 = vmatprep.subr.mxu0 0.0
    %860 = vmatpush1.msra.mxu0 0.0
    %861 = vmatprep.subr.mxu0 0.0
    %862 = vmatpush1.msra.mxu0 0.0
    %863 = vmatprep.subr.mxu0 0.0
    %864 = vmatpush1.msra.mxu0 0.0
    %865 = vmatprep.subr.mxu0 0.0
    %866 = vmatpush1.msra.mxu0 0.0
    %867 = vmatprep.subr.mxu0 0.0
    %868 = vmatpush1.msra.mxu0 0.0
    %869 = vmatprep.subr.mxu0 0.0
    %870 = vmatpush1.msra.mxu0 0.0
    %871 = vmatprep.subr.mxu0 0.0
    %872 = vmatpush1.msra.mxu0 0.0
    %873 = vmatprep.subr.mxu0 0.0
    %874 = vmatpush1.msra.mxu0 0.0
    %875 = vmatprep.subr.mxu0 0.0
    %876 = vmatpush1.msra.mxu0 0.0
    %877 = vmatprep.subr.mxu0 0.0
    %878 = vmatpush1.msra.mxu0 0.0
    %879 = vmatprep.subr.mxu0 0.0
    %880 = vmatpush1.msra.mxu0 0.0
    %881 = vmatprep.subr.mxu0 0.0
    %882 = vmatpush1.msra.mxu0 0.0
    %883 = vmatprep.subr.mxu0 0.0
    %884 = vmatpush1.msra.mxu0 0.0
    %885 = vmatprep.subr.mxu0 0.0
    %886 = vmatpush1.msra.mxu0 0.0
    %887 = vmatprep.subr.mxu0 0.0
    %888 = vmatpush1.msra.mxu0 0.0
    %889 = vmatprep.subr.mxu0 0.0
    %890 = vmatpush1.msra.mxu0 0.0
    %891 = vmatprep.subr.mxu0 0.0
    %892 = vmatpush1.msra.mxu0 0.0
    %893 = vmatprep.subr.mxu0 0.0
    %894 = vmatpush1.msra.mxu0 0.0
    %895 = vmatprep.subr.mxu0 0.0
    %896 = vmatpush1.msra.mxu0 0.0
    %897 = vmatprep.subr.mxu0 0.0
    %898 = vmatpush1.msra.mxu0 0.0
    %899 = vmatprep.subr.mxu0 0.0
    %900 = vmatpush1.msra.mxu0 0.0
    %901 = vmatprep.subr.mxu0 0.0
    %902 = vmatpush1.msra.mxu0 0.0
    %903 = vmatprep.mubr.f32.mxu0 0.0
    %904 = vmatmul.mubr.f32.gmra.mrb[0].mxu0 %v837
    %v905 = vpop.f32.mrb[0].mxu0
    %v906 = vadd.f32 0.0, %v905
    %v907 = vpop.f32.mrb[0].mxu0
    %v908 = vadd.f32 0.0, %v907
    %909 = vdwg.mxu0
    %910 = vmatprep.subr.mxu0 0.0
    %911 = vmatpush1.msra.mxu0 %v494
    %912 = vmatprep.subr.mxu0 0.0
    %913 = vmatpush1.msra.mxu0 0.0
    %914 = vmatprep.subr.mxu0 0.0
    %915 = vmatpush1.msra.mxu0 0.0
    %916 = vmatprep.subr.mxu0 0.0
    %917 = vmatpush1.msra.mxu0 0.0
    %918 = vmatprep.subr.mxu0 0.0
    %919 = vmatpush1.msra.mxu0 0.0
    %920 = vmatprep.subr.mxu0 0.0
    %921 = vmatpush1.msra.mxu0 0.0
    %922 = vmatprep.subr.mxu0 0.0
    %923 = vmatpush1.msra.mxu0 0.0
    %924 = vmatprep.subr.mxu0 0.0
    %925 = vmatpush1.msra.mxu0 0.0
    %926 = vmatprep.subr.mxu0 0.0
    %927 = vmatpush1.msra.mxu0 0.0
    %928 = vmatprep.subr.mxu0 0.0
    %929 = vmatpush1.msra.mxu0 0.0
    %930 = vmatprep.subr.mxu0 0.0
    %931 = vmatpush1.msra.mxu0 0.0
    %932 = vmatprep.subr.mxu0 0.0
    %933 = vmatpush1.msra.mxu0 0.0
    %934 = vmatprep.subr.mxu0 0.0
    %935 = vmatpush1.msra.mxu0 0.0
    %936 = vmatprep.subr.mxu0 0.0
    %937 = vmatpush1.msra.mxu0 0.0
    %938 = vmatprep.subr.mxu0 0.0
    %939 = vmatpush1.msra.mxu0 0.0
    %940 = vmatprep.subr.mxu0 0.0
    %941 = vmatpush1.msra.mxu0 0.0
    %942 = vmatprep.subr.mxu0 0.0
    %943 = vmatpush1.msra.mxu0 0.0
    %944 = vmatprep.subr.mxu0 0.0
    %945 = vmatpush1.msra.mxu0 0.0
    %946 = vmatprep.subr.mxu0 0.0
    %947 = vmatpush1.msra.mxu0 0.0
    %948 = vmatprep.subr.mxu0 0.0
    %949 = vmatpush1.msra.mxu0 0.0
    %950 = vmatprep.subr.mxu0 0.0
    %951 = vmatpush1.msra.mxu0 0.0
    %952 = vmatprep.subr.mxu0 0.0
    %953 = vmatpush1.msra.mxu0 0.0
    %954 = vmatprep.subr.mxu0 0.0
    %955 = vmatpush1.msra.mxu0 0.0
    %956 = vmatprep.subr.mxu0 0.0
    %957 = vmatpush1.msra.mxu0 0.0
    %958 = vmatprep.subr.mxu0 0.0
    %959 = vmatpush1.msra.mxu0 0.0
    %960 = vmatprep.subr.mxu0 0.0
    %961 = vmatpush1.msra.mxu0 0.0
    %962 = vmatprep.subr.mxu0 0.0
    %963 = vmatpush1.msra.mxu0 0.0
    %964 = vmatprep.subr.mxu0 0.0
    %965 = vmatpush1.msra.mxu0 0.0
    %966 = vmatprep.subr.mxu0 0.0
    %967 = vmatpush1.msra.mxu0 0.0
    %968 = vmatprep.subr.mxu0 0.0
    %969 = vmatpush1.msra.mxu0 0.0
    %970 = vmatprep.subr.mxu0 0.0
    %971 = vmatpush1.msra.mxu0 0.0
    %972 = vmatprep.subr.mxu0 0.0
    %973 = vmatpush1.msra.mxu0 0.0
    %974 = vmatprep.mubr.f32.mxu0 0.0
    %975 = vmatmul.mubr.f32.gmra.mrb[0].mxu0 %v837
    %v976 = vpop.f32.mrb[0].mxu0
    %v977 = vadd.f32 0.0, %v976
    %v978 = vpop.f32.mrb[0].mxu0
    %979 = vdwg.mxu0
    %v981 = vlaneseq
    %v982 = vshrl.u32 %v981, 7
    %v983 = vsub.s32 0, %v982
    %v984 = vrot.slane %v688, %v983
    %v985 = vlaneseq
    %v986 = vshrl.u32 %v985, 7
    %v987 = vsub.s32 1, %v986
    %v988 = vrot.slane %v688, %v987
    %991 = vmatprep.subr.mxu0 %v496
    %992 = vmatpush1.msra.mxu0 %v495
    %993 = vmatprep.subr.mxu0 %v498
    %994 = vmatpush1.msra.mxu0 %v497
    %995 = vmatprep.subr.mxu0 %v500
    %996 = vmatpush1.msra.mxu0 %v499
    %997 = vmatprep.subr.mxu0 %v502
    %998 = vmatpush1.msra.mxu0 %v501
    %999 = vmatprep.subr.mxu0 %v504
    %1000 = vmatpush1.msra.mxu0 %v503
    %1001 = vmatprep.subr.mxu0 %v506
    %1002 = vmatpush1.msra.mxu0 %v505
    %1003 = vmatprep.subr.mxu0 %v508
    %1004 = vmatpush1.msra.mxu0 %v507
    %1005 = vmatprep.subr.mxu0 %v510
    %1006 = vmatpush1.msra.mxu0 %v509
    %1007 = vmatprep.subr.mxu0 %v512
    %1008 = vmatpush1.msra.mxu0 %v511
    %1009 = vmatprep.subr.mxu0 %v514
    %1010 = vmatpush1.msra.mxu0 %v513
    %1011 = vmatprep.subr.mxu0 %v516
    %1012 = vmatpush1.msra.mxu0 %v515
    %1013 = vmatprep.subr.mxu0 %v518
    %1014 = vmatpush1.msra.mxu0 %v517
    %1015 = vmatprep.subr.mxu0 %v520
    %1016 = vmatpush1.msra.mxu0 %v519
    %1017 = vmatprep.subr.mxu0 %v522
    %1018 = vmatpush1.msra.mxu0 %v521
    %1019 = vmatprep.subr.mxu0 %v524
    %1020 = vmatpush1.msra.mxu0 %v523
    %1021 = vmatprep.subr.mxu0 %v526
    %1022 = vmatpush1.msra.mxu0 %v525
    %1023 = vmatprep.subr.mxu0 %v528
    %1024 = vmatpush1.msra.mxu0 %v527
    %1025 = vmatprep.subr.mxu0 %v530
    %1026 = vmatpush1.msra.mxu0 %v529
    %1027 = vmatprep.subr.mxu0 %v532
    %1028 = vmatpush1.msra.mxu0 %v531
    %1029 = vmatprep.subr.mxu0 %v534
    %1030 = vmatpush1.msra.mxu0 %v533
    %1031 = vmatprep.subr.mxu0 %v536
    %1032 = vmatpush1.msra.mxu0 %v535
    %1033 = vmatprep.subr.mxu0 %v538
    %1034 = vmatpush1.msra.mxu0 %v537
    %1035 = vmatprep.subr.mxu0 %v540
    %1036 = vmatpush1.msra.mxu0 %v539
    %1037 = vmatprep.subr.mxu0 %v542
    %1038 = vmatpush1.msra.mxu0 %v541
    %1039 = vmatprep.subr.mxu0 %v544
    %1040 = vmatpush1.msra.mxu0 %v543
    %1041 = vmatprep.subr.mxu0 %v546
    %1042 = vmatpush1.msra.mxu0 %v545
    %1043 = vmatprep.subr.mxu0 %v548
    %1044 = vmatpush1.msra.mxu0 %v547
    %1045 = vmatprep.subr.mxu0 %v550
    %1046 = vmatpush1.msra.mxu0 %v549
    %1047 = vmatprep.subr.mxu0 %v552
    %1048 = vmatpush1.msra.mxu0 %v551
    %1049 = vmatprep.subr.mxu0 %v554
    %1050 = vmatpush1.msra.mxu0 %v553
    %1051 = vmatprep.subr.mxu0 %v556
    %1052 = vmatpush1.msra.mxu0 %v555
    %1053 = vmatprep.subr.mxu0 %v558
    %1054 = vmatpush1.msra.mxu0 %v557
    %1055 = vmatprep.mubr.f32.mxu0 %v763
    %1056 = vmatmul.mubr.f32.gmra.mrb[0].mxu0 %v761
    %v1057 = vpop.f32.mrb[0].mxu0
    %v1058 = vadd.f32 %v984, %v1057
    %v1059 = vpop.f32.mrb[0].mxu0
    %v1060 = vadd.f32 %v988, %v1059
    %1061 = vdwg.mxu0
    %1062 = vmatprep.subr.mxu0 %v560
    %1063 = vmatpush1.msra.mxu0 %v559
    %1064 = vmatprep.subr.mxu0 %v562
    %1065 = vmatpush1.msra.mxu0 %v561
    %1066 = vmatprep.subr.mxu0 %v564
    %1067 = vmatpush1.msra.mxu0 %v563
    %1068 = vmatprep.subr.mxu0 %v566
    %1069 = vmatpush1.msra.mxu0 %v565
    %1070 = vmatprep.subr.mxu0 %v568
    %1071 = vmatpush1.msra.mxu0 %v567
    %1072 = vmatprep.subr.mxu0 %v570
    %1073 = vmatpush1.msra.mxu0 %v569
    %1074 = vmatprep.subr.mxu0 %v572
    %1075 = vmatpush1.msra.mxu0 %v571
    %1076 = vmatprep.subr.mxu0 %v574
    %1077 = vmatpush1.msra.mxu0 %v573
    %1078 = vmatprep.subr.mxu0 %v576
    %1079 = vmatpush1.msra.mxu0 %v575
    %1080 = vmatprep.subr.mxu0 %v578
    %1081 = vmatpush1.msra.mxu0 %v577
    %1082 = vmatprep.subr.mxu0 %v580
    %1083 = vmatpush1.msra.mxu0 %v579
    %1084 = vmatprep.subr.mxu0 %v582
    %1085 = vmatpush1.msra.mxu0 %v581
    %1086 = vmatprep.subr.mxu0 %v584
    %1087 = vmatpush1.msra.mxu0 %v583
    %1088 = vmatprep.subr.mxu0 %v586
    %1089 = vmatpush1.msra.mxu0 %v585
    %1090 = vmatprep.subr.mxu0 %v588
    %1091 = vmatpush1.msra.mxu0 %v587
    %1092 = vmatprep.subr.mxu0 %v590
    %1093 = vmatpush1.msra.mxu0 %v589
    %1094 = vmatprep.subr.mxu0 %v592
    %1095 = vmatpush1.msra.mxu0 %v591
    %1096 = vmatprep.subr.mxu0 %v594
    %1097 = vmatpush1.msra.mxu0 %v593
    %1098 = vmatprep.subr.mxu0 %v596
    %1099 = vmatpush1.msra.mxu0 %v595
    %1100 = vmatprep.subr.mxu0 %v598
    %1101 = vmatpush1.msra.mxu0 %v597
    %1102 = vmatprep.subr.mxu0 %v600
    %1103 = vmatpush1.msra.mxu0 %v599
    %1104 = vmatprep.subr.mxu0 %v602
    %1105 = vmatpush1.msra.mxu0 %v601
    %1106 = vmatprep.subr.mxu0 %v604
    %1107 = vmatpush1.msra.mxu0 %v603
    %1108 = vmatprep.subr.mxu0 %v606
    %1109 = vmatpush1.msra.mxu0 %v605
    %1110 = vmatprep.subr.mxu0 %v608
    %1111 = vmatpush1.msra.mxu0 %v607
    %1112 = vmatprep.subr.mxu0 %v610
    %1113 = vmatpush1.msra.mxu0 %v609
    %1114 = vmatprep.subr.mxu0 %v612
    %1115 = vmatpush1.msra.mxu0 %v611
    %1116 = vmatprep.subr.mxu0 %v614
    %1117 = vmatpush1.msra.mxu0 %v613
    %1118 = vmatprep.subr.mxu0 %v616
    %1119 = vmatpush1.msra.mxu0 %v615
    %1120 = vmatprep.subr.mxu0 %v618
    %1121 = vmatpush1.msra.mxu0 %v617
    %1122 = vmatprep.subr.mxu0 %v620
    %1123 = vmatpush1.msra.mxu0 %v619
    %1124 = vmatprep.subr.mxu0 %v622
    %1125 = vmatpush1.msra.mxu0 %v621
    %1126 = vmatprep.mubr.f32.mxu0 %v906
    %1127 = vmatmul.mubr.f32.gmra.mrb[0].mxu0 %v832
    %v1128 = vpop.f32.mrb[0].mxu0
    %v1129 = vadd.f32 %v1058, %v1128
    %v1130 = vpop.f32.mrb[0].mxu0
    %v1131 = vadd.f32 %v1060, %v1130
    %1132 = vdwg.mxu0
    %1133 = vmatprep.subr.mxu0 %v624
    %1134 = vmatpush1.msra.mxu0 %v623
    %1135 = vmatprep.subr.mxu0 %v626
    %1136 = vmatpush1.msra.mxu0 %v625
    %1137 = vmatprep.subr.mxu0 %v628
    %1138 = vmatpush1.msra.mxu0 %v627
    %1139 = vmatprep.subr.mxu0 %v630
    %1140 = vmatpush1.msra.mxu0 %v629
    %1141 = vmatprep.subr.mxu0 %v632
    %1142 = vmatpush1.msra.mxu0 %v631
    %1143 = vmatprep.subr.mxu0 %v634
    %1144 = vmatpush1.msra.mxu0 %v633
    %1145 = vmatprep.subr.mxu0 %v636
    %1146 = vmatpush1.msra.mxu0 %v635
    %1147 = vmatprep.subr.mxu0 %v638
    %1148 = vmatpush1.msra.mxu0 %v637
    %1149 = vmatprep.subr.mxu0 %v640
    %1150 = vmatpush1.msra.mxu0 %v639
    %1151 = vmatprep.subr.mxu0 %v642
    %1152 = vmatpush1.msra.mxu0 %v641
    %1153 = vmatprep.subr.mxu0 %v644
    %1154 = vmatpush1.msra.mxu0 %v643
    %1155 = vmatprep.subr.mxu0 %v646
    %1156 = vmatpush1.msra.mxu0 %v645
    %1157 = vmatprep.subr.mxu0 %v648
    %1158 = vmatpush1.msra.mxu0 %v647
    %1159 = vmatprep.subr.mxu0 %v650
    %1160 = vmatpush1.msra.mxu0 %v649
    %1161 = vmatprep.subr.mxu0 %v652
    %1162 = vmatpush1.msra.mxu0 %v651
    %1163 = vmatprep.subr.mxu0 %v654
    %1164 = vmatpush1.msra.mxu0 %v653
    %1165 = vmatprep.subr.mxu0 %v656
    %1166 = vmatpush1.msra.mxu0 %v655
    %1167 = vmatprep.subr.mxu0 %v658
    %1168 = vmatpush1.msra.mxu0 %v657
    %1169 = vmatprep.subr.mxu0 %v660
    %1170 = vmatpush1.msra.mxu0 %v659
    %1171 = vmatprep.subr.mxu0 %v662
    %1172 = vmatpush1.msra.mxu0 %v661
    %1173 = vmatprep.subr.mxu0 %v664
    %1174 = vmatpush1.msra.mxu0 %v663
    %1175 = vmatprep.subr.mxu0 %v666
    %1176 = vmatpush1.msra.mxu0 %v665
    %1177 = vmatprep.subr.mxu0 %v668
    %1178 = vmatpush1.msra.mxu0 %v667
    %1179 = vmatprep.subr.mxu0 %v670
    %1180 = vmatpush1.msra.mxu0 %v669
    %1181 = vmatprep.subr.mxu0 %v672
    %1182 = vmatpush1.msra.mxu0 %v671
    %1183 = vmatprep.subr.mxu0 %v674
    %1184 = vmatpush1.msra.mxu0 %v673
    %1185 = vmatprep.subr.mxu0 %v676
    %1186 = vmatpush1.msra.mxu0 %v675
    %1187 = vmatprep.subr.mxu0 %v678
    %1188 = vmatpush1.msra.mxu0 %v677
    %1189 = vmatprep.subr.mxu0 %v680
    %1190 = vmatpush1.msra.mxu0 %v679
    %1191 = vmatprep.subr.mxu0 %v682
    %1192 = vmatpush1.msra.mxu0 %v681
    %1193 = vmatprep.subr.mxu0 %v684
    %1194 = vmatpush1.msra.mxu0 %v683
    %1195 = vmatprep.subr.mxu0 %v686
    %1196 = vmatpush1.msra.mxu0 %v685
    %1197 = vmatprep.mubr.f32.mxu0 %v977
    %1198 = vmatmul.mubr.f32.gmra.mrb[0].mxu0 %v908
    %v1199 = vpop.f32.mrb[0].mxu0
    %v1200 = vadd.f32 %v1129, %v1199
    %v1201 = vpop.f32.mrb[0].mxu0
    %v1202 = vadd.f32 %v1131, %v1201
    %1203 = vdwg.mxu0
    %v1204 = vmax.f32 %v1200, 0.0
    %v1205 = vmax.f32 %v1202, 0.0
    %v1206 = vld [vmem:[#allocation2 + $0x498] sm:$0xff]
    %v1207 = vld [vmem:[#allocation2 + $0x4a0] sm:$0xff]
    %v1208 = vld [vmem:[#allocation2 + $0x4a8] sm:$0xff]
    %v1209 = vld [vmem:[#allocation2 + $0x4b0] sm:$0xff]
    %v1210 = vld [vmem:[#allocation2 + $0x4b8] sm:$0xff]
    %v1211 = vld [vmem:[#allocation2 + $0x4c0] sm:$0xff]
    %v1212 = vld [vmem:[#allocation2 + $0x4c8] sm:$0xff]
    %v1213 = vld [vmem:[#allocation2 + $0x4d0] sm:$0xff]
    %v1214 = vld [vmem:[#allocation2 + $0x4d8] sm:$0xff]
    %v1215 = vld [vmem:[#allocation2 + $0x4e0] sm:$0xff]
    %v1216 = vld [vmem:[#allocation2 + $0x4e8] sm:$0xff]
    %v1217 = vld [vmem:[#allocation2 + $0x4f0] sm:$0xff]
    %v1218 = vld [vmem:[#allocation2 + $0x4f8] sm:$0xff]
    %v1219 = vld [vmem:[#allocation2 + $0x500] sm:$0xff]
    %v1220 = vld [vmem:[#allocation2 + $0x508] sm:$0xff]
    %v1221 = vld [vmem:[#allocation2 + $0x510] sm:$0xff]
    %v1222 = vld [vmem:[#allocation2 + $0x518] sm:$0xff]
    %v1223 = vld [vmem:[#allocation2 + $0x520] sm:$0xff]
    %v1224 = vld [vmem:[#allocation2 + $0x528] sm:$0xff]
    %v1225 = vld [vmem:[#allocation2 + $0x530] sm:$0xff]
    %v1226 = vld [vmem:[#allocation2 + $0x538] sm:$0xff]
    %v1227 = vld [vmem:[#allocation2 + $0x540] sm:$0xff]
    %v1228 = vld [vmem:[#allocation2 + $0x548] sm:$0xff]
    %v1229 = vld [vmem:[#allocation2 + $0x550] sm:$0xff]
    %v1230 = vld [vmem:[#allocation2 + $0x558] sm:$0xff]
    %v1231 = vld [vmem:[#allocation2 + $0x560] sm:$0xff]
    %v1232 = vld [vmem:[#allocation2 + $0x568] sm:$0xff]
    %v1233 = vld [vmem:[#allocation2 + $0x570] sm:$0xff]
    %v1234 = vld [vmem:[#allocation2 + $0x578] sm:$0xff]
    %v1235 = vld [vmem:[#allocation2 + $0x580] sm:$0xff]
    %v1236 = vld [vmem:[#allocation2 + $0x588] sm:$0xff]
    %v1237 = vld [vmem:[#allocation2 + $0x590] sm:$0xff]
    %v1238 = vld [vmem:[#allocation2 + $0x598] sm:$0xff]
    %v1239 = vld [vmem:[#allocation2 + $0x5a0] sm:$0xff]
    %v1240 = vld [vmem:[#allocation2 + $0x5a8] sm:$0xff]
    %v1241 = vld [vmem:[#allocation2 + $0x5b0] sm:$0xff]
    %v1242 = vld [vmem:[#allocation2 + $0x5b8] sm:$0xff]
    %v1243 = vld [vmem:[#allocation2 + $0x5c0] sm:$0xff]
    %v1244 = vld [vmem:[#allocation2 + $0x5c8] sm:$0xff]
    %v1245 = vld [vmem:[#allocation2 + $0x5d0] sm:$0xff]
    %v1246 = vld [vmem:[#allocation2 + $0x5d8] sm:$0xff]
    %v1247 = vld [vmem:[#allocation2 + $0x5e0] sm:$0xff]
    %v1248 = vld [vmem:[#allocation2 + $0x5e8] sm:$0xff]
    %v1249 = vld [vmem:[#allocation2 + $0x5f0] sm:$0xff]
    %v1250 = vld [vmem:[#allocation2 + $0x5f8] sm:$0xff]
    %v1251 = vld [vmem:[#allocation2 + $0x600] sm:$0xff]
    %v1252 = vld [vmem:[#allocation2 + $0x608] sm:$0xff]
    %v1253 = vld [vmem:[#allocation2 + $0x610] sm:$0xff]
    %v1254 = vld [vmem:[#allocation2 + $0x618] sm:$0xff]
    %v1255 = vld [vmem:[#allocation2 + $0x620] sm:$0xff]
    %v1256 = vld [vmem:[#allocation2 + $0x628] sm:$0xff]
    %v1257 = vld [vmem:[#allocation2 + $0x630] sm:$0xff]
    %v1258 = vld [vmem:[#allocation2 + $0x638] sm:$0xff]
    %v1259 = vld [vmem:[#allocation2 + $0x640] sm:$0xff]
    %v1260 = vld [vmem:[#allocation2 + $0x648] sm:$0xff]
    %v1261 = vld [vmem:[#allocation2 + $0x650] sm:$0xff]
    %v1262 = vld [vmem:[#allocation2 + $0x658] sm:$0xff]
    %v1263 = vld [vmem:[#allocation2 + $0x660] sm:$0xff]
    %v1264 = vld [vmem:[#allocation2 + $0x668] sm:$0xff]
    %v1265 = vld [vmem:[#allocation2 + $0x670] sm:$0xff]
    %v1266 = vld [vmem:[#allocation2 + $0x678] sm:$0xff]
    %v1267 = vld [vmem:[#allocation2 + $0x680] sm:$0xff]
    %v1268 = vld [vmem:[#allocation2 + $0x688] sm:$0xff]
    %v1269 = vld [vmem:[#allocation2 + $0x690] sm:$0xff]
    %v1270 = vld [vmem:[#allocation2 + $0x698] sm:$0xff]
    %v1271 = vld [vmem:[#allocation2 + $0x6a0] sm:$0xff]
    %v1272 = vld [vmem:[#allocation2 + $0x6a8] sm:$0xff]
    %v1273 = vld [vmem:[#allocation2 + $0x6b0] sm:$0xff]
    %v1274 = vld [vmem:[#allocation2 + $0x6b8] sm:$0xff]
    %v1275 = vld [vmem:[#allocation2 + $0x6c0] sm:$0xff]
    %v1276 = vld [vmem:[#allocation2 + $0x6c8] sm:$0xff]
    %v1277 = vld [vmem:[#allocation2 + $0x6d0] sm:$0xff]
    %v1278 = vld [vmem:[#allocation2 + $0x6d8] sm:$0xff]
    %v1279 = vld [vmem:[#allocation2 + $0x6e0] sm:$0xff]
    %v1280 = vld [vmem:[#allocation2 + $0x6e8] sm:$0xff]
    %v1281 = vld [vmem:[#allocation2 + $0x6f0] sm:$0xff]
    %v1282 = vld [vmem:[#allocation2 + $0x6f8] sm:$0xff]
    %v1283 = vld [vmem:[#allocation2 + $0x700] sm:$0xff]
    %v1284 = vld [vmem:[#allocation2 + $0x708] sm:$0xff]
    %v1285 = vld [vmem:[#allocation2 + $0x710] sm:$0xff]
    %v1286 = vld [vmem:[#allocation2 + $0x718] sm:$0xff]
    %v1287 = vld [vmem:[#allocation2 + $0x720] sm:$0xff]
    %v1288 = vld [vmem:[#allocation2 + $0x728] sm:$0xff]
    %v1289 = vld [vmem:[#allocation2 + $0x730] sm:$0xff]
    %v1290 = vld [vmem:[#allocation2 + $0x738] sm:$0xff]
    %v1291 = vld [vmem:[#allocation2 + $0x740] sm:$0xff]
    %v1292 = vld [vmem:[#allocation2 + $0x748] sm:$0xff]
    %v1293 = vld [vmem:[#allocation2 + $0x750] sm:$0xff]
    %v1294 = vld [vmem:[#allocation2 + $0x758] sm:$0xff]
    %v1295 = vld [vmem:[#allocation2 + $0x760] sm:$0xff]
    %v1296 = vld [vmem:[#allocation2 + $0x768] sm:$0xff]
    %v1297 = vld [vmem:[#allocation2 + $0x770] sm:$0xff]
    %v1298 = vld [vmem:[#allocation2 + $0x778] sm:$0xff]
    %v1299 = vld [vmem:[#allocation2 + $0x780] sm:$0xff]
    %v1300 = vld [vmem:[#allocation2 + $0x788] sm:$0xff]
    %v1301 = vld [vmem:[#allocation2 + $0x790] sm:$0xff]
    %s1302 = scalar_lea.vmem [#allocation2], 1944
    %v1303 = vld [vmem:[%s1302] ss:$8 sm:$0x7]
    %v1305 = vlaneseq
    %v1306 = vshrl.u32 %v1305, 7
    %v1307 = vsub.s32 0, %v1306
    %v1308 = vrot.slane %v1303, %v1307
    %v1309 = vlaneseq
    %v1310 = vshrl.u32 %v1309, 7
    %v1311 = vsub.s32 1, %v1310
    %v1312 = vrot.slane %v1303, %v1311
    %v1313 = vlaneseq
    %v1314 = vshrl.u32 %v1313, 7
    %v1315 = vsub.s32 2, %v1314
    %v1316 = vrot.slane %v1303, %v1315
    %1320 = vmatprep.subr.mxu0 %v1207
    %1321 = vmatpush1.msra.mxu0 %v1206
    %1322 = vmatprep.subr.mxu0 %v1210
    %1323 = vmatpush1.msra.mxu0 %v1209
    %1324 = vmatprep.subr.mxu0 %v1213
    %1325 = vmatpush1.msra.mxu0 %v1212
    %1326 = vmatprep.subr.mxu0 %v1216
    %1327 = vmatpush1.msra.mxu0 %v1215
    %1328 = vmatprep.subr.mxu0 %v1219
    %1329 = vmatpush1.msra.mxu0 %v1218
    %1330 = vmatprep.subr.mxu0 %v1222
    %1331 = vmatpush1.msra.mxu0 %v1221
    %1332 = vmatprep.subr.mxu0 %v1225
    %1333 = vmatpush1.msra.mxu0 %v1224
    %1334 = vmatprep.subr.mxu0 %v1228
    %1335 = vmatpush1.msra.mxu0 %v1227
    %1336 = vmatprep.subr.mxu0 %v1231
    %1337 = vmatpush1.msra.mxu0 %v1230
    %1338 = vmatprep.subr.mxu0 %v1234
    %1339 = vmatpush1.msra.mxu0 %v1233
    %1340 = vmatprep.subr.mxu0 %v1237
    %1341 = vmatpush1.msra.mxu0 %v1236
    %1342 = vmatprep.subr.mxu0 %v1240
    %1343 = vmatpush1.msra.mxu0 %v1239
    %1344 = vmatprep.subr.mxu0 %v1243
    %1345 = vmatpush1.msra.mxu0 %v1242
    %1346 = vmatprep.subr.mxu0 %v1246
    %1347 = vmatpush1.msra.mxu0 %v1245
    %1348 = vmatprep.subr.mxu0 %v1249
    %1349 = vmatpush1.msra.mxu0 %v1248
    %1350 = vmatprep.subr.mxu0 %v1252
    %1351 = vmatpush1.msra.mxu0 %v1251
    %1352 = vmatprep.subr.mxu0 %v1255
    %1353 = vmatpush1.msra.mxu0 %v1254
    %1354 = vmatprep.subr.mxu0 %v1258
    %1355 = vmatpush1.msra.mxu0 %v1257
    %1356 = vmatprep.subr.mxu0 %v1261
    %1357 = vmatpush1.msra.mxu0 %v1260
    %1358 = vmatprep.subr.mxu0 %v1264
    %1359 = vmatpush1.msra.mxu0 %v1263
    %1360 = vmatprep.subr.mxu0 %v1267
    %1361 = vmatpush1.msra.mxu0 %v1266
    %1362 = vmatprep.subr.mxu0 %v1270
    %1363 = vmatpush1.msra.mxu0 %v1269
    %1364 = vmatprep.subr.mxu0 %v1273
    %1365 = vmatpush1.msra.mxu0 %v1272
    %1366 = vmatprep.subr.mxu0 %v1276
    %1367 = vmatpush1.msra.mxu0 %v1275
    %1368 = vmatprep.subr.mxu0 %v1279
    %1369 = vmatpush1.msra.mxu0 %v1278
    %1370 = vmatprep.subr.mxu0 %v1282
    %1371 = vmatpush1.msra.mxu0 %v1281
    %1372 = vmatprep.subr.mxu0 %v1285
    %1373 = vmatpush1.msra.mxu0 %v1284
    %1374 = vmatprep.subr.mxu0 %v1288
    %1375 = vmatpush1.msra.mxu0 %v1287
    %1376 = vmatprep.subr.mxu0 %v1291
    %1377 = vmatpush1.msra.mxu0 %v1290
    %1378 = vmatprep.subr.mxu0 %v1294
    %1379 = vmatpush1.msra.mxu0 %v1293
    %1380 = vmatprep.subr.mxu0 %v1297
    %1381 = vmatpush1.msra.mxu0 %v1296
    %1382 = vmatprep.subr.mxu0 %v1300
    %1383 = vmatpush1.msra.mxu0 %v1299
    %1384 = vmatprep.mubr.f32.mxu0 %v1205
    %1385 = vmatmul.mubr.f32.gmra.mrb[0].mxu0 %v1204
    %v1386 = vpop.f32.mrb[0].mxu0
    %v1387 = vadd.f32 %v1308, %v1386
    %v1388 = vpop.f32.mrb[0].mxu0
    %v1389 = vadd.f32 %v1312, %v1388
    %1390 = vdwg.mxu0
    %1391 = vmatprep.subr.mxu0 0.0
    %1392 = vmatpush1.msra.mxu0 %v1208
    %1393 = vmatprep.subr.mxu0 0.0
    %1394 = vmatpush1.msra.mxu0 %v1211
    %1395 = vmatprep.subr.mxu0 0.0
    %1396 = vmatpush1.msra.mxu0 %v1214
    %1397 = vmatprep.subr.mxu0 0.0
    %1398 = vmatpush1.msra.mxu0 %v1217
    %1399 = vmatprep.subr.mxu0 0.0
    %1400 = vmatpush1.msra.mxu0 %v1220
    %1401 = vmatprep.subr.mxu0 0.0
    %1402 = vmatpush1.msra.mxu0 %v1223
    %1403 = vmatprep.subr.mxu0 0.0
    %1404 = vmatpush1.msra.mxu0 %v1226
    %1405 = vmatprep.subr.mxu0 0.0
    %1406 = vmatpush1.msra.mxu0 %v1229
    %1407 = vmatprep.subr.mxu0 0.0
    %1408 = vmatpush1.msra.mxu0 %v1232
    %1409 = vmatprep.subr.mxu0 0.0
    %1410 = vmatpush1.msra.mxu0 %v1235
    %1411 = vmatprep.subr.mxu0 0.0
    %1412 = vmatpush1.msra.mxu0 %v1238
    %1413 = vmatprep.subr.mxu0 0.0
    %1414 = vmatpush1.msra.mxu0 %v1241
    %1415 = vmatprep.subr.mxu0 0.0
    %1416 = vmatpush1.msra.mxu0 %v1244
    %1417 = vmatprep.subr.mxu0 0.0
    %1418 = vmatpush1.msra.mxu0 %v1247
    %1419 = vmatprep.subr.mxu0 0.0
    %1420 = vmatpush1.msra.mxu0 %v1250
    %1421 = vmatprep.subr.mxu0 0.0
    %1422 = vmatpush1.msra.mxu0 %v1253
    %1423 = vmatprep.subr.mxu0 0.0
    %1424 = vmatpush1.msra.mxu0 %v1256
    %1425 = vmatprep.subr.mxu0 0.0
    %1426 = vmatpush1.msra.mxu0 %v1259
    %1427 = vmatprep.subr.mxu0 0.0
    %1428 = vmatpush1.msra.mxu0 %v1262
    %1429 = vmatprep.subr.mxu0 0.0
    %1430 = vmatpush1.msra.mxu0 %v1265
    %1431 = vmatprep.subr.mxu0 0.0
    %1432 = vmatpush1.msra.mxu0 %v1268
    %1433 = vmatprep.subr.mxu0 0.0
    %1434 = vmatpush1.msra.mxu0 %v1271
    %1435 = vmatprep.subr.mxu0 0.0
    %1436 = vmatpush1.msra.mxu0 %v1274
    %1437 = vmatprep.subr.mxu0 0.0
    %1438 = vmatpush1.msra.mxu0 %v1277
    %1439 = vmatprep.subr.mxu0 0.0
    %1440 = vmatpush1.msra.mxu0 %v1280
    %1441 = vmatprep.subr.mxu0 0.0
    %1442 = vmatpush1.msra.mxu0 %v1283
    %1443 = vmatprep.subr.mxu0 0.0
    %1444 = vmatpush1.msra.mxu0 %v1286
    %1445 = vmatprep.subr.mxu0 0.0
    %1446 = vmatpush1.msra.mxu0 %v1289
    %1447 = vmatprep.subr.mxu0 0.0
    %1448 = vmatpush1.msra.mxu0 %v1292
    %1449 = vmatprep.subr.mxu0 0.0
    %1450 = vmatpush1.msra.mxu0 %v1295
    %1451 = vmatprep.subr.mxu0 0.0
    %1452 = vmatpush1.msra.mxu0 %v1298
    %1453 = vmatprep.subr.mxu0 0.0
    %1454 = vmatpush1.msra.mxu0 %v1301
    %1455 = vmatprep.mubr.f32.mxu0 %v1205
    %1456 = vmatmul.mubr.f32.gmra.mrb[0].mxu0 %v1204
    %v1457 = vpop.f32.mrb[0].mxu0
    %v1458 = vadd.f32 %v1316, %v1457
    %v1459 = vpop.f32.mrb[0].mxu0
    %1460 = vdwg.mxu0
    %v1461 = vmax.f32 %v1387, 0.0
    %v1462 = vmax.f32 %v1389, 0.0
    %v1463 = vmax.f32 %v1458, 0.0
    %v1464 = vld [vmem:[#allocation4 + $0x610] sm:$0xff]
    %v1465 = vld [vmem:[#allocation4 + $0x618] sm:$0xff]
    %v1466 = vld [vmem:[#allocation4 + $0x620] sm:$0xff]
    %v1467 = vld [vmem:[#allocation4 + $0x628] sm:$0xff]
    %v1468 = vld [vmem:[#allocation4 + $0x630] sm:$0xff]
    %v1469 = vld [vmem:[#allocation4 + $0x638] sm:$0xff]
    %v1470 = vld [vmem:[#allocation4 + $0x640] sm:$0xff]
    %v1471 = vld [vmem:[#allocation4 + $0x648] sm:$0xff]
    %v1472 = vld [vmem:[#allocation4 + $0x650] sm:$0xff]
    %v1473 = vld [vmem:[#allocation4 + $0x658] sm:$0xff]
    %v1474 = vld [vmem:[#allocation4 + $0x660] sm:$0xff]
    %v1475 = vld [vmem:[#allocation4 + $0x668] sm:$0xff]
    %v1476 = vld [vmem:[#allocation4 + $0x670] sm:$0xff]
    %v1477 = vld [vmem:[#allocation4 + $0x678] sm:$0xff]
    %v1478 = vld [vmem:[#allocation4 + $0x680] sm:$0xff]
    %v1479 = vld [vmem:[#allocation4 + $0x688] sm:$0xff]
    %v1480 = vld [vmem:[#allocation4 + $0x690] sm:$0xff]
    %v1481 = vld [vmem:[#allocation4 + $0x698] sm:$0xff]
    %v1482 = vld [vmem:[#allocation4 + $0x6a0] sm:$0xff]
    %v1483 = vld [vmem:[#allocation4 + $0x6a8] sm:$0xff]
    %v1484 = vld [vmem:[#allocation4 + $0x6b0] sm:$0xff]
    %v1485 = vld [vmem:[#allocation4 + $0x6b8] sm:$0xff]
    %v1486 = vld [vmem:[#allocation4 + $0x6c0] sm:$0xff]
    %v1487 = vld [vmem:[#allocation4 + $0x6c8] sm:$0xff]
    %v1488 = vld [vmem:[#allocation4 + $0x6d0] sm:$0xff]
    %v1489 = vld [vmem:[#allocation4 + $0x6d8] sm:$0xff]
    %v1490 = vld [vmem:[#allocation4 + $0x6e0] sm:$0xff]
    %v1491 = vld [vmem:[#allocation4 + $0x6e8] sm:$0xff]
    %v1492 = vld [vmem:[#allocation4 + $0x6f0] sm:$0xff]
    %v1493 = vld [vmem:[#allocation4 + $0x6f8] sm:$0xff]
    %v1494 = vld [vmem:[#allocation4 + $0x700] sm:$0xff]
    %v1495 = vld [vmem:[#allocation4 + $0x708] sm:$0xff]
    %v1496 = vld [vmem:[#allocation4 + $0x710] sm:$0xff]
    %v1497 = vld [vmem:[#allocation4 + $0x718] sm:$0xff]
    %v1498 = vld [vmem:[#allocation4 + $0x720] sm:$0xff]
    %v1499 = vld [vmem:[#allocation4 + $0x728] sm:$0xff]
    %v1500 = vld [vmem:[#allocation4 + $0x730] sm:$0xff]
    %v1501 = vld [vmem:[#allocation4 + $0x738] sm:$0xff]
    %v1502 = vld [vmem:[#allocation4 + $0x740] sm:$0xff]
    %v1503 = vld [vmem:[#allocation4 + $0x748] sm:$0xff]
    %v1504 = vld [vmem:[#allocation4 + $0x750] sm:$0xff]
    %v1505 = vld [vmem:[#allocation4 + $0x758] sm:$0xff]
    %v1506 = vld [vmem:[#allocation4 + $0x760] sm:$0xff]
    %v1507 = vld [vmem:[#allocation4 + $0x768] sm:$0xff]
    %v1508 = vld [vmem:[#allocation4 + $0x770] sm:$0xff]
    %v1509 = vld [vmem:[#allocation4 + $0x778] sm:$0xff]
    %v1510 = vld [vmem:[#allocation4 + $0x780] sm:$0xff]
    %v1511 = vld [vmem:[#allocation4 + $0x788] sm:$0xff]
    %v1512 = vld [vmem:[#allocation4 + $0x790] sm:$0xff]
    %v1513 = vld [vmem:[#allocation4 + $0x798] sm:$0xff]
    %v1514 = vld [vmem:[#allocation4 + $0x7a0] sm:$0xff]
    %v1515 = vld [vmem:[#allocation4 + $0x7a8] sm:$0xff]
    %v1516 = vld [vmem:[#allocation4 + $0x7b0] sm:$0xff]
    %v1517 = vld [vmem:[#allocation4 + $0x7b8] sm:$0xff]
    %v1518 = vld [vmem:[#allocation4 + $0x7c0] sm:$0xff]
    %v1519 = vld [vmem:[#allocation4 + $0x7c8] sm:$0xff]
    %v1520 = vld [vmem:[#allocation4 + $0x7d0] sm:$0xff]
    %v1521 = vld [vmem:[#allocation4 + $0x7d8] sm:$0xff]
    %v1522 = vld [vmem:[#allocation4 + $0x7e0] sm:$0xff]
    %v1523 = vld [vmem:[#allocation4 + $0x7e8] sm:$0xff]
    %v1524 = vld [vmem:[#allocation4 + $0x7f0] sm:$0xff]
    %v1525 = vld [vmem:[#allocation4 + $0x7f8] sm:$0xff]
    %v1526 = vld [vmem:[#allocation4 + $0x800] sm:$0xff]
    %v1527 = vld [vmem:[#allocation4 + $0x808] sm:$0xff]
    %v1528 = vld [vmem:[#allocation4 + $0x810] sm:$0xff]
    %v1529 = vld [vmem:[#allocation4 + $0x818] sm:$0xff]
    %v1530 = vld [vmem:[#allocation4 + $0x820] sm:$0xff]
    %v1531 = vld [vmem:[#allocation4 + $0x828] sm:$0xff]
    %v1532 = vld [vmem:[#allocation4 + $0x830] sm:$0xff]
    %v1533 = vld [vmem:[#allocation4 + $0x838] sm:$0xff]
    %v1534 = vld [vmem:[#allocation4 + $0x840] sm:$0xff]
    %v1535 = vld [vmem:[#allocation4 + $0x848] sm:$0xff]
    %v1536 = vld [vmem:[#allocation4 + $0x850] sm:$0xff]
    %v1537 = vld [vmem:[#allocation4 + $0x858] sm:$0xff]
    %v1538 = vld [vmem:[#allocation4 + $0x860] sm:$0xff]
    %v1539 = vld [vmem:[#allocation4 + $0x868] sm:$0xff]
    %v1540 = vld [vmem:[#allocation4 + $0x870] sm:$0xff]
    %v1541 = vld [vmem:[#allocation4 + $0x878] sm:$0xff]
    %v1542 = vld [vmem:[#allocation4 + $0x880] sm:$0xff]
    %v1543 = vld [vmem:[#allocation4 + $0x888] sm:$0xff]
    %v1544 = vld [vmem:[#allocation4 + $0x890] sm:$0xff]
    %v1545 = vld [vmem:[#allocation4 + $0x898] sm:$0xff]
    %v1546 = vld [vmem:[#allocation4 + $0x8a0] sm:$0xff]
    %v1547 = vld [vmem:[#allocation4 + $0x8a8] sm:$0xff]
    %v1548 = vld [vmem:[#allocation4 + $0x8b0] sm:$0xff]
    %v1549 = vld [vmem:[#allocation4 + $0x8b8] sm:$0xff]
    %v1550 = vld [vmem:[#allocation4 + $0x8c0] sm:$0xff]
    %v1551 = vld [vmem:[#allocation4 + $0x8c8] sm:$0xff]
    %v1552 = vld [vmem:[#allocation4 + $0x8d0] sm:$0xff]
    %v1553 = vld [vmem:[#allocation4 + $0x8d8] sm:$0xff]
    %v1554 = vld [vmem:[#allocation4 + $0x8e0] sm:$0xff]
    %v1555 = vld [vmem:[#allocation4 + $0x8e8] sm:$0xff]
    %v1556 = vld [vmem:[#allocation4 + $0x8f0] sm:$0xff]
    %v1557 = vld [vmem:[#allocation4 + $0x8f8] sm:$0xff]
    %v1558 = vld [vmem:[#allocation4 + $0x900] sm:$0xff]
    %v1559 = vld [vmem:[#allocation4 + $0x908] sm:$0xff]
    %v1560 = vld [vmem:[#allocation4 + $0x910] sm:$0xff]
    %v1561 = vld [vmem:[#allocation4 + $0x918] sm:$0xff]
    %v1562 = vld [vmem:[#allocation4 + $0x920] sm:$0xff]
    %v1563 = vld [vmem:[#allocation4 + $0x928] sm:$0xff]
    %v1564 = vld [vmem:[#allocation4 + $0x930] sm:$0xff]
    %v1565 = vld [vmem:[#allocation4 + $0x938] sm:$0xff]
    %v1566 = vld [vmem:[#allocation4 + $0x940] sm:$0xff]
    %v1567 = vld [vmem:[#allocation4 + $0x948] sm:$0xff]
    %v1568 = vld [vmem:[#allocation4 + $0x950] sm:$0xff]
    %v1569 = vld [vmem:[#allocation4 + $0x958] sm:$0xff]
    %v1570 = vld [vmem:[#allocation4 + $0x960] sm:$0xff]
    %v1571 = vld [vmem:[#allocation4 + $0x968] sm:$0xff]
    %v1572 = vld [vmem:[#allocation4 + $0x970] sm:$0xff]
    %v1573 = vld [vmem:[#allocation4 + $0x978] sm:$0xff]
    %v1574 = vld [vmem:[#allocation4 + $0x980] sm:$0xff]
    %v1575 = vld [vmem:[#allocation4 + $0x988] sm:$0xff]
    %v1576 = vld [vmem:[#allocation4 + $0x990] sm:$0xff]
    %v1577 = vld [vmem:[#allocation4 + $0x998] sm:$0xff]
    %v1578 = vld [vmem:[#allocation4 + $0x9a0] sm:$0xff]
    %v1579 = vld [vmem:[#allocation4 + $0x9a8] sm:$0xff]
    %v1580 = vld [vmem:[#allocation4 + $0x9b0] sm:$0xff]
    %v1581 = vld [vmem:[#allocation4 + $0x9b8] sm:$0xff]
    %v1582 = vld [vmem:[#allocation4 + $0x9c0] sm:$0xff]
    %v1583 = vld [vmem:[#allocation4 + $0x9c8] sm:$0xff]
    %v1584 = vld [vmem:[#allocation4 + $0x9d0] sm:$0xff]
    %v1585 = vld [vmem:[#allocation4 + $0x9d8] sm:$0xff]
    %v1586 = vld [vmem:[#allocation4 + $0x9e0] sm:$0xff]
    %v1587 = vld [vmem:[#allocation4 + $0x9e8] sm:$0xff]
    %v1588 = vld [vmem:[#allocation4 + $0x9f0] sm:$0xff]
    %v1589 = vld [vmem:[#allocation4 + $0x9f8] sm:$0xff]
    %v1590 = vld [vmem:[#allocation4 + $0xa00] sm:$0xff]
    %v1591 = vld [vmem:[#allocation4 + $0xa08] sm:$0xff]
    %v1592 = vld [vmem:[#allocation4 + $0xa10] sm:$0xff]
    %v1593 = vld [vmem:[#allocation4 + $0xa18] sm:$0xff]
    %v1594 = vld [vmem:[#allocation4 + $0xa20] sm:$0xff]
    %v1595 = vld [vmem:[#allocation4 + $0xa28] sm:$0xff]
    %v1596 = vld [vmem:[#allocation4 + $0xa30] sm:$0xff]
    %v1597 = vld [vmem:[#allocation4 + $0xa38] sm:$0xff]
    %v1598 = vld [vmem:[#allocation4 + $0xa40] sm:$0xff]
    %v1599 = vld [vmem:[#allocation4 + $0xa48] sm:$0xff]
    %v1600 = vld [vmem:[#allocation4 + $0xa50] sm:$0xff]
    %v1601 = vld [vmem:[#allocation4 + $0xa58] sm:$0xff]
    %v1602 = vld [vmem:[#allocation4 + $0xa60] sm:$0xff]
    %v1603 = vld [vmem:[#allocation4 + $0xa68] sm:$0xff]
    %v1604 = vld [vmem:[#allocation4 + $0xa70] sm:$0xff]
    %v1605 = vld [vmem:[#allocation4 + $0xa78] sm:$0xff]
    %v1606 = vld [vmem:[#allocation4 + $0xa80] sm:$0xff]
    %v1607 = vld [vmem:[#allocation4 + $0xa88] sm:$0xff]
    %v1608 = vld [vmem:[#allocation4 + $0xa90] sm:$0xff]
    %v1609 = vld [vmem:[#allocation4 + $0xa98] sm:$0xff]
    %v1610 = vld [vmem:[#allocation4 + $0xaa0] sm:$0xff]
    %v1611 = vld [vmem:[#allocation4 + $0xaa8] sm:$0xff]
    %v1612 = vld [vmem:[#allocation4 + $0xab0] sm:$0xff]
    %v1613 = vld [vmem:[#allocation4 + $0xab8] sm:$0xff]
    %v1614 = vld [vmem:[#allocation4 + $0xac0] sm:$0xff]
    %v1615 = vld [vmem:[#allocation4 + $0xac8] sm:$0xff]
    %v1616 = vld [vmem:[#allocation4 + $0xad0] sm:$0xff]
    %v1617 = vld [vmem:[#allocation4 + $0xad8] sm:$0xff]
    %v1618 = vld [vmem:[#allocation4 + $0xae0] sm:$0xff]
    %v1619 = vld [vmem:[#allocation4 + $0xae8] sm:$0xff]
    %v1620 = vld [vmem:[#allocation4 + $0xaf0] sm:$0xff]
    %v1621 = vld [vmem:[#allocation4 + $0xaf8] sm:$0xff]
    %v1622 = vld [vmem:[#allocation4 + $0xb00] sm:$0xff]
    %v1623 = vld [vmem:[#allocation4 + $0xb08] sm:$0xff]
    %v1624 = vld [vmem:[#allocation4 + $0xb10] sm:$0xff]
    %v1625 = vld [vmem:[#allocation4 + $0xb18] sm:$0xff]
    %v1626 = vld [vmem:[#allocation4 + $0xb20] sm:$0xff]
    %v1627 = vld [vmem:[#allocation4 + $0xb28] sm:$0xff]
    %v1628 = vld [vmem:[#allocation4 + $0xb30] sm:$0xff]
    %v1629 = vld [vmem:[#allocation4 + $0xb38] sm:$0xff]
    %v1630 = vld [vmem:[#allocation4 + $0xb40] sm:$0xff]
    %v1631 = vld [vmem:[#allocation4 + $0xb48] sm:$0xff]
    %v1632 = vld [vmem:[#allocation4 + $0xb50] sm:$0xff]
    %v1633 = vld [vmem:[#allocation4 + $0xb58] sm:$0xff]
    %v1634 = vld [vmem:[#allocation4 + $0xb60] sm:$0xff]
    %v1635 = vld [vmem:[#allocation4 + $0xb68] sm:$0xff]
    %v1636 = vld [vmem:[#allocation4 + $0xb70] sm:$0xff]
    %v1637 = vld [vmem:[#allocation4 + $0xb78] sm:$0xff]
    %v1638 = vld [vmem:[#allocation4 + $0xb80] sm:$0xff]
    %v1639 = vld [vmem:[#allocation4 + $0xb88] sm:$0xff]
    %v1640 = vld [vmem:[#allocation4 + $0xb90] sm:$0xff]
    %v1641 = vld [vmem:[#allocation4 + $0xb98] sm:$0xff]
    %v1642 = vld [vmem:[#allocation4 + $0xba0] sm:$0xff]
    %v1643 = vld [vmem:[#allocation4 + $0xba8] sm:$0xff]
    %v1644 = vld [vmem:[#allocation4 + $0xbb0] sm:$0xff]
    %v1645 = vld [vmem:[#allocation4 + $0xbb8] sm:$0xff]
    %v1646 = vld [vmem:[#allocation4 + $0xbc0] sm:$0xff]
    %v1647 = vld [vmem:[#allocation4 + $0xbc8] sm:$0xff]
    %v1648 = vld [vmem:[#allocation4 + $0xbd0] sm:$0xff]
    %v1649 = vld [vmem:[#allocation4 + $0xbd8] sm:$0xff]
    %v1650 = vld [vmem:[#allocation4 + $0xbe0] sm:$0xff]
    %v1651 = vld [vmem:[#allocation4 + $0xbe8] sm:$0xff]
    %v1652 = vld [vmem:[#allocation4 + $0xbf0] sm:$0xff]
    %v1653 = vld [vmem:[#allocation4 + $0xbf8] sm:$0xff]
    %v1654 = vld [vmem:[#allocation4 + $0xc00] sm:$0xff]
    %v1655 = vld [vmem:[#allocation4 + $0xc08] sm:$0xff]
    %s1656 = scalar_lea.vmem [#allocation4], 3088
    %v1657 = vld [vmem:[%s1656] ss:$8 sm:$0x3]
    %v1658 = vld [vmem:[%s3 + $0x10] sm:$0xff]
    %v1660 = vsel %vm690, %v1658, 0
    %1662 = vmatprep.subr.mxu0 %v1462
    %1663 = vmatpush1.msra.mxu0 %v1461
    %1664 = vmatprep.subr.mxu0 0.0
    %1665 = vmatpush1.msra.mxu0 0.0
    %1666 = vmatprep.subr.mxu0 0.0
    %1667 = vmatpush1.msra.mxu0 0.0
    %1668 = vmatprep.subr.mxu0 0.0
    %1669 = vmatpush1.msra.mxu0 0.0
    %1670 = vmatprep.subr.mxu0 0.0
    %1671 = vmatpush1.msra.mxu0 0.0
    %1672 = vmatprep.subr.mxu0 0.0
    %1673 = vmatpush1.msra.mxu0 0.0
    %1674 = vmatprep.subr.mxu0 0.0
    %1675 = vmatpush1.msra.mxu0 0.0
    %1676 = vmatprep.subr.mxu0 0.0
    %1677 = vmatpush1.msra.mxu0 0.0
    %1678 = vmatprep.subr.mxu0 0.0
    %1679 = vmatpush1.msra.mxu0 0.0
    %1680 = vmatprep.subr.mxu0 0.0
    %1681 = vmatpush1.msra.mxu0 0.0
    %1682 = vmatprep.subr.mxu0 0.0
    %1683 = vmatpush1.msra.mxu0 0.0
    %1684 = vmatprep.subr.mxu0 0.0
    %1685 = vmatpush1.msra.mxu0 0.0
    %1686 = vmatprep.subr.mxu0 0.0
    %1687 = vmatpush1.msra.mxu0 0.0
    %1688 = vmatprep.subr.mxu0 0.0
    %1689 = vmatpush1.msra.mxu0 0.0
    %1690 = vmatprep.subr.mxu0 0.0
    %1691 = vmatpush1.msra.mxu0 0.0
    %1692 = vmatprep.subr.mxu0 0.0
    %1693 = vmatpush1.msra.mxu0 0.0
    %1694 = vmatprep.subr.mxu0 0.0
    %1695 = vmatpush1.msra.mxu0 0.0
    %1696 = vmatprep.subr.mxu0 0.0
    %1697 = vmatpush1.msra.mxu0 0.0
    %1698 = vmatprep.subr.mxu0 0.0
    %1699 = vmatpush1.msra.mxu0 0.0
    %1700 = vmatprep.subr.mxu0 0.0
    %1701 = vmatpush1.msra.mxu0 0.0
    %1702 = vmatprep.subr.mxu0 0.0
    %1703 = vmatpush1.msra.mxu0 0.0
    %1704 = vmatprep.subr.mxu0 0.0
    %1705 = vmatpush1.msra.mxu0 0.0
    %1706 = vmatprep.subr.mxu0 0.0
    %1707 = vmatpush1.msra.mxu0 0.0
    %1708 = vmatprep.subr.mxu0 0.0
    %1709 = vmatpush1.msra.mxu0 0.0
    %1710 = vmatprep.subr.mxu0 0.0
    %1711 = vmatpush1.msra.mxu0 0.0
    %1712 = vmatprep.subr.mxu0 0.0
    %1713 = vmatpush1.msra.mxu0 0.0
    %1714 = vmatprep.subr.mxu0 0.0
    %1715 = vmatpush1.msra.mxu0 0.0
    %1716 = vmatprep.subr.mxu0 0.0
    %1717 = vmatpush1.msra.mxu0 0.0
    %1718 = vmatprep.subr.mxu0 0.0
    %1719 = vmatpush1.msra.mxu0 0.0
    %1720 = vmatprep.subr.mxu0 0.0
    %1721 = vmatpush1.msra.mxu0 0.0
    %1722 = vmatprep.subr.mxu0 0.0
    %1723 = vmatpush1.msra.mxu0 0.0
    %1724 = vmatprep.subr.mxu0 0.0
    %1725 = vmatpush1.msra.mxu0 0.0
    %1726 = vmatprep.mubr.f32.mxu0 0.0
    %1727 = vmatmul.mubr.f32.gmra.mrb[0].mxu0 %v1660
    %v1728 = vpop.f32.mrb[0].mxu0
    %v1729 = vadd.f32 0.0, %v1728
    %v1730 = vpop.f32.mrb[0].mxu0
    %v1731 = vadd.f32 0.0, %v1730
    %1732 = vdwg.mxu0
    %1733 = vmatprep.subr.mxu0 0.0
    %1734 = vmatpush1.msra.mxu0 %v1463
    %1735 = vmatprep.subr.mxu0 0.0
    %1736 = vmatpush1.msra.mxu0 0.0
    %1737 = vmatprep.subr.mxu0 0.0
    %1738 = vmatpush1.msra.mxu0 0.0
    %1739 = vmatprep.subr.mxu0 0.0
    %1740 = vmatpush1.msra.mxu0 0.0
    %1741 = vmatprep.subr.mxu0 0.0
    %1742 = vmatpush1.msra.mxu0 0.0
    %1743 = vmatprep.subr.mxu0 0.0
    %1744 = vmatpush1.msra.mxu0 0.0
    %1745 = vmatprep.subr.mxu0 0.0
    %1746 = vmatpush1.msra.mxu0 0.0
    %1747 = vmatprep.subr.mxu0 0.0
    %1748 = vmatpush1.msra.mxu0 0.0
    %1749 = vmatprep.subr.mxu0 0.0
    %1750 = vmatpush1.msra.mxu0 0.0
    %1751 = vmatprep.subr.mxu0 0.0
    %1752 = vmatpush1.msra.mxu0 0.0
    %1753 = vmatprep.subr.mxu0 0.0
    %1754 = vmatpush1.msra.mxu0 0.0
    %1755 = vmatprep.subr.mxu0 0.0
    %1756 = vmatpush1.msra.mxu0 0.0
    %1757 = vmatprep.subr.mxu0 0.0
    %1758 = vmatpush1.msra.mxu0 0.0
    %1759 = vmatprep.subr.mxu0 0.0
    %1760 = vmatpush1.msra.mxu0 0.0
    %1761 = vmatprep.subr.mxu0 0.0
    %1762 = vmatpush1.msra.mxu0 0.0
    %1763 = vmatprep.subr.mxu0 0.0
    %1764 = vmatpush1.msra.mxu0 0.0
    %1765 = vmatprep.subr.mxu0 0.0
    %1766 = vmatpush1.msra.mxu0 0.0
    %1767 = vmatprep.subr.mxu0 0.0
    %1768 = vmatpush1.msra.mxu0 0.0
    %1769 = vmatprep.subr.mxu0 0.0
    %1770 = vmatpush1.msra.mxu0 0.0
    %1771 = vmatprep.subr.mxu0 0.0
    %1772 = vmatpush1.msra.mxu0 0.0
    %1773 = vmatprep.subr.mxu0 0.0
    %1774 = vmatpush1.msra.mxu0 0.0
    %1775 = vmatprep.subr.mxu0 0.0
    %1776 = vmatpush1.msra.mxu0 0.0
    %1777 = vmatprep.subr.mxu0 0.0
    %1778 = vmatpush1.msra.mxu0 0.0
    %1779 = vmatprep.subr.mxu0 0.0
    %1780 = vmatpush1.msra.mxu0 0.0
    %1781 = vmatprep.subr.mxu0 0.0
    %1782 = vmatpush1.msra.mxu0 0.0
    %1783 = vmatprep.subr.mxu0 0.0
    %1784 = vmatpush1.msra.mxu0 0.0
    %1785 = vmatprep.subr.mxu0 0.0
    %1786 = vmatpush1.msra.mxu0 0.0
    %1787 = vmatprep.subr.mxu0 0.0
    %1788 = vmatpush1.msra.mxu0 0.0
    %1789 = vmatprep.subr.mxu0 0.0
    %1790 = vmatpush1.msra.mxu0 0.0
    %1791 = vmatprep.subr.mxu0 0.0
    %1792 = vmatpush1.msra.mxu0 0.0
    %1793 = vmatprep.subr.mxu0 0.0
    %1794 = vmatpush1.msra.mxu0 0.0
    %1795 = vmatprep.subr.mxu0 0.0
    %1796 = vmatpush1.msra.mxu0 0.0
    %1797 = vmatprep.mubr.f32.mxu0 0.0
    %1798 = vmatmul.mubr.f32.gmra.mrb[0].mxu0 %v1660
    %v1799 = vpop.f32.mrb[0].mxu0
    %v1800 = vadd.f32 0.0, %v1799
    %v1801 = vpop.f32.mrb[0].mxu0
    %1802 = vdwg.mxu0
    %v1803 = vld [vmem:[%s3 + $0x18] sm:$0xff]
    %v1805 = vsel %vm690, %v1803, 0
    %1807 = vmatprep.subr.mxu0 %v1462
    %1808 = vmatpush1.msra.mxu0 %v1461
    %1809 = vmatprep.subr.mxu0 0.0
    %1810 = vmatpush1.msra.mxu0 0.0
    %1811 = vmatprep.subr.mxu0 0.0
    %1812 = vmatpush1.msra.mxu0 0.0
    %1813 = vmatprep.subr.mxu0 0.0
    %1814 = vmatpush1.msra.mxu0 0.0
    %1815 = vmatprep.subr.mxu0 0.0
    %1816 = vmatpush1.msra.mxu0 0.0
    %1817 = vmatprep.subr.mxu0 0.0
    %1818 = vmatpush1.msra.mxu0 0.0
    %1819 = vmatprep.subr.mxu0 0.0
    %1820 = vmatpush1.msra.mxu0 0.0
    %1821 = vmatprep.subr.mxu0 0.0
    %1822 = vmatpush1.msra.mxu0 0.0
    %1823 = vmatprep.subr.mxu0 0.0
    %1824 = vmatpush1.msra.mxu0 0.0
    %1825 = vmatprep.subr.mxu0 0.0
    %1826 = vmatpush1.msra.mxu0 0.0
    %1827 = vmatprep.subr.mxu0 0.0
    %1828 = vmatpush1.msra.mxu0 0.0
    %1829 = vmatprep.subr.mxu0 0.0
    %1830 = vmatpush1.msra.mxu0 0.0
    %1831 = vmatprep.subr.mxu0 0.0
    %1832 = vmatpush1.msra.mxu0 0.0
    %1833 = vmatprep.subr.mxu0 0.0
    %1834 = vmatpush1.msra.mxu0 0.0
    %1835 = vmatprep.subr.mxu0 0.0
    %1836 = vmatpush1.msra.mxu0 0.0
    %1837 = vmatprep.subr.mxu0 0.0
    %1838 = vmatpush1.msra.mxu0 0.0
    %1839 = vmatprep.subr.mxu0 0.0
    %1840 = vmatpush1.msra.mxu0 0.0
    %1841 = vmatprep.subr.mxu0 0.0
    %1842 = vmatpush1.msra.mxu0 0.0
    %1843 = vmatprep.subr.mxu0 0.0
    %1844 = vmatpush1.msra.mxu0 0.0
    %1845 = vmatprep.subr.mxu0 0.0
    %1846 = vmatpush1.msra.mxu0 0.0
    %1847 = vmatprep.subr.mxu0 0.0
    %1848 = vmatpush1.msra.mxu0 0.0
    %1849 = vmatprep.subr.mxu0 0.0
    %1850 = vmatpush1.msra.mxu0 0.0
    %1851 = vmatprep.subr.mxu0 0.0
    %1852 = vmatpush1.msra.mxu0 0.0
    %1853 = vmatprep.subr.mxu0 0.0
    %1854 = vmatpush1.msra.mxu0 0.0
    %1855 = vmatprep.subr.mxu0 0.0
    %1856 = vmatpush1.msra.mxu0 0.0
    %1857 = vmatprep.subr.mxu0 0.0
    %1858 = vmatpush1.msra.mxu0 0.0
    %1859 = vmatprep.subr.mxu0 0.0
    %1860 = vmatpush1.msra.mxu0 0.0
    %1861 = vmatprep.subr.mxu0 0.0
    %1862 = vmatpush1.msra.mxu0 0.0
    %1863 = vmatprep.subr.mxu0 0.0
    %1864 = vmatpush1.msra.mxu0 0.0
    %1865 = vmatprep.subr.mxu0 0.0
    %1866 = vmatpush1.msra.mxu0 0.0
    %1867 = vmatprep.subr.mxu0 0.0
    %1868 = vmatpush1.msra.mxu0 0.0
    %1869 = vmatprep.subr.mxu0 0.0
    %1870 = vmatpush1.msra.mxu0 0.0
    %1871 = vmatprep.mubr.f32.mxu0 0.0
    %1872 = vmatmul.mubr.f32.gmra.mrb[0].mxu0 %v1805
    %v1873 = vpop.f32.mrb[0].mxu0
    %v1874 = vadd.f32 0.0, %v1873
    %v1875 = vpop.f32.mrb[0].mxu0
    %v1876 = vadd.f32 0.0, %v1875
    %1877 = vdwg.mxu0
    %1878 = vmatprep.subr.mxu0 0.0
    %1879 = vmatpush1.msra.mxu0 %v1463
    %1880 = vmatprep.subr.mxu0 0.0
    %1881 = vmatpush1.msra.mxu0 0.0
    %1882 = vmatprep.subr.mxu0 0.0
    %1883 = vmatpush1.msra.mxu0 0.0
    %1884 = vmatprep.subr.mxu0 0.0
    %1885 = vmatpush1.msra.mxu0 0.0
    %1886 = vmatprep.subr.mxu0 0.0
    %1887 = vmatpush1.msra.mxu0 0.0
    %1888 = vmatprep.subr.mxu0 0.0
    %1889 = vmatpush1.msra.mxu0 0.0
    %1890 = vmatprep.subr.mxu0 0.0
    %1891 = vmatpush1.msra.mxu0 0.0
    %1892 = vmatprep.subr.mxu0 0.0
    %1893 = vmatpush1.msra.mxu0 0.0
    %1894 = vmatprep.subr.mxu0 0.0
    %1895 = vmatpush1.msra.mxu0 0.0
    %1896 = vmatprep.subr.mxu0 0.0
    %1897 = vmatpush1.msra.mxu0 0.0
    %1898 = vmatprep.subr.mxu0 0.0
    %1899 = vmatpush1.msra.mxu0 0.0
    %1900 = vmatprep.subr.mxu0 0.0
    %1901 = vmatpush1.msra.mxu0 0.0
    %1902 = vmatprep.subr.mxu0 0.0
    %1903 = vmatpush1.msra.mxu0 0.0
    %1904 = vmatprep.subr.mxu0 0.0
    %1905 = vmatpush1.msra.mxu0 0.0
    %1906 = vmatprep.subr.mxu0 0.0
    %1907 = vmatpush1.msra.mxu0 0.0
    %1908 = vmatprep.subr.mxu0 0.0
    %1909 = vmatpush1.msra.mxu0 0.0
    %1910 = vmatprep.subr.mxu0 0.0
    %1911 = vmatpush1.msra.mxu0 0.0
    %1912 = vmatprep.subr.mxu0 0.0
    %1913 = vmatpush1.msra.mxu0 0.0
    %1914 = vmatprep.subr.mxu0 0.0
    %1915 = vmatpush1.msra.mxu0 0.0
    %1916 = vmatprep.subr.mxu0 0.0
    %1917 = vmatpush1.msra.mxu0 0.0
    %1918 = vmatprep.subr.mxu0 0.0
    %1919 = vmatpush1.msra.mxu0 0.0
    %1920 = vmatprep.subr.mxu0 0.0
    %1921 = vmatpush1.msra.mxu0 0.0
    %1922 = vmatprep.subr.mxu0 0.0
    %1923 = vmatpush1.msra.mxu0 0.0
    %1924 = vmatprep.subr.mxu0 0.0
    %1925 = vmatpush1.msra.mxu0 0.0
    %1926 = vmatprep.subr.mxu0 0.0
    %1927 = vmatpush1.msra.mxu0 0.0
    %1928 = vmatprep.subr.mxu0 0.0
    %1929 = vmatpush1.msra.mxu0 0.0
    %1930 = vmatprep.subr.mxu0 0.0
    %1931 = vmatpush1.msra.mxu0 0.0
    %1932 = vmatprep.subr.mxu0 0.0
    %1933 = vmatpush1.msra.mxu0 0.0
    %1934 = vmatprep.subr.mxu0 0.0
    %1935 = vmatpush1.msra.mxu0 0.0
    %1936 = vmatprep.subr.mxu0 0.0
    %1937 = vmatpush1.msra.mxu0 0.0
    %1938 = vmatprep.subr.mxu0 0.0
    %1939 = vmatpush1.msra.mxu0 0.0
    %1940 = vmatprep.subr.mxu0 0.0
    %1941 = vmatpush1.msra.mxu0 0.0
    %1942 = vmatprep.mubr.f32.mxu0 0.0
    %1943 = vmatmul.mubr.f32.gmra.mrb[0].mxu0 %v1805
    %v1944 = vpop.f32.mrb[0].mxu0
    %v1945 = vadd.f32 0.0, %v1944
    %v1946 = vpop.f32.mrb[0].mxu0
    %1947 = vdwg.mxu0
    %v1949 = vlaneseq
    %v1950 = vshrl.u32 %v1949, 7
    %v1951 = vsub.s32 0, %v1950
    %v1952 = vrot.slane %v1657, %v1951
    %v1953 = vlaneseq
    %v1954 = vshrl.u32 %v1953, 7
    %v1955 = vsub.s32 1, %v1954
    %v1956 = vrot.slane %v1657, %v1955
    %1959 = vmatprep.subr.mxu0 %v1465
    %1960 = vmatpush1.msra.mxu0 %v1464
    %1961 = vmatprep.subr.mxu0 %v1467
    %1962 = vmatpush1.msra.mxu0 %v1466
    %1963 = vmatprep.subr.mxu0 %v1469
    %1964 = vmatpush1.msra.mxu0 %v1468
    %1965 = vmatprep.subr.mxu0 %v1471
    %1966 = vmatpush1.msra.mxu0 %v1470
    %1967 = vmatprep.subr.mxu0 %v1473
    %1968 = vmatpush1.msra.mxu0 %v1472
    %1969 = vmatprep.subr.mxu0 %v1475
    %1970 = vmatpush1.msra.mxu0 %v1474
    %1971 = vmatprep.subr.mxu0 %v1477
    %1972 = vmatpush1.msra.mxu0 %v1476
    %1973 = vmatprep.subr.mxu0 %v1479
    %1974 = vmatpush1.msra.mxu0 %v1478
    %1975 = vmatprep.subr.mxu0 %v1481
    %1976 = vmatpush1.msra.mxu0 %v1480
    %1977 = vmatprep.subr.mxu0 %v1483
    %1978 = vmatpush1.msra.mxu0 %v1482
    %1979 = vmatprep.subr.mxu0 %v1485
    %1980 = vmatpush1.msra.mxu0 %v1484
    %1981 = vmatprep.subr.mxu0 %v1487
    %1982 = vmatpush1.msra.mxu0 %v1486
    %1983 = vmatprep.subr.mxu0 %v1489
    %1984 = vmatpush1.msra.mxu0 %v1488
    %1985 = vmatprep.subr.mxu0 %v1491
    %1986 = vmatpush1.msra.mxu0 %v1490
    %1987 = vmatprep.subr.mxu0 %v1493
    %1988 = vmatpush1.msra.mxu0 %v1492
    %1989 = vmatprep.subr.mxu0 %v1495
    %1990 = vmatpush1.msra.mxu0 %v1494
    %1991 = vmatprep.subr.mxu0 %v1497
    %1992 = vmatpush1.msra.mxu0 %v1496
    %1993 = vmatprep.subr.mxu0 %v1499
    %1994 = vmatpush1.msra.mxu0 %v1498
    %1995 = vmatprep.subr.mxu0 %v1501
    %1996 = vmatpush1.msra.mxu0 %v1500
    %1997 = vmatprep.subr.mxu0 %v1503
    %1998 = vmatpush1.msra.mxu0 %v1502
    %1999 = vmatprep.subr.mxu0 %v1505
    %2000 = vmatpush1.msra.mxu0 %v1504
    %2001 = vmatprep.subr.mxu0 %v1507
    %2002 = vmatpush1.msra.mxu0 %v1506
    %2003 = vmatprep.subr.mxu0 %v1509
    %2004 = vmatpush1.msra.mxu0 %v1508
    %2005 = vmatprep.subr.mxu0 %v1511
    %2006 = vmatpush1.msra.mxu0 %v1510
    %2007 = vmatprep.subr.mxu0 %v1513
    %2008 = vmatpush1.msra.mxu0 %v1512
    %2009 = vmatprep.subr.mxu0 %v1515
    %2010 = vmatpush1.msra.mxu0 %v1514
    %2011 = vmatprep.subr.mxu0 %v1517
    %2012 = vmatpush1.msra.mxu0 %v1516
    %2013 = vmatprep.subr.mxu0 %v1519
    %2014 = vmatpush1.msra.mxu0 %v1518
    %2015 = vmatprep.subr.mxu0 %v1521
    %2016 = vmatpush1.msra.mxu0 %v1520
    %2017 = vmatprep.subr.mxu0 %v1523
    %2018 = vmatpush1.msra.mxu0 %v1522
    %2019 = vmatprep.subr.mxu0 %v1525
    %2020 = vmatpush1.msra.mxu0 %v1524
    %2021 = vmatprep.subr.mxu0 %v1527
    %2022 = vmatpush1.msra.mxu0 %v1526
    %2023 = vmatprep.mubr.f32.mxu0 %v1731
    %2024 = vmatmul.mubr.f32.gmra.mrb[0].mxu0 %v1729
    %v2025 = vpop.f32.mrb[0].mxu0
    %v2026 = vadd.f32 %v1952, %v2025
    %v2027 = vpop.f32.mrb[0].mxu0
    %v2028 = vadd.f32 %v1956, %v2027
    %2029 = vdwg.mxu0
    %2030 = vmatprep.subr.mxu0 %v1529
    %2031 = vmatpush1.msra.mxu0 %v1528
    %2032 = vmatprep.subr.mxu0 %v1531
    %2033 = vmatpush1.msra.mxu0 %v1530
    %2034 = vmatprep.subr.mxu0 %v1533
    %2035 = vmatpush1.msra.mxu0 %v1532
    %2036 = vmatprep.subr.mxu0 %v1535
    %2037 = vmatpush1.msra.mxu0 %v1534
    %2038 = vmatprep.subr.mxu0 %v1537
    %2039 = vmatpush1.msra.mxu0 %v1536
    %2040 = vmatprep.subr.mxu0 %v1539
    %2041 = vmatpush1.msra.mxu0 %v1538
    %2042 = vmatprep.subr.mxu0 %v1541
    %2043 = vmatpush1.msra.mxu0 %v1540
    %2044 = vmatprep.subr.mxu0 %v1543
    %2045 = vmatpush1.msra.mxu0 %v1542
    %2046 = vmatprep.subr.mxu0 %v1545
    %2047 = vmatpush1.msra.mxu0 %v1544
    %2048 = vmatprep.subr.mxu0 %v1547
    %2049 = vmatpush1.msra.mxu0 %v1546
    %2050 = vmatprep.subr.mxu0 %v1549
    %2051 = vmatpush1.msra.mxu0 %v1548
    %2052 = vmatprep.subr.mxu0 %v1551
    %2053 = vmatpush1.msra.mxu0 %v1550
    %2054 = vmatprep.subr.mxu0 %v1553
    %2055 = vmatpush1.msra.mxu0 %v1552
    %2056 = vmatprep.subr.mxu0 %v1555
    %2057 = vmatpush1.msra.mxu0 %v1554
    %2058 = vmatprep.subr.mxu0 %v1557
    %2059 = vmatpush1.msra.mxu0 %v1556
    %2060 = vmatprep.subr.mxu0 %v1559
    %2061 = vmatpush1.msra.mxu0 %v1558
    %2062 = vmatprep.subr.mxu0 %v1561
    %2063 = vmatpush1.msra.mxu0 %v1560
    %2064 = vmatprep.subr.mxu0 %v1563
    %2065 = vmatpush1.msra.mxu0 %v1562
    %2066 = vmatprep.subr.mxu0 %v1565
    %2067 = vmatpush1.msra.mxu0 %v1564
    %2068 = vmatprep.subr.mxu0 %v1567
    %2069 = vmatpush1.msra.mxu0 %v1566
    %2070 = vmatprep.subr.mxu0 %v1569
    %2071 = vmatpush1.msra.mxu0 %v1568
    %2072 = vmatprep.subr.mxu0 %v1571
    %2073 = vmatpush1.msra.mxu0 %v1570
    %2074 = vmatprep.subr.mxu0 %v1573
    %2075 = vmatpush1.msra.mxu0 %v1572
    %2076 = vmatprep.subr.mxu0 %v1575
    %2077 = vmatpush1.msra.mxu0 %v1574
    %2078 = vmatprep.subr.mxu0 %v1577
    %2079 = vmatpush1.msra.mxu0 %v1576
    %2080 = vmatprep.subr.mxu0 %v1579
    %2081 = vmatpush1.msra.mxu0 %v1578
    %2082 = vmatprep.subr.mxu0 %v1581
    %2083 = vmatpush1.msra.mxu0 %v1580
    %2084 = vmatprep.subr.mxu0 %v1583
    %2085 = vmatpush1.msra.mxu0 %v1582
    %2086 = vmatprep.subr.mxu0 %v1585
    %2087 = vmatpush1.msra.mxu0 %v1584
    %2088 = vmatprep.subr.mxu0 %v1587
    %2089 = vmatpush1.msra.mxu0 %v1586
    %2090 = vmatprep.subr.mxu0 %v1589
    %2091 = vmatpush1.msra.mxu0 %v1588
    %2092 = vmatprep.subr.mxu0 %v1591
    %2093 = vmatpush1.msra.mxu0 %v1590
    %2094 = vmatprep.mubr.f32.mxu0 %v1874
    %2095 = vmatmul.mubr.f32.gmra.mrb[0].mxu0 %v1800
    %v2096 = vpop.f32.mrb[0].mxu0
    %v2097 = vadd.f32 %v2026, %v2096
    %v2098 = vpop.f32.mrb[0].mxu0
    %v2099 = vadd.f32 %v2028, %v2098
    %2100 = vdwg.mxu0
    %2101 = vmatprep.subr.mxu0 %v1593
    %2102 = vmatpush1.msra.mxu0 %v1592
    %2103 = vmatprep.subr.mxu0 %v1595
    %2104 = vmatpush1.msra.mxu0 %v1594
    %2105 = vmatprep.subr.mxu0 %v1597
    %2106 = vmatpush1.msra.mxu0 %v1596
    %2107 = vmatprep.subr.mxu0 %v1599
    %2108 = vmatpush1.msra.mxu0 %v1598
    %2109 = vmatprep.subr.mxu0 %v1601
    %2110 = vmatpush1.msra.mxu0 %v1600
    %2111 = vmatprep.subr.mxu0 %v1603
    %2112 = vmatpush1.msra.mxu0 %v1602
    %2113 = vmatprep.subr.mxu0 %v1605
    %2114 = vmatpush1.msra.mxu0 %v1604
    %2115 = vmatprep.subr.mxu0 %v1607
    %2116 = vmatpush1.msra.mxu0 %v1606
    %2117 = vmatprep.subr.mxu0 %v1609
    %2118 = vmatpush1.msra.mxu0 %v1608
    %2119 = vmatprep.subr.mxu0 %v1611
    %2120 = vmatpush1.msra.mxu0 %v1610
    %2121 = vmatprep.subr.mxu0 %v1613
    %2122 = vmatpush1.msra.mxu0 %v1612
    %2123 = vmatprep.subr.mxu0 %v1615
    %2124 = vmatpush1.msra.mxu0 %v1614
    %2125 = vmatprep.subr.mxu0 %v1617
    %2126 = vmatpush1.msra.mxu0 %v1616
    %2127 = vmatprep.subr.mxu0 %v1619
    %2128 = vmatpush1.msra.mxu0 %v1618
    %2129 = vmatprep.subr.mxu0 %v1621
    %2130 = vmatpush1.msra.mxu0 %v1620
    %2131 = vmatprep.subr.mxu0 %v1623
    %2132 = vmatpush1.msra.mxu0 %v1622
    %2133 = vmatprep.subr.mxu0 %v1625
    %2134 = vmatpush1.msra.mxu0 %v1624
    %2135 = vmatprep.subr.mxu0 %v1627
    %2136 = vmatpush1.msra.mxu0 %v1626
    %2137 = vmatprep.subr.mxu0 %v1629
    %2138 = vmatpush1.msra.mxu0 %v1628
    %2139 = vmatprep.subr.mxu0 %v1631
    %2140 = vmatpush1.msra.mxu0 %v1630
    %2141 = vmatprep.subr.mxu0 %v1633
    %2142 = vmatpush1.msra.mxu0 %v1632
    %2143 = vmatprep.subr.mxu0 %v1635
    %2144 = vmatpush1.msra.mxu0 %v1634
    %2145 = vmatprep.subr.mxu0 %v1637
    %2146 = vmatpush1.msra.mxu0 %v1636
    %2147 = vmatprep.subr.mxu0 %v1639
    %2148 = vmatpush1.msra.mxu0 %v1638
    %2149 = vmatprep.subr.mxu0 %v1641
    %2150 = vmatpush1.msra.mxu0 %v1640
    %2151 = vmatprep.subr.mxu0 %v1643
    %2152 = vmatpush1.msra.mxu0 %v1642
    %2153 = vmatprep.subr.mxu0 %v1645
    %2154 = vmatpush1.msra.mxu0 %v1644
    %2155 = vmatprep.subr.mxu0 %v1647
    %2156 = vmatpush1.msra.mxu0 %v1646
    %2157 = vmatprep.subr.mxu0 %v1649
    %2158 = vmatpush1.msra.mxu0 %v1648
    %2159 = vmatprep.subr.mxu0 %v1651
    %2160 = vmatpush1.msra.mxu0 %v1650
    %2161 = vmatprep.subr.mxu0 %v1653
    %2162 = vmatpush1.msra.mxu0 %v1652
    %2163 = vmatprep.subr.mxu0 %v1655
    %2164 = vmatpush1.msra.mxu0 %v1654
    %2165 = vmatprep.mubr.f32.mxu0 %v1945
    %2166 = vmatmul.mubr.f32.gmra.mrb[0].mxu0 %v1876
    %v2167 = vpop.f32.mrb[0].mxu0
    %v2168 = vadd.f32 %v2097, %v2167
    %v2169 = vpop.f32.mrb[0].mxu0
    %v2170 = vadd.f32 %v2099, %v2169
    %2171 = vdwg.mxu0
    %v2172 = vmax.f32 %v2168, 0.0
    %v2173 = vmax.f32 %v2170, 0.0
    %v2174 = vld [vmem:[#allocation2 + $0x7b0] sm:$0xff]
    %v2175 = vld [vmem:[#allocation2 + $0x7b8] sm:$0xff]
    %v2176 = vld [vmem:[#allocation2 + $0x7c0] sm:$0xff]
    %v2177 = vld [vmem:[#allocation2 + $0x7c8] sm:$0xff]
    %v2178 = vld [vmem:[#allocation2 + $0x7d0] sm:$0xff]
    %v2179 = vld [vmem:[#allocation2 + $0x7d8] sm:$0xff]
    %v2180 = vld [vmem:[#allocation2 + $0x7e0] sm:$0xff]
    %v2181 = vld [vmem:[#allocation2 + $0x7e8] sm:$0xff]
    %v2182 = vld [vmem:[#allocation2 + $0x7f0] sm:$0xff]
    %v2183 = vld [vmem:[#allocation2 + $0x7f8] sm:$0xff]
    %v2184 = vld [vmem:[#allocation2 + $0x800] sm:$0xff]
    %v2185 = vld [vmem:[#allocation2 + $0x808] sm:$0xff]
    %v2186 = vld [vmem:[#allocation2 + $0x810] sm:$0xff]
    %v2187 = vld [vmem:[#allocation2 + $0x818] sm:$0xff]
    %v2188 = vld [vmem:[#allocation2 + $0x820] sm:$0xff]
    %v2189 = vld [vmem:[#allocation2 + $0x828] sm:$0xff]
    %v2190 = vld [vmem:[#allocation2 + $0x830] sm:$0xff]
    %v2191 = vld [vmem:[#allocation2 + $0x838] sm:$0xff]
    %v2192 = vld [vmem:[#allocation2 + $0x840] sm:$0xff]
    %v2193 = vld [vmem:[#allocation2 + $0x848] sm:$0xff]
    %v2194 = vld [vmem:[#allocation2 + $0x850] sm:$0xff]
    %v2195 = vld [vmem:[#allocation2 + $0x858] sm:$0xff]
    %v2196 = vld [vmem:[#allocation2 + $0x860] sm:$0xff]
    %v2197 = vld [vmem:[#allocation2 + $0x868] sm:$0xff]
    %v2198 = vld [vmem:[#allocation2 + $0x870] sm:$0xff]
    %v2199 = vld [vmem:[#allocation2 + $0x878] sm:$0xff]
    %v2200 = vld [vmem:[#allocation2 + $0x880] sm:$0xff]
    %v2201 = vld [vmem:[#allocation2 + $0x888] sm:$0xff]
    %v2202 = vld [vmem:[#allocation2 + $0x890] sm:$0xff]
    %v2203 = vld [vmem:[#allocation2 + $0x898] sm:$0xff]
    %v2204 = vld [vmem:[#allocation2 + $0x8a0] sm:$0xff]
    %v2205 = vld [vmem:[#allocation2 + $0x8a8] sm:$0xff]
    %v2206 = vld [vmem:[#allocation2 + $0x8b0] sm:$0xff]
    %v2207 = vld [vmem:[#allocation2 + $0x8b8] sm:$0xff]
    %v2208 = vld [vmem:[#allocation2 + $0x8c0] sm:$0xff]
    %v2209 = vld [vmem:[#allocation2 + $0x8c8] sm:$0xff]
    %v2210 = vld [vmem:[#allocation2 + $0x8d0] sm:$0xff]
    %v2211 = vld [vmem:[#allocation2 + $0x8d8] sm:$0xff]
    %v2212 = vld [vmem:[#allocation2 + $0x8e0] sm:$0xff]
    %v2213 = vld [vmem:[#allocation2 + $0x8e8] sm:$0xff]
    %v2214 = vld [vmem:[#allocation2 + $0x8f0] sm:$0xff]
    %v2215 = vld [vmem:[#allocation2 + $0x8f8] sm:$0xff]
    %v2216 = vld [vmem:[#allocation2 + $0x900] sm:$0xff]
    %v2217 = vld [vmem:[#allocation2 + $0x908] sm:$0xff]
    %v2218 = vld [vmem:[#allocation2 + $0x910] sm:$0xff]
    %v2219 = vld [vmem:[#allocation2 + $0x918] sm:$0xff]
    %v2220 = vld [vmem:[#allocation2 + $0x920] sm:$0xff]
    %v2221 = vld [vmem:[#allocation2 + $0x928] sm:$0xff]
    %v2222 = vld [vmem:[#allocation2 + $0x930] sm:$0xff]
    %v2223 = vld [vmem:[#allocation2 + $0x938] sm:$0xff]
    %v2224 = vld [vmem:[#allocation2 + $0x940] sm:$0xff]
    %v2225 = vld [vmem:[#allocation2 + $0x948] sm:$0xff]
    %v2226 = vld [vmem:[#allocation2 + $0x950] sm:$0xff]
    %v2227 = vld [vmem:[#allocation2 + $0x958] sm:$0xff]
    %v2228 = vld [vmem:[#allocation2 + $0x960] sm:$0xff]
    %v2229 = vld [vmem:[#allocation2 + $0x968] sm:$0xff]
    %v2230 = vld [vmem:[#allocation2 + $0x970] sm:$0xff]
    %v2231 = vld [vmem:[#allocation2 + $0x978] sm:$0xff]
    %v2232 = vld [vmem:[#allocation2 + $0x980] sm:$0xff]
    %v2233 = vld [vmem:[#allocation2 + $0x988] sm:$0xff]
    %v2234 = vld [vmem:[#allocation2 + $0x990] sm:$0xff]
    %v2235 = vld [vmem:[#allocation2 + $0x998] sm:$0xff]
    %v2236 = vld [vmem:[#allocation2 + $0x9a0] sm:$0xff]
    %v2237 = vld [vmem:[#allocation2 + $0x9a8] sm:$0xff]
    %v2238 = vld [vmem:[#allocation2 + $0x9b0] sm:$0xff]
    %v2239 = vld [vmem:[#allocation2 + $0x9b8] sm:$0xff]
    %v2240 = vld [vmem:[#allocation2 + $0x9c0] sm:$0xff]
    %v2241 = vld [vmem:[#allocation2 + $0x9c8] sm:$0xff]
    %v2242 = vld [vmem:[#allocation2 + $0x9d0] sm:$0xff]
    %v2243 = vld [vmem:[#allocation2 + $0x9d8] sm:$0xff]
    %v2244 = vld [vmem:[#allocation2 + $0x9e0] sm:$0xff]
    %v2245 = vld [vmem:[#allocation2 + $0x9e8] sm:$0xff]
    %v2246 = vld [vmem:[#allocation2 + $0x9f0] sm:$0xff]
    %v2247 = vld [vmem:[#allocation2 + $0x9f8] sm:$0xff]
    %v2248 = vld [vmem:[#allocation2 + $0xa00] sm:$0xff]
    %v2249 = vld [vmem:[#allocation2 + $0xa08] sm:$0xff]
    %v2250 = vld [vmem:[#allocation2 + $0xa10] sm:$0xff]
    %v2251 = vld [vmem:[#allocation2 + $0xa18] sm:$0xff]
    %v2252 = vld [vmem:[#allocation2 + $0xa20] sm:$0xff]
    %v2253 = vld [vmem:[#allocation2 + $0xa28] sm:$0xff]
    %v2254 = vld [vmem:[#allocation2 + $0xa30] sm:$0xff]
    %v2255 = vld [vmem:[#allocation2 + $0xa38] sm:$0xff]
    %v2256 = vld [vmem:[#allocation2 + $0xa40] sm:$0xff]
    %v2257 = vld [vmem:[#allocation2 + $0xa48] sm:$0xff]
    %v2258 = vld [vmem:[#allocation2 + $0xa50] sm:$0xff]
    %v2259 = vld [vmem:[#allocation2 + $0xa58] sm:$0xff]
    %v2260 = vld [vmem:[#allocation2 + $0xa60] sm:$0xff]
    %v2261 = vld [vmem:[#allocation2 + $0xa68] sm:$0xff]
    %v2262 = vld [vmem:[#allocation2 + $0xa70] sm:$0xff]
    %v2263 = vld [vmem:[#allocation2 + $0xa78] sm:$0xff]
    %v2264 = vld [vmem:[#allocation2 + $0xa80] sm:$0xff]
    %v2265 = vld [vmem:[#allocation2 + $0xa88] sm:$0xff]
    %v2266 = vld [vmem:[#allocation2 + $0xa90] sm:$0xff]
    %v2267 = vld [vmem:[#allocation2 + $0xa98] sm:$0xff]
    %v2268 = vld [vmem:[#allocation2 + $0xaa0] sm:$0xff]
    %v2269 = vld [vmem:[#allocation2 + $0xaa8] sm:$0xff]
    %s2270 = scalar_lea.vmem [#allocation2], 2736
    %v2271 = vld [vmem:[%s2270] ss:$8 sm:$0x7]
    %v2273 = vlaneseq
    %v2274 = vshrl.u32 %v2273, 7
    %v2275 = vsub.s32 0, %v2274
    %v2276 = vrot.slane %v2271, %v2275
    %v2277 = vlaneseq
    %v2278 = vshrl.u32 %v2277, 7
    %v2279 = vsub.s32 1, %v2278
    %v2280 = vrot.slane %v2271, %v2279
    %v2281 = vlaneseq
    %v2282 = vshrl.u32 %v2281, 7
    %v2283 = vsub.s32 2, %v2282
    %v2284 = vrot.slane %v2271, %v2283
    %2288 = vmatprep.subr.mxu0 %v2175
    %2289 = vmatpush1.msra.mxu0 %v2174
    %2290 = vmatprep.subr.mxu0 %v2178
    %2291 = vmatpush1.msra.mxu0 %v2177
    %2292 = vmatprep.subr.mxu0 %v2181
    %2293 = vmatpush1.msra.mxu0 %v2180
    %2294 = vmatprep.subr.mxu0 %v2184
    %2295 = vmatpush1.msra.mxu0 %v2183
    %2296 = vmatprep.subr.mxu0 %v2187
    %2297 = vmatpush1.msra.mxu0 %v2186
    %2298 = vmatprep.subr.mxu0 %v2190
    %2299 = vmatpush1.msra.mxu0 %v2189
    %2300 = vmatprep.subr.mxu0 %v2193
    %2301 = vmatpush1.msra.mxu0 %v2192
    %2302 = vmatprep.subr.mxu0 %v2196
    %2303 = vmatpush1.msra.mxu0 %v2195
    %2304 = vmatprep.subr.mxu0 %v2199
    %2305 = vmatpush1.msra.mxu0 %v2198
    %2306 = vmatprep.subr.mxu0 %v2202
    %2307 = vmatpush1.msra.mxu0 %v2201
    %2308 = vmatprep.subr.mxu0 %v2205
    %2309 = vmatpush1.msra.mxu0 %v2204
    %2310 = vmatprep.subr.mxu0 %v2208
    %2311 = vmatpush1.msra.mxu0 %v2207
    %2312 = vmatprep.subr.mxu0 %v2211
    %2313 = vmatpush1.msra.mxu0 %v2210
    %2314 = vmatprep.subr.mxu0 %v2214
    %2315 = vmatpush1.msra.mxu0 %v2213
    %2316 = vmatprep.subr.mxu0 %v2217
    %2317 = vmatpush1.msra.mxu0 %v2216
    %2318 = vmatprep.subr.mxu0 %v2220
    %2319 = vmatpush1.msra.mxu0 %v2219
    %2320 = vmatprep.subr.mxu0 %v2223
    %2321 = vmatpush1.msra.mxu0 %v2222
    %2322 = vmatprep.subr.mxu0 %v2226
    %2323 = vmatpush1.msra.mxu0 %v2225
    %2324 = vmatprep.subr.mxu0 %v2229
    %2325 = vmatpush1.msra.mxu0 %v2228
    %2326 = vmatprep.subr.mxu0 %v2232
    %2327 = vmatpush1.msra.mxu0 %v2231
    %2328 = vmatprep.subr.mxu0 %v2235
    %2329 = vmatpush1.msra.mxu0 %v2234
    %2330 = vmatprep.subr.mxu0 %v2238
    %2331 = vmatpush1.msra.mxu0 %v2237
    %2332 = vmatprep.subr.mxu0 %v2241
    %2333 = vmatpush1.msra.mxu0 %v2240
    %2334 = vmatprep.subr.mxu0 %v2244
    %2335 = vmatpush1.msra.mxu0 %v2243
    %2336 = vmatprep.subr.mxu0 %v2247
    %2337 = vmatpush1.msra.mxu0 %v2246
    %2338 = vmatprep.subr.mxu0 %v2250
    %2339 = vmatpush1.msra.mxu0 %v2249
    %2340 = vmatprep.subr.mxu0 %v2253
    %2341 = vmatpush1.msra.mxu0 %v2252
    %2342 = vmatprep.subr.mxu0 %v2256
    %2343 = vmatpush1.msra.mxu0 %v2255
    %2344 = vmatprep.subr.mxu0 %v2259
    %2345 = vmatpush1.msra.mxu0 %v2258
    %2346 = vmatprep.subr.mxu0 %v2262
    %2347 = vmatpush1.msra.mxu0 %v2261
    %2348 = vmatprep.subr.mxu0 %v2265
    %2349 = vmatpush1.msra.mxu0 %v2264
    %2350 = vmatprep.subr.mxu0 %v2268
    %2351 = vmatpush1.msra.mxu0 %v2267
    %2352 = vmatprep.mubr.f32.mxu0 %v2173
    %2353 = vmatmul.mubr.f32.gmra.mrb[0].mxu0 %v2172
    %v2354 = vpop.f32.mrb[0].mxu0
    %v2355 = vadd.f32 %v2276, %v2354
    %v2356 = vpop.f32.mrb[0].mxu0
    %v2357 = vadd.f32 %v2280, %v2356
    %2358 = vdwg.mxu0
    %2359 = vmatprep.subr.mxu0 0.0
    %2360 = vmatpush1.msra.mxu0 %v2176
    %2361 = vmatprep.subr.mxu0 0.0
    %2362 = vmatpush1.msra.mxu0 %v2179
    %2363 = vmatprep.subr.mxu0 0.0
    %2364 = vmatpush1.msra.mxu0 %v2182
    %2365 = vmatprep.subr.mxu0 0.0
    %2366 = vmatpush1.msra.mxu0 %v2185
    %2367 = vmatprep.subr.mxu0 0.0
    %2368 = vmatpush1.msra.mxu0 %v2188
    %2369 = vmatprep.subr.mxu0 0.0
    %2370 = vmatpush1.msra.mxu0 %v2191
    %2371 = vmatprep.subr.mxu0 0.0
    %2372 = vmatpush1.msra.mxu0 %v2194
    %2373 = vmatprep.subr.mxu0 0.0
    %2374 = vmatpush1.msra.mxu0 %v2197
    %2375 = vmatprep.subr.mxu0 0.0
    %2376 = vmatpush1.msra.mxu0 %v2200
    %2377 = vmatprep.subr.mxu0 0.0
    %2378 = vmatpush1.msra.mxu0 %v2203
    %2379 = vmatprep.subr.mxu0 0.0
    %2380 = vmatpush1.msra.mxu0 %v2206
    %2381 = vmatprep.subr.mxu0 0.0
    %2382 = vmatpush1.msra.mxu0 %v2209
    %2383 = vmatprep.subr.mxu0 0.0
    %2384 = vmatpush1.msra.mxu0 %v2212
    %2385 = vmatprep.subr.mxu0 0.0
    %2386 = vmatpush1.msra.mxu0 %v2215
    %2387 = vmatprep.subr.mxu0 0.0
    %2388 = vmatpush1.msra.mxu0 %v2218
    %2389 = vmatprep.subr.mxu0 0.0
    %2390 = vmatpush1.msra.mxu0 %v2221
    %2391 = vmatprep.subr.mxu0 0.0
    %2392 = vmatpush1.msra.mxu0 %v2224
    %2393 = vmatprep.subr.mxu0 0.0
    %2394 = vmatpush1.msra.mxu0 %v2227
    %2395 = vmatprep.subr.mxu0 0.0
    %2396 = vmatpush1.msra.mxu0 %v2230
    %2397 = vmatprep.subr.mxu0 0.0
    %2398 = vmatpush1.msra.mxu0 %v2233
    %2399 = vmatprep.subr.mxu0 0.0
    %2400 = vmatpush1.msra.mxu0 %v2236
    %2401 = vmatprep.subr.mxu0 0.0
    %2402 = vmatpush1.msra.mxu0 %v2239
    %2403 = vmatprep.subr.mxu0 0.0
    %2404 = vmatpush1.msra.mxu0 %v2242
    %2405 = vmatprep.subr.mxu0 0.0
    %2406 = vmatpush1.msra.mxu0 %v2245
    %2407 = vmatprep.subr.mxu0 0.0
    %2408 = vmatpush1.msra.mxu0 %v2248
    %2409 = vmatprep.subr.mxu0 0.0
    %2410 = vmatpush1.msra.mxu0 %v2251
    %2411 = vmatprep.subr.mxu0 0.0
    %2412 = vmatpush1.msra.mxu0 %v2254
    %2413 = vmatprep.subr.mxu0 0.0
    %2414 = vmatpush1.msra.mxu0 %v2257
    %2415 = vmatprep.subr.mxu0 0.0
    %2416 = vmatpush1.msra.mxu0 %v2260
    %2417 = vmatprep.subr.mxu0 0.0
    %2418 = vmatpush1.msra.mxu0 %v2263
    %2419 = vmatprep.subr.mxu0 0.0
    %2420 = vmatpush1.msra.mxu0 %v2266
    %2421 = vmatprep.subr.mxu0 0.0
    %2422 = vmatpush1.msra.mxu0 %v2269
    %2423 = vmatprep.mubr.f32.mxu0 %v2173
    %2424 = vmatmul.mubr.f32.gmra.mrb[0].mxu0 %v2172
    %v2425 = vpop.f32.mrb[0].mxu0
    %v2426 = vadd.f32 %v2284, %v2425
    %v2427 = vpop.f32.mrb[0].mxu0
    %2428 = vdwg.mxu0
    %v2429 = vmax.f32 %v2355, 0.0
    %v2430 = vmax.f32 %v2357, 0.0
    %v2431 = vmax.f32 %v2426, 0.0
    %v2432 = vld [vmem:[#allocation4 + $0xc20] sm:$0xff]
    %v2433 = vld [vmem:[#allocation4 + $0xc28] sm:$0xff]
    %v2434 = vld [vmem:[#allocation4 + $0xc30] sm:$0xff]
    %v2435 = vld [vmem:[#allocation4 + $0xc38] sm:$0xff]
    %v2436 = vld [vmem:[#allocation4 + $0xc40] sm:$0xff]
    %v2437 = vld [vmem:[#allocation4 + $0xc48] sm:$0xff]
    %v2438 = vld [vmem:[#allocation4 + $0xc50] sm:$0xff]
    %v2439 = vld [vmem:[#allocation4 + $0xc58] sm:$0xff]
    %v2440 = vld [vmem:[#allocation4 + $0xc60] sm:$0xff]
    %v2441 = vld [vmem:[#allocation4 + $0xc68] sm:$0xff]
    %v2442 = vld [vmem:[#allocation4 + $0xc70] sm:$0xff]
    %v2443 = vld [vmem:[#allocation4 + $0xc78] sm:$0xff]
    %v2444 = vld [vmem:[#allocation4 + $0xc80] sm:$0xff]
    %v2445 = vld [vmem:[#allocation4 + $0xc88] sm:$0xff]
    %v2446 = vld [vmem:[#allocation4 + $0xc90] sm:$0xff]
    %v2447 = vld [vmem:[#allocation4 + $0xc98] sm:$0xff]
    %v2448 = vld [vmem:[#allocation4 + $0xca0] sm:$0xff]
    %v2449 = vld [vmem:[#allocation4 + $0xca8] sm:$0xff]
    %v2450 = vld [vmem:[#allocation4 + $0xcb0] sm:$0xff]
    %v2451 = vld [vmem:[#allocation4 + $0xcb8] sm:$0xff]
    %v2452 = vld [vmem:[#allocation4 + $0xcc0] sm:$0xff]
    %v2453 = vld [vmem:[#allocation4 + $0xcc8] sm:$0xff]
    %v2454 = vld [vmem:[#allocation4 + $0xcd0] sm:$0xff]
    %v2455 = vld [vmem:[#allocation4 + $0xcd8] sm:$0xff]
    %v2456 = vld [vmem:[#allocation4 + $0xce0] sm:$0xff]
    %v2457 = vld [vmem:[#allocation4 + $0xce8] sm:$0xff]
    %v2458 = vld [vmem:[#allocation4 + $0xcf0] sm:$0xff]
    %v2459 = vld [vmem:[#allocation4 + $0xcf8] sm:$0xff]
    %v2460 = vld [vmem:[#allocation4 + $0xd00] sm:$0xff]
    %v2461 = vld [vmem:[#allocation4 + $0xd08] sm:$0xff]
    %v2462 = vld [vmem:[#allocation4 + $0xd10] sm:$0xff]
    %v2463 = vld [vmem:[#allocation4 + $0xd18] sm:$0xff]
    %v2464 = vld [vmem:[#allocation4 + $0xd20] sm:$0xff]
    %v2465 = vld [vmem:[#allocation4 + $0xd28] sm:$0xff]
    %v2466 = vld [vmem:[#allocation4 + $0xd30] sm:$0xff]
    %v2467 = vld [vmem:[#allocation4 + $0xd38] sm:$0xff]
    %v2468 = vld [vmem:[#allocation4 + $0xd40] sm:$0xff]
    %v2469 = vld [vmem:[#allocation4 + $0xd48] sm:$0xff]
    %v2470 = vld [vmem:[#allocation4 + $0xd50] sm:$0xff]
    %v2471 = vld [vmem:[#allocation4 + $0xd58] sm:$0xff]
    %v2472 = vld [vmem:[#allocation4 + $0xd60] sm:$0xff]
    %v2473 = vld [vmem:[#allocation4 + $0xd68] sm:$0xff]
    %v2474 = vld [vmem:[#allocation4 + $0xd70] sm:$0xff]
    %v2475 = vld [vmem:[#allocation4 + $0xd78] sm:$0xff]
    %v2476 = vld [vmem:[#allocation4 + $0xd80] sm:$0xff]
    %v2477 = vld [vmem:[#allocation4 + $0xd88] sm:$0xff]
    %v2478 = vld [vmem:[#allocation4 + $0xd90] sm:$0xff]
    %v2479 = vld [vmem:[#allocation4 + $0xd98] sm:$0xff]
    %v2480 = vld [vmem:[#allocation4 + $0xda0] sm:$0xff]
    %v2481 = vld [vmem:[#allocation4 + $0xda8] sm:$0xff]
    %v2482 = vld [vmem:[#allocation4 + $0xdb0] sm:$0xff]
    %v2483 = vld [vmem:[#allocation4 + $0xdb8] sm:$0xff]
    %v2484 = vld [vmem:[#allocation4 + $0xdc0] sm:$0xff]
    %v2485 = vld [vmem:[#allocation4 + $0xdc8] sm:$0xff]
    %v2486 = vld [vmem:[#allocation4 + $0xdd0] sm:$0xff]
    %v2487 = vld [vmem:[#allocation4 + $0xdd8] sm:$0xff]
    %v2488 = vld [vmem:[#allocation4 + $0xde0] sm:$0xff]
    %v2489 = vld [vmem:[#allocation4 + $0xde8] sm:$0xff]
    %v2490 = vld [vmem:[#allocation4 + $0xdf0] sm:$0xff]
    %v2491 = vld [vmem:[#allocation4 + $0xdf8] sm:$0xff]
    %v2492 = vld [vmem:[#allocation4 + $0xe00] sm:$0xff]
    %v2493 = vld [vmem:[#allocation4 + $0xe08] sm:$0xff]
    %v2494 = vld [vmem:[#allocation4 + $0xe10] sm:$0xff]
    %v2495 = vld [vmem:[#allocation4 + $0xe18] sm:$0xff]
    %v2496 = vld [vmem:[#allocation4 + $0xe20] sm:$0xff]
    %v2497 = vld [vmem:[#allocation4 + $0xe28] sm:$0xff]
    %v2498 = vld [vmem:[#allocation4 + $0xe30] sm:$0xff]
    %v2499 = vld [vmem:[#allocation4 + $0xe38] sm:$0xff]
    %v2500 = vld [vmem:[#allocation4 + $0xe40] sm:$0xff]
    %v2501 = vld [vmem:[#allocation4 + $0xe48] sm:$0xff]
    %v2502 = vld [vmem:[#allocation4 + $0xe50] sm:$0xff]
    %v2503 = vld [vmem:[#allocation4 + $0xe58] sm:$0xff]
    %v2504 = vld [vmem:[#allocation4 + $0xe60] sm:$0xff]
    %v2505 = vld [vmem:[#allocation4 + $0xe68] sm:$0xff]
    %v2506 = vld [vmem:[#allocation4 + $0xe70] sm:$0xff]
    %v2507 = vld [vmem:[#allocation4 + $0xe78] sm:$0xff]
    %v2508 = vld [vmem:[#allocation4 + $0xe80] sm:$0xff]
    %v2509 = vld [vmem:[#allocation4 + $0xe88] sm:$0xff]
    %v2510 = vld [vmem:[#allocation4 + $0xe90] sm:$0xff]
    %v2511 = vld [vmem:[#allocation4 + $0xe98] sm:$0xff]
    %v2512 = vld [vmem:[#allocation4 + $0xea0] sm:$0xff]
    %v2513 = vld [vmem:[#allocation4 + $0xea8] sm:$0xff]
    %v2514 = vld [vmem:[#allocation4 + $0xeb0] sm:$0xff]
    %v2515 = vld [vmem:[#allocation4 + $0xeb8] sm:$0xff]
    %v2516 = vld [vmem:[#allocation4 + $0xec0] sm:$0xff]
    %v2517 = vld [vmem:[#allocation4 + $0xec8] sm:$0xff]
    %v2518 = vld [vmem:[#allocation4 + $0xed0] sm:$0xff]
    %v2519 = vld [vmem:[#allocation4 + $0xed8] sm:$0xff]
    %v2520 = vld [vmem:[#allocation4 + $0xee0] sm:$0xff]
    %v2521 = vld [vmem:[#allocation4 + $0xee8] sm:$0xff]
    %v2522 = vld [vmem:[#allocation4 + $0xef0] sm:$0xff]
    %v2523 = vld [vmem:[#allocation4 + $0xef8] sm:$0xff]
    %v2524 = vld [vmem:[#allocation4 + $0xf00] sm:$0xff]
    %v2525 = vld [vmem:[#allocation4 + $0xf08] sm:$0xff]
    %v2526 = vld [vmem:[#allocation4 + $0xf10] sm:$0xff]
    %v2527 = vld [vmem:[#allocation4 + $0xf18] sm:$0xff]
    %s2528 = scalar_lea.vmem [#allocation4], 3872
    %v2529 = vld [vmem:[%s2528] ss:$8 sm:$0x3]
    %v2531 = vlaneseq
    %v2532 = vshrl.u32 %v2531, 7
    %v2533 = vsub.s32 0, %v2532
    %v2534 = vrot.slane %v2529, %v2533
    %v2535 = vlaneseq
    %v2536 = vshrl.u32 %v2535, 7
    %v2537 = vsub.s32 1, %v2536
    %v2538 = vrot.slane %v2529, %v2537
    %2541 = vmatprep.subr.mxu0 %v2433
    %2542 = vmatpush1.msra.mxu0 %v2432
    %2543 = vmatprep.subr.mxu0 %v2435
    %2544 = vmatpush1.msra.mxu0 %v2434
    %2545 = vmatprep.subr.mxu0 %v2437
    %2546 = vmatpush1.msra.mxu0 %v2436
    %2547 = vmatprep.subr.mxu0 %v2439
    %2548 = vmatpush1.msra.mxu0 %v2438
    %2549 = vmatprep.subr.mxu0 %v2441
    %2550 = vmatpush1.msra.mxu0 %v2440
    %2551 = vmatprep.subr.mxu0 %v2443
    %2552 = vmatpush1.msra.mxu0 %v2442
    %2553 = vmatprep.subr.mxu0 %v2445
    %2554 = vmatpush1.msra.mxu0 %v2444
    %2555 = vmatprep.subr.mxu0 %v2447
    %2556 = vmatpush1.msra.mxu0 %v2446
    %2557 = vmatprep.subr.mxu0 %v2449
    %2558 = vmatpush1.msra.mxu0 %v2448
    %2559 = vmatprep.subr.mxu0 %v2451
    %2560 = vmatpush1.msra.mxu0 %v2450
    %2561 = vmatprep.subr.mxu0 %v2453
    %2562 = vmatpush1.msra.mxu0 %v2452
    %2563 = vmatprep.subr.mxu0 %v2455
    %2564 = vmatpush1.msra.mxu0 %v2454
    %2565 = vmatprep.subr.mxu0 %v2457
    %2566 = vmatpush1.msra.mxu0 %v2456
    %2567 = vmatprep.subr.mxu0 %v2459
    %2568 = vmatpush1.msra.mxu0 %v2458
    %2569 = vmatprep.subr.mxu0 %v2461
    %2570 = vmatpush1.msra.mxu0 %v2460
    %2571 = vmatprep.subr.mxu0 %v2463
    %2572 = vmatpush1.msra.mxu0 %v2462
    %2573 = vmatprep.subr.mxu0 %v2465
    %2574 = vmatpush1.msra.mxu0 %v2464
    %2575 = vmatprep.subr.mxu0 %v2467
    %2576 = vmatpush1.msra.mxu0 %v2466
    %2577 = vmatprep.subr.mxu0 %v2469
    %2578 = vmatpush1.msra.mxu0 %v2468
    %2579 = vmatprep.subr.mxu0 %v2471
    %2580 = vmatpush1.msra.mxu0 %v2470
    %2581 = vmatprep.subr.mxu0 %v2473
    %2582 = vmatpush1.msra.mxu0 %v2472
    %2583 = vmatprep.subr.mxu0 %v2475
    %2584 = vmatpush1.msra.mxu0 %v2474
    %2585 = vmatprep.subr.mxu0 %v2477
    %2586 = vmatpush1.msra.mxu0 %v2476
    %2587 = vmatprep.subr.mxu0 %v2479
    %2588 = vmatpush1.msra.mxu0 %v2478
    %2589 = vmatprep.subr.mxu0 %v2481
    %2590 = vmatpush1.msra.mxu0 %v2480
    %2591 = vmatprep.subr.mxu0 %v2483
    %2592 = vmatpush1.msra.mxu0 %v2482
    %2593 = vmatprep.subr.mxu0 %v2485
    %2594 = vmatpush1.msra.mxu0 %v2484
    %2595 = vmatprep.subr.mxu0 %v2487
    %2596 = vmatpush1.msra.mxu0 %v2486
    %2597 = vmatprep.subr.mxu0 %v2489
    %2598 = vmatpush1.msra.mxu0 %v2488
    %2599 = vmatprep.subr.mxu0 %v2491
    %2600 = vmatpush1.msra.mxu0 %v2490
    %2601 = vmatprep.subr.mxu0 %v2493
    %2602 = vmatpush1.msra.mxu0 %v2492
    %2603 = vmatprep.subr.mxu0 %v2495
    %2604 = vmatpush1.msra.mxu0 %v2494
    %2605 = vmatprep.mubr.f32.mxu0 %v2430
    %2606 = vmatmul.mubr.f32.gmra.mrb[0].mxu0 %v2429
    %v2607 = vpop.f32.mrb[0].mxu0
    %v2608 = vadd.f32 %v2534, %v2607
    %v2609 = vpop.f32.mrb[0].mxu0
    %v2610 = vadd.f32 %v2538, %v2609
    %2611 = vdwg.mxu0
    %2612 = vmatprep.subr.mxu0 %v2497
    %2613 = vmatpush1.msra.mxu0 %v2496
    %2614 = vmatprep.subr.mxu0 %v2499
    %2615 = vmatpush1.msra.mxu0 %v2498
    %2616 = vmatprep.subr.mxu0 %v2501
    %2617 = vmatpush1.msra.mxu0 %v2500
    %2618 = vmatprep.subr.mxu0 %v2503
    %2619 = vmatpush1.msra.mxu0 %v2502
    %2620 = vmatprep.subr.mxu0 %v2505
    %2621 = vmatpush1.msra.mxu0 %v2504
    %2622 = vmatprep.subr.mxu0 %v2507
    %2623 = vmatpush1.msra.mxu0 %v2506
    %2624 = vmatprep.subr.mxu0 %v2509
    %2625 = vmatpush1.msra.mxu0 %v2508
    %2626 = vmatprep.subr.mxu0 %v2511
    %2627 = vmatpush1.msra.mxu0 %v2510
    %2628 = vmatprep.subr.mxu0 %v2513
    %2629 = vmatpush1.msra.mxu0 %v2512
    %2630 = vmatprep.subr.mxu0 %v2515
    %2631 = vmatpush1.msra.mxu0 %v2514
    %2632 = vmatprep.subr.mxu0 %v2517
    %2633 = vmatpush1.msra.mxu0 %v2516
    %2634 = vmatprep.subr.mxu0 %v2519
    %2635 = vmatpush1.msra.mxu0 %v2518
    %2636 = vmatprep.subr.mxu0 %v2521
    %2637 = vmatpush1.msra.mxu0 %v2520
    %2638 = vmatprep.subr.mxu0 %v2523
    %2639 = vmatpush1.msra.mxu0 %v2522
    %2640 = vmatprep.subr.mxu0 %v2525
    %2641 = vmatpush1.msra.mxu0 %v2524
    %2642 = vmatprep.subr.mxu0 %v2527
    %2643 = vmatpush1.msra.mxu0 %v2526
    %2644 = vmatprep.subr.mxu0 0.0
    %2645 = vmatpush1.msra.mxu0 0.0
    %2646 = vmatprep.subr.mxu0 0.0
    %2647 = vmatpush1.msra.mxu0 0.0
    %2648 = vmatprep.subr.mxu0 0.0
    %2649 = vmatpush1.msra.mxu0 0.0
    %2650 = vmatprep.subr.mxu0 0.0
    %2651 = vmatpush1.msra.mxu0 0.0
    %2652 = vmatprep.subr.mxu0 0.0
    %2653 = vmatpush1.msra.mxu0 0.0
    %2654 = vmatprep.subr.mxu0 0.0
    %2655 = vmatpush1.msra.mxu0 0.0
    %2656 = vmatprep.subr.mxu0 0.0
    %2657 = vmatpush1.msra.mxu0 0.0
    %2658 = vmatprep.subr.mxu0 0.0
    %2659 = vmatpush1.msra.mxu0 0.0
    %2660 = vmatprep.subr.mxu0 0.0
    %2661 = vmatpush1.msra.mxu0 0.0
    %2662 = vmatprep.subr.mxu0 0.0
    %2663 = vmatpush1.msra.mxu0 0.0
    %2664 = vmatprep.subr.mxu0 0.0
    %2665 = vmatpush1.msra.mxu0 0.0
    %2666 = vmatprep.subr.mxu0 0.0
    %2667 = vmatpush1.msra.mxu0 0.0
    %2668 = vmatprep.subr.mxu0 0.0
    %2669 = vmatpush1.msra.mxu0 0.0
    %2670 = vmatprep.subr.mxu0 0.0
    %2671 = vmatpush1.msra.mxu0 0.0
    %2672 = vmatprep.subr.mxu0 0.0
    %2673 = vmatpush1.msra.mxu0 0.0
    %2674 = vmatprep.subr.mxu0 0.0
    %2675 = vmatpush1.msra.mxu0 0.0
    %2676 = vmatprep.mubr.f32.mxu0 0.0
    %2677 = vmatmul.mubr.f32.gmra.mrb[0].mxu0 %v2431
    %v2678 = vpop.f32.mrb[0].mxu0
    %v2679 = vadd.f32 %v2608, %v2678
    %v2680 = vpop.f32.mrb[0].mxu0
    %v2681 = vadd.f32 %v2610, %v2680
    %2682 = vdwg.mxu0
    %v2683 = vmax.f32 %v2679, 0.0
    %v2684 = vmax.f32 %v2681, 0.0
    %2685 = vst [vmem:[%s4] sm:$0xff] %v2683
    %2686 = vst [vmem:[%s4 + $0x8] sm:$0xff] %v2684
    // Predicated region
    $region26: #{emo_encode_fused.1} parent=1 // pred_check
      _
    $region27: #{emo_encode_fused.1} parent=1 // pred_check_branch
      %2688 = sbr.rel (0) target = $region29
    $region28: #{emo_encode_fused.1} parent=1 // pred_region
      _
    $region29: #{emo_encode_fused.1} parent=1 // pred_fallthru
      _
    // Predicated region
    $region30: #{emo_encode_fused.1} parent=1 // pred_check
      _
    $region31: #{emo_encode_fused.1} parent=1 // pred_check_branch
      %2690 = sbr.rel (0) target = $region33
    $region32: #{emo_encode_fused.1} parent=1 // pred_region
      _
    $region33: #{emo_encode_fused.1} parent=1 // pred_fallthru
      _
    %2691 = vsyncpa [#allocation3], 1
    %2692 = vsyncpa [#allocation5], 1

</llo_original>
